<compile_context>
chip_gen: v6e
topology: v6e:2x2x1
jax: 0.10.0
libtpu: 0.0.40
codegen_flags: <defaults>
</compile_context>

<pallas_src>
import functools

import jax
import jax.numpy as jnp
from jax import lax
from jax.experimental import pallas as pl
from jax.experimental.pallas import tpu as pltpu

LANE = 128     # vreg lane width    -> hidden-dim / fc-output padding target
SUBLANE = 8    # vreg sublane width -> batch padding target


def _round_up(x, m):
    return (x + m - 1) // m * m


def _sigmoid(x):
    # sigmoid(x) == 0.5 * (1 + tanh(x/2)): a single EUP transcendental per gate.
    return 0.5 * (jnp.tanh(0.5 * x) + 1.0)


# ----------------------------------------------------------------------------
# Fused Pallas kernel: encoder LSTM -> decoder LSTM -> Linear
# ----------------------------------------------------------------------------
def _seq2seq_kernel(enc_x_ref, dec_x_ref,
                    enc_w_ref, enc_u_ref, enc_b_ref,
                    dec_w_ref, dec_u_ref, dec_b_ref,
                    fc_w_ref, fc_b_ref,
                    y_ref,
                    enc_xg_sc, dec_xg_sc, hs_sc,
                    *, t_enc, t_dec, b_pad, h_pad):
    """All refs are whole-array VMEM blocks (no grid).

    enc_x_ref: (t_enc*b_pad, D_enc)   time-major, batch-padded, flattened
    dec_x_ref: (t_dec*b_pad, D_dec)
    *_w_ref:   (D, 4*h_pad)       input->gate weights, gate order (i, f, g, o)
    *_u_ref:   (h_pad, 4*h_pad)   hidden->gate weights
    *_b_ref:   (1, 4*h_pad)       b_ih + b_hh
    fc_w_ref:  (h_pad, LANE) zero-padded cols, fc_b_ref: (1, LANE)
    y_ref:     (t_dec*b_pad, LANE)  lane-dense; real result lives in column 0
    *_xg_sc:   VMEM scratch for the hoisted input projections
    hs_sc:     VMEM scratch (t_dec*b_pad, h_pad) for decoder hidden states
    """
    f32 = jnp.float32

    # Hoisted input projections: one batched MXU matmul per LSTM, bias folded in,
    # stored to VMEM scratch so they are not kept live across the unrolled chain.
    enc_xg_sc[...] = (jnp.dot(enc_x_ref[...], enc_w_ref[...],
                              preferred_element_type=f32) + enc_b_ref[...])
    dec_xg_sc[...] = (jnp.dot(dec_x_ref[...], dec_w_ref[...],
                              preferred_element_type=f32) + dec_b_ref[...])

    enc_u = enc_u_ref[...]
    dec_u = dec_u_ref[...]

    def lstm_step(xg_t, h, c, u):
        # Single recurrent matmul per step; gate slices are lane-aligned
        # (h_pad == 128) so they are full unmasked vregs.
        gates = xg_t + jnp.dot(h, u, preferred_element_type=f32)
        i = _sigmoid(gates[:, 0 * h_pad:1 * h_pad])
        f = _sigmoid(gates[:, 1 * h_pad:2 * h_pad])
        g = jnp.tanh(gates[:, 2 * h_pad:3 * h_pad])
        o = _sigmoid(gates[:, 3 * h_pad:4 * h_pad])
        c_new = f * c + i * g
        h_new = o * jnp.tanh(c_new)
        return h_new, c_new

    h0 = jnp.zeros((b_pad, h_pad), f32)
    c0 = jnp.zeros((b_pad, h_pad), f32)

    # Encoder recurrence: unrolled fori_loop (scheduler-visible, bounded live ranges).
    def enc_body(t, carry):
        h, c = carry
        row = pl.multiple_of(t * b_pad, b_pad)
        xg_t = enc_xg_sc[pl.ds(row, b_pad), :]
        return lstm_step(xg_t, h, c, enc_u)

    h, c = lax.fori_loop(0, t_enc, enc_body, (h0, c0), unroll=True)

    # Decoder recurrence seeded with the encoder state; stash h_t in VMEM scratch.
    def dec_body(t, carry):
        h, c = carry
        row = pl.multiple_of(t * b_pad, b_pad)
        xg_t = dec_xg_sc[pl.ds(row, b_pad), :]
        h, c = lstm_step(xg_t, h, c, dec_u)
        hs_sc[pl.ds(row, b_pad), :] = h
        return (h, c)

    lax.fori_loop(0, t_dec, dec_body, (h, c), unroll=True)

    # Fused fc over all decoder steps at once; lane-dense (N = 128) single store.
    y_ref[...] = (jnp.dot(hs_sc[...], fc_w_ref[...], preferred_element_type=f32)
                  + fc_b_ref[...])


def _seq2seq_pallas(enc_x, dec_x, enc_w, enc_u, enc_b, dec_w, dec_u, dec_b,
                    fc_w, fc_b, *, t_enc, t_dec, b_pad, h_pad):
    kernel = functools.partial(_seq2seq_kernel, t_enc=t_enc, t_dec=t_dec,
                               b_pad=b_pad, h_pad=h_pad)
    vmem = pl.BlockSpec(memory_space=pltpu.MemorySpace.VMEM)
    args = (enc_x, dec_x, enc_w, enc_u, enc_b, dec_w, dec_u, dec_b, fc_w, fc_b)

    scratch = [pltpu.VMEM((t_enc * b_pad, 4 * h_pad), jnp.float32),
               pltpu.VMEM((t_dec * b_pad, 4 * h_pad), jnp.float32),
               pltpu.VMEM((t_dec * b_pad, h_pad), jnp.float32)]

    d_enc, d_dec = enc_x.shape[1], dec_x.shape[1]
    flops = (2 * t_enc * b_pad * d_enc * 4 * h_pad        # enc input projection
             + 2 * t_dec * b_pad * d_dec * 4 * h_pad      # dec input projection
             + 2 * (t_enc + t_dec) * b_pad * h_pad * 4 * h_pad  # recurrent matmuls
             + 2 * t_dec * b_pad * h_pad * LANE)          # fc
    transcendentals = 5 * (t_enc + t_dec) * b_pad * h_pad
    in_bytes = sum(int(a.size) * a.dtype.itemsize for a in args)
    out_bytes = t_dec * b_pad * LANE * 4
    scratch_bytes = 4 * (t_enc * b_pad * 4 * h_pad
                         + t_dec * b_pad * 4 * h_pad
                         + t_dec * b_pad * h_pad)
    vmem_limit = int(max(4 * 1024 * 1024,
                         2 * (in_bytes + out_bytes + scratch_bytes)))

    return pl.pallas_call(
        kernel,
        out_shape=jax.ShapeDtypeStruct((t_dec * b_pad, LANE), jnp.float32),
        in_specs=[vmem] * len(args),
        out_specs=vmem,
        scratch_shapes=scratch,
        compiler_params=pltpu.CompilerParams(vmem_limit_bytes=vmem_limit),
        cost_estimate=pl.CostEstimate(flops=flops,
                                      transcendentals=transcendentals,
                                      bytes_accessed=in_bytes + out_bytes),
    )(*args)


# ----------------------------------------------------------------------------
# Padding helpers (logical H, B  ->  lane/sublane aligned H_pad, B_pad)
# Zero padding keeps the real lanes exact (padded hidden lanes stay 0).
# ----------------------------------------------------------------------------
def _pad_gate_cols(w, h, h_pad):
    """(in, 4h) -> (in, 4*h_pad): each (i,f,g,o) gate block zero-padded to h_pad."""
    parts = []
    for k in range(4):
        blk = w[:, k * h:(k + 1) * h]
        parts.append(jnp.pad(blk, ((0, 0), (0, h_pad - h))))
    return jnp.concatenate(parts, axis=1)


def _pad_params(params, h, h_pad):
    return {
        "enc_w": _pad_gate_cols(params["enc_wih"], h, h_pad),
        "enc_u": jnp.pad(_pad_gate_cols(params["enc_whh"], h, h_pad),
                         ((0, h_pad - h), (0, 0))),
        "enc_b": _pad_gate_cols(params["enc_b"], h, h_pad),
        "dec_w": _pad_gate_cols(params["dec_wih"], h, h_pad),
        "dec_u": jnp.pad(_pad_gate_cols(params["dec_whh"], h, h_pad),
                         ((0, h_pad - h), (0, 0))),
        "dec_b": _pad_gate_cols(params["dec_b"], h, h_pad),
        # Lane-dense fc: pad output dim 1 -> LANE with zero columns.
        "fc_w": jnp.pad(params["fc_w"], ((0, h_pad - h), (0, LANE - 1))),
        "fc_b": jnp.pad(params["fc_b"], ((0, 0), (0, LANE - 1))),
    }


@jax.jit
def seq2seq_forward(encoder_inputs, decoder_inputs, params):
    """encoder_inputs: (B, T_enc, D); decoder_inputs: (B, T_dec, D-1).
    Returns (B, T_dec, 1), matching the PyTorch module."""
    B, t_enc, _ = encoder_inputs.shape
    _, t_dec, _ = decoder_inputs.shape
    h = params["enc_whh"].shape[0]
    h_pad = _round_up(h, LANE)
    b_pad = _round_up(B, SUBLANE)

    p = _pad_params(params, h, h_pad)

    def prep(x):  # (B, T, D) -> time-major, batch-padded, flattened (T*b_pad, D)
        t, d = x.shape[1], x.shape[2]
        x_tm = jnp.transpose(x, (1, 0, 2))
        x_tm = jnp.pad(x_tm, ((0, 0), (0, b_pad - B), (0, 0)))
        return x_tm.reshape(t * b_pad, d)

    y_flat = _seq2seq_pallas(prep(encoder_inputs), prep(decoder_inputs),
                             p["enc_w"], p["enc_u"], p["enc_b"],
                             p["dec_w"], p["dec_u"], p["dec_b"],
                             p["fc_w"], p["fc_b"],
                             t_enc=t_enc, t_dec=t_dec,
                             b_pad=b_pad, h_pad=h_pad)
    # Keep column 0 (real fc output), drop padded batch rows, back to batch-major.
    y = y_flat[:, :1].reshape(t_dec, b_pad, 1)[:, :B, :]   # (T_dec, B, 1)
    return jnp.transpose(y, (1, 0, 2))                     # (B, T_dec, 1)


# ----------------------------------------------------------------------------
# Deterministic parameter init (PyTorch-style uniform(-1/sqrt(H), 1/sqrt(H)))
# Stored pre-transposed at LOGICAL size: (in_features, 4H), gate order (i,f,g,o).
# ----------------------------------------------------------------------------
def init_params(key, input_dim, hidden_dim):
    bound = 1.0 / jnp.sqrt(jnp.float32(hidden_dim))
    ks = jax.random.split(key, 12)
    u = lambda k, shape: jax.random.uniform(k, shape, jnp.float32, -bound, bound)
    H, D, Dd = hidden_dim, input_dim, input_dim - 1
    return {
        "enc_wih": u(ks[0], (D, 4 * H)),
        "enc_whh": u(ks[1], (H, 4 * H)),
        "enc_b":  (u(ks[2], (1, 4 * H)) + u(ks[3], (1, 4 * H))),  # b_ih + b_hh
        "dec_wih": u(ks[4], (Dd, 4 * H)),
        "dec_whh": u(ks[5], (H, 4 * H)),
        "dec_b":  (u(ks[6], (1, 4 * H)) + u(ks[7], (1, 4 * H))),
        "fc_w":   u(ks[8], (H, 1)),
        "fc_b":   u(ks[9], (1, 1)),
    }


# ----------------------------------------------------------------------------
# Pure-JAX reference (unpadded, same semantics) for a sanity check
# ----------------------------------------------------------------------------
def _ref_lstm(x_bt, wih, whh, b, h, c, H):
    B, T, _ = x_bt.shape
    outs = []
    for t in range(T):
        gates = x_bt[:, t, :] @ wih + h @ whh + b
        i = jax.nn.sigmoid(gates[:, 0 * H:1 * H])
        f = jax.nn.sigmoid(gates[:, 1 * H:2 * H])
        g = jnp.tanh(gates[:, 2 * H:3 * H])
        o = jax.nn.sigmoid(gates[:, 3 * H:4 * H])
        c = f * c + i * g
        h = o * jnp.tanh(c)
        outs.append(h)
    return jnp.stack(outs, axis=1), h, c


def reference_forward(encoder_inputs, decoder_inputs, params, H):
    B = encoder_inputs.shape[0]
    h0 = jnp.zeros((B, H), jnp.float32)
    c0 = jnp.zeros((B, H), jnp.float32)
    _, h, c = _ref_lstm(encoder_inputs, params["enc_wih"], params["enc_whh"],
                        params["enc_b"], h0, c0, H)
    dec_out, _, _ = _ref_lstm(decoder_inputs, params["dec_wih"],
                              params["dec_whh"], params["dec_b"], h, c, H)
    return dec_out @ params["fc_w"] + params["fc_b"]


# ----------------------------------------------------------------------------
if __name__ == "__main__":
    INPUT_SIZE = 4
    HIDDEN_SIZE = 32
    B, T_ENC, T_DEC = 2, 8, 8

    key = jax.random.PRNGKey(0)
    k_enc, k_dec, k_par = jax.random.split(key, 3)

    encoder_inputs = jax.random.normal(k_enc, (B, T_ENC, INPUT_SIZE),
                                       jnp.float32)
    decoder_inputs = jax.random.normal(k_dec, (B, T_DEC, INPUT_SIZE - 1),
                                       jnp.float32)
    params = init_params(k_par, INPUT_SIZE, HIDDEN_SIZE)

    out = seq2seq_forward(encoder_inputs, decoder_inputs, params)
    out = jax.block_until_ready(out)

    ref = reference_forward(encoder_inputs, decoder_inputs, params,
                            HIDDEN_SIZE)
    assert out.shape == (B, T_DEC, 1), out.shape
    err = float(jnp.max(jnp.abs(out - ref)))
    assert jnp.allclose(out, ref, rtol=1e-4, atol=1e-4), err

    print("KERNEL_OK")
</pallas_src>

<mosaic_0001>
module attributes {stable_mosaic.version = 11 : i64} {
  func.func @_seq2seq_kernel(%arg0: memref<64x4xf32, #tpu.memory_space<vmem>>, %arg1: memref<64x3xf32, #tpu.memory_space<vmem>>, %arg2: memref<4x512xf32, #tpu.memory_space<vmem>>, %arg3: memref<128x512xf32, #tpu.memory_space<vmem>>, %arg4: memref<1x512xf32, #tpu.memory_space<vmem>>, %arg5: memref<3x512xf32, #tpu.memory_space<vmem>>, %arg6: memref<128x512xf32, #tpu.memory_space<vmem>>, %arg7: memref<1x512xf32, #tpu.memory_space<vmem>>, %arg8: memref<128x128xf32, #tpu.memory_space<vmem>>, %arg9: memref<1x128xf32, #tpu.memory_space<vmem>>, %arg10: memref<64x128xf32, #tpu.memory_space<vmem>>, %arg11: memref<64x512xf32, #tpu.memory_space<vmem>>, %arg12: memref<64x512xf32, #tpu.memory_space<vmem>>, %arg13: memref<64x128xf32, #tpu.memory_space<vmem>>) attributes {dimension_semantics = [], scalar_prefetch = 0 : i64, scratch_operands = 3 : i64, tpu.core_type = #tpu.core_type<tc>} {
    %c0 = arith.constant 0 : index
    %c0_0 = arith.constant 0 : index
    %0 = vector.load %arg0[%c0, %c0_0] : memref<64x4xf32, #tpu.memory_space<vmem>>, vector<64x4xf32>
    %c0_1 = arith.constant 0 : index
    %c0_2 = arith.constant 0 : index
    %1 = vector.load %arg2[%c0_1, %c0_2] : memref<4x512xf32, #tpu.memory_space<vmem>>, vector<4x512xf32>
    %cst = arith.constant dense<0.000000e+00> : vector<64x512xf32>
    %2 = tpu.matmul %0, %1, %cst {dimension_numbers = #tpu.dot_dimension_numbers<[1], [0], [0], [1], [0, 0, 1, 1], [], []>} : vector<64x4xf32>, vector<4x512xf32>, vector<64x512xf32> -> vector<64x512xf32>
    %c0_3 = arith.constant 0 : index
    %c0_4 = arith.constant 0 : index
    %3 = vector.load %arg4[%c0_3, %c0_4] : memref<1x512xf32, #tpu.memory_space<vmem>>, vector<1x512xf32>
    %4 = vector.broadcast %3 : vector<1x512xf32> to vector<64x512xf32>
    %5 = arith.addf %2, %4 : vector<64x512xf32>
    %c0_5 = arith.constant 0 : index
    %c0_6 = arith.constant 0 : index
    %6 = vector.load %arg11[%c0_5, %c0_6] : memref<64x512xf32, #tpu.memory_space<vmem>>, vector<64x512xf32>
    tpu.vector_store %arg11[%c0_5, %c0_6], %5 {strides = array<i32>} : memref<64x512xf32, #tpu.memory_space<vmem>>, vector<64x512xf32>,
    %c0_7 = arith.constant 0 : index
    %c0_8 = arith.constant 0 : index
    %7 = vector.load %arg1[%c0_7, %c0_8] : memref<64x3xf32, #tpu.memory_space<vmem>>, vector<64x3xf32>
    %c0_9 = arith.constant 0 : index
    %c0_10 = arith.constant 0 : index
    %8 = vector.load %arg5[%c0_9, %c0_10] : memref<3x512xf32, #tpu.memory_space<vmem>>, vector<3x512xf32>
    %cst_11 = arith.constant dense<0.000000e+00> : vector<64x512xf32>
    %9 = tpu.matmul %7, %8, %cst_11 {dimension_numbers = #tpu.dot_dimension_numbers<[1], [0], [0], [1], [0, 0, 1, 1], [], []>} : vector<64x3xf32>, vector<3x512xf32>, vector<64x512xf32> -> vector<64x512xf32>
    %c0_12 = arith.constant 0 : index
    %c0_13 = arith.constant 0 : index
    %10 = vector.load %arg7[%c0_12, %c0_13] : memref<1x512xf32, #tpu.memory_space<vmem>>, vector<1x512xf32>
    %11 = vector.broadcast %10 : vector<1x512xf32> to vector<64x512xf32>
    %12 = arith.addf %9, %11 : vector<64x512xf32>
    %c0_14 = arith.constant 0 : index
    %c0_15 = arith.constant 0 : index
    %13 = vector.load %arg12[%c0_14, %c0_15] : memref<64x512xf32, #tpu.memory_space<vmem>>, vector<64x512xf32>
    tpu.vector_store %arg12[%c0_14, %c0_15], %12 {strides = array<i32>} : memref<64x512xf32, #tpu.memory_space<vmem>>, vector<64x512xf32>,
    %c0_16 = arith.constant 0 : index
    %c0_17 = arith.constant 0 : index
    %14 = vector.load %arg3[%c0_16, %c0_17] : memref<128x512xf32, #tpu.memory_space<vmem>>, vector<128x512xf32>
    %c0_18 = arith.constant 0 : index
    %c0_19 = arith.constant 0 : index
    %15 = vector.load %arg6[%c0_18, %c0_19] : memref<128x512xf32, #tpu.memory_space<vmem>>, vector<128x512xf32>
    %cst_20 = arith.constant 0.000000e+00 : f32
    %16 = vector.broadcast %cst_20 : f32 to vector<8x128xf32>
    %cst_21 = arith.constant 0.000000e+00 : f32
    %17 = vector.broadcast %cst_21 : f32 to vector<8x128xf32>
    %c0_i32 = arith.constant 0 : i32
    %c8_i32 = arith.constant 8 : i32
    %18 = arith.muli %c0_i32, %c8_i32 : i32
    %19 = tpu.assume_multiple %18, 8 : i32
    %20 = arith.index_cast %19 : i32 to index
    %c0_22 = arith.constant 0 : index
    %21 = vector.load %arg11[%20, %c0_22] : memref<64x512xf32, #tpu.memory_space<vmem>>, vector<8x512xf32>
    %cst_23 = arith.constant dense<0.000000e+00> : vector<8x512xf32>
    %22 = tpu.matmul %16, %14, %cst_23 {dimension_numbers = #tpu.dot_dimension_numbers<[1], [0], [0], [1], [0, 0, 1, 1], [], []>} : vector<8x128xf32>, vector<128x512xf32>, vector<8x512xf32> -> vector<8x512xf32>
    %23 = arith.addf %21, %22 : vector<8x512xf32>
    %24 = vector.extract_strided_slice %23 {offsets = [0, 0], sizes = [8, 128], strides = [1, 1]} : vector<8x512xf32> to vector<8x128xf32>
    %cst_24 = arith.constant 5.000000e-01 : f32
    %25 = vector.broadcast %cst_24 : f32 to vector<8x128xf32>
    %26 = arith.mulf %25, %24 : vector<8x128xf32>
    %27 = math.tanh %26 : vector<8x128xf32>
    %cst_25 = arith.constant 1.000000e+00 : f32
    %28 = vector.broadcast %cst_25 : f32 to vector<8x128xf32>
    %29 = arith.addf %27, %28 : vector<8x128xf32>
    %cst_26 = arith.constant 5.000000e-01 : f32
    %30 = vector.broadcast %cst_26 : f32 to vector<8x128xf32>
    %31 = arith.mulf %30, %29 : vector<8x128xf32>
    %32 = vector.extract_strided_slice %23 {offsets = [0, 128], sizes = [8, 128], strides = [1, 1]} : vector<8x512xf32> to vector<8x128xf32>
    %cst_27 = arith.constant 5.000000e-01 : f32
    %33 = vector.broadcast %cst_27 : f32 to vector<8x128xf32>
    %34 = arith.mulf %33, %32 : vector<8x128xf32>
    %35 = math.tanh %34 : vector<8x128xf32>
    %cst_28 = arith.constant 1.000000e+00 : f32
    %36 = vector.broadcast %cst_28 : f32 to vector<8x128xf32>
    %37 = arith.addf %35, %36 : vector<8x128xf32>
    %cst_29 = arith.constant 5.000000e-01 : f32
    %38 = vector.broadcast %cst_29 : f32 to vector<8x128xf32>
    %39 = arith.mulf %38, %37 : vector<8x128xf32>
    %40 = vector.extract_strided_slice %23 {offsets = [0, 256], sizes = [8, 128], strides = [1, 1]} : vector<8x512xf32> to vector<8x128xf32>
    %41 = math.tanh %40 : vector<8x128xf32>
    %42 = vector.extract_strided_slice %23 {offsets = [0, 384], sizes = [8, 128], strides = [1, 1]} : vector<8x512xf32> to vector<8x128xf32>
    %cst_30 = arith.constant 5.000000e-01 : f32
    %43 = vector.broadcast %cst_30 : f32 to vector<8x128xf32>
    %44 = arith.mulf %43, %42 : vector<8x128xf32>
    %45 = math.tanh %44 : vector<8x128xf32>
    %cst_31 = arith.constant 1.000000e+00 : f32
    %46 = vector.broadcast %cst_31 : f32 to vector<8x128xf32>
    %47 = arith.addf %45, %46 : vector<8x128xf32>
    %cst_32 = arith.constant 5.000000e-01 : f32
    %48 = vector.broadcast %cst_32 : f32 to vector<8x128xf32>
    %49 = arith.mulf %48, %47 : vector<8x128xf32>
    %50 = arith.mulf %39, %17 : vector<8x128xf32>
    %51 = arith.mulf %31, %41 : vector<8x128xf32>
    %52 = arith.addf %50, %51 : vector<8x128xf32>
    %53 = math.tanh %52 : vector<8x128xf32>
    %54 = arith.mulf %49, %53 : vector<8x128xf32>
    %c1_i32 = arith.constant 1 : i32
    %c8_i32_33 = arith.constant 8 : i32
    %55 = arith.muli %c1_i32, %c8_i32_33 : i32
    %56 = tpu.assume_multiple %55, 8 : i32
    %57 = arith.index_cast %56 : i32 to index
    %c0_34 = arith.constant 0 : index
    %58 = vector.load %arg11[%57, %c0_34] : memref<64x512xf32, #tpu.memory_space<vmem>>, vector<8x512xf32>
    %cst_35 = arith.constant dense<0.000000e+00> : vector<8x512xf32>
    %59 = tpu.matmul %54, %14, %cst_35 {dimension_numbers = #tpu.dot_dimension_numbers<[1], [0], [0], [1], [0, 0, 1, 1], [], []>} : vector<8x128xf32>, vector<128x512xf32>, vector<8x512xf32> -> vector<8x512xf32>
    %60 = arith.addf %58, %59 : vector<8x512xf32>
    %61 = vector.extract_strided_slice %60 {offsets = [0, 0], sizes = [8, 128], strides = [1, 1]} : vector<8x512xf32> to vector<8x128xf32>
    %cst_36 = arith.constant 5.000000e-01 : f32
    %62 = vector.broadcast %cst_36 : f32 to vector<8x128xf32>
    %63 = arith.mulf %62, %61 : vector<8x128xf32>
    %64 = math.tanh %63 : vector<8x128xf32>
    %cst_37 = arith.constant 1.000000e+00 : f32
    %65 = vector.broadcast %cst_37 : f32 to vector<8x128xf32>
    %66 = arith.addf %64, %65 : vector<8x128xf32>
    %cst_38 = arith.constant 5.000000e-01 : f32
    %67 = vector.broadcast %cst_38 : f32 to vector<8x128xf32>
    %68 = arith.mulf %67, %66 : vector<8x128xf32>
    %69 = vector.extract_strided_slice %60 {offsets = [0, 128], sizes = [8, 128], strides = [1, 1]} : vector<8x512xf32> to vector<8x128xf32>
    %cst_39 = arith.constant 5.000000e-01 : f32
    %70 = vector.broadcast %cst_39 : f32 to vector<8x128xf32>
    %71 = arith.mulf %70, %69 : vector<8x128xf32>
    %72 = math.tanh %71 : vector<8x128xf32>
    %cst_40 = arith.constant 1.000000e+00 : f32
    %73 = vector.broadcast %cst_40 : f32 to vector<8x128xf32>
    %74 = arith.addf %72, %73 : vector<8x128xf32>
    %cst_41 = arith.constant 5.000000e-01 : f32
    %75 = vector.broadcast %cst_41 : f32 to vector<8x128xf32>
    %76 = arith.mulf %75, %74 : vector<8x128xf32>
    %77 = vector.extract_strided_slice %60 {offsets = [0, 256], sizes = [8, 128], strides = [1, 1]} : vector<8x512xf32> to vector<8x128xf32>
    %78 = math.tanh %77 : vector<8x128xf32>
    %79 = vector.extract_strided_slice %60 {offsets = [0, 384], sizes = [8, 128], strides = [1, 1]} : vector<8x512xf32> to vector<8x128xf32>
    %cst_42 = arith.constant 5.000000e-01 : f32
    %80 = vector.broadcast %cst_42 : f32 to vector<8x128xf32>
    %81 = arith.mulf %80, %79 : vector<8x128xf32>
    %82 = math.tanh %81 : vector<8x128xf32>
    %cst_43 = arith.constant 1.000000e+00 : f32
    %83 = vector.broadcast %cst_43 : f32 to vector<8x128xf32>
    %84 = arith.addf %82, %83 : vector<8x128xf32>
    %cst_44 = arith.constant 5.000000e-01 : f32
    %85 = vector.broadcast %cst_44 : f32 to vector<8x128xf32>
    %86 = arith.mulf %85, %84 : vector<8x128xf32>
    %87 = arith.mulf %76, %52 : vector<8x128xf32>
    %88 = arith.mulf %68, %78 : vector<8x128xf32>
    %89 = arith.addf %87, %88 : vector<8x128xf32>
    %90 = math.tanh %89 : vector<8x128xf32>
    %91 = arith.mulf %86, %90 : vector<8x128xf32>
    %c2_i32 = arith.constant 2 : i32
    %c8_i32_45 = arith.constant 8 : i32
    %92 = arith.muli %c2_i32, %c8_i32_45 : i32
    %93 = tpu.assume_multiple %92, 8 : i32
    %94 = arith.index_cast %93 : i32 to index
    %c0_46 = arith.constant 0 : index
    %95 = vector.load %arg11[%94, %c0_46] : memref<64x512xf32, #tpu.memory_space<vmem>>, vector<8x512xf32>
    %cst_47 = arith.constant dense<0.000000e+00> : vector<8x512xf32>
    %96 = tpu.matmul %91, %14, %cst_47 {dimension_numbers = #tpu.dot_dimension_numbers<[1], [0], [0], [1], [0, 0, 1, 1], [], []>} : vector<8x128xf32>, vector<128x512xf32>, vector<8x512xf32> -> vector<8x512xf32>
    %97 = arith.addf %95, %96 : vector<8x512xf32>
    %98 = vector.extract_strided_slice %97 {offsets = [0, 0], sizes = [8, 128], strides = [1, 1]} : vector<8x512xf32> to vector<8x128xf32>
    %cst_48 = arith.constant 5.000000e-01 : f32
    %99 = vector.broadcast %cst_48 : f32 to vector<8x128xf32>
    %100 = arith.mulf %99, %98 : vector<8x128xf32>
    %101 = math.tanh %100 : vector<8x128xf32>
    %cst_49 = arith.constant 1.000000e+00 : f32
    %102 = vector.broadcast %cst_49 : f32 to vector<8x128xf32>
    %103 = arith.addf %101, %102 : vector<8x128xf32>
    %cst_50 = arith.constant 5.000000e-01 : f32
    %104 = vector.broadcast %cst_50 : f32 to vector<8x128xf32>
    %105 = arith.mulf %104, %103 : vector<8x128xf32>
    %106 = vector.extract_strided_slice %97 {offsets = [0, 128], sizes = [8, 128], strides = [1, 1]} : vector<8x512xf32> to vector<8x128xf32>
    %cst_51 = arith.constant 5.000000e-01 : f32
    %107 = vector.broadcast %cst_51 : f32 to vector<8x128xf32>
    %108 = arith.mulf %107, %106 : vector<8x128xf32>
    %109 = math.tanh %108 : vector<8x128xf32>
    %cst_52 = arith.constant 1.000000e+00 : f32
    %110 = vector.broadcast %cst_52 : f32 to vector<8x128xf32>
    %111 = arith.addf %109, %110 : vector<8x128xf32>
    %cst_53 = arith.constant 5.000000e-01 : f32
    %112 = vector.broadcast %cst_53 : f32 to vector<8x128xf32>
    %113 = arith.mulf %112, %111 : vector<8x128xf32>
    %114 = vector.extract_strided_slice %97 {offsets = [0, 256], sizes = [8, 128], strides = [1, 1]} : vector<8x512xf32> to vector<8x128xf32>
    %115 = math.tanh %114 : vector<8x128xf32>
    %116 = vector.extract_strided_slice %97 {offsets = [0, 384], sizes = [8, 128], strides = [1, 1]} : vector<8x512xf32> to vector<8x128xf32>
    %cst_54 = arith.constant 5.000000e-01 : f32
    %117 = vector.broadcast %cst_54 : f32 to vector<8x128xf32>
    %118 = arith.mulf %117, %116 : vector<8x128xf32>
    %119 = math.tanh %118 : vector<8x128xf32>
    %cst_55 = arith.constant 1.000000e+00 : f32
    %120 = vector.broadcast %cst_55 : f32 to vector<8x128xf32>
    %121 = arith.addf %119, %120 : vector<8x128xf32>
    %cst_56 = arith.constant 5.000000e-01 : f32
    %122 = vector.broadcast %cst_56 : f32 to vector<8x128xf32>
    %123 = arith.mulf %122, %121 : vector<8x128xf32>
    %124 = arith.mulf %113, %89 : vector<8x128xf32>
    %125 = arith.mulf %105, %115 : vector<8x128xf32>
    %126 = arith.addf %124, %125 : vector<8x128xf32>
    %127 = math.tanh %126 : vector<8x128xf32>
    %128 = arith.mulf %123, %127 : vector<8x128xf32>
    %c3_i32 = arith.constant 3 : i32
    %c8_i32_57 = arith.constant 8 : i32
    %129 = arith.muli %c3_i32, %c8_i32_57 : i32
    %130 = tpu.assume_multiple %129, 8 : i32
    %131 = arith.index_cast %130 : i32 to index
    %c0_58 = arith.constant 0 : index
    %132 = vector.load %arg11[%131, %c0_58] : memref<64x512xf32, #tpu.memory_space<vmem>>, vector<8x512xf32>
    %cst_59 = arith.constant dense<0.000000e+00> : vector<8x512xf32>
    %133 = tpu.matmul %128, %14, %cst_59 {dimension_numbers = #tpu.dot_dimension_numbers<[1], [0], [0], [1], [0, 0, 1, 1], [], []>} : vector<8x128xf32>, vector<128x512xf32>, vector<8x512xf32> -> vector<8x512xf32>
    %134 = arith.addf %132, %133 : vector<8x512xf32>
    %135 = vector.extract_strided_slice %134 {offsets = [0, 0], sizes = [8, 128], strides = [1, 1]} : vector<8x512xf32> to vector<8x128xf32>
    %cst_60 = arith.constant 5.000000e-01 : f32
    %136 = vector.broadcast %cst_60 : f32 to vector<8x128xf32>
    %137 = arith.mulf %136, %135 : vector<8x128xf32>
    %138 = math.tanh %137 : vector<8x128xf32>
    %cst_61 = arith.constant 1.000000e+00 : f32
    %139 = vector.broadcast %cst_61 : f32 to vector<8x128xf32>
    %140 = arith.addf %138, %139 : vector<8x128xf32>
    %cst_62 = arith.constant 5.000000e-01 : f32
    %141 = vector.broadcast %cst_62 : f32 to vector<8x128xf32>
    %142 = arith.mulf %141, %140 : vector<8x128xf32>
    %143 = vector.extract_strided_slice %134 {offsets = [0, 128], sizes = [8, 128], strides = [1, 1]} : vector<8x512xf32> to vector<8x128xf32>
    %cst_63 = arith.constant 5.000000e-01 : f32
    %144 = vector.broadcast %cst_63 : f32 to vector<8x128xf32>
    %145 = arith.mulf %144, %143 : vector<8x128xf32>
    %146 = math.tanh %145 : vector<8x128xf32>
    %cst_64 = arith.constant 1.000000e+00 : f32
    %147 = vector.broadcast %cst_64 : f32 to vector<8x128xf32>
    %148 = arith.addf %146, %147 : vector<8x128xf32>
    %cst_65 = arith.constant 5.000000e-01 : f32
    %149 = vector.broadcast %cst_65 : f32 to vector<8x128xf32>
    %150 = arith.mulf %149, %148 : vector<8x128xf32>
    %151 = vector.extract_strided_slice %134 {offsets = [0, 256], sizes = [8, 128], strides = [1, 1]} : vector<8x512xf32> to vector<8x128xf32>
    %152 = math.tanh %151 : vector<8x128xf32>
    %153 = vector.extract_strided_slice %134 {offsets = [0, 384], sizes = [8, 128], strides = [1, 1]} : vector<8x512xf32> to vector<8x128xf32>
    %cst_66 = arith.constant 5.000000e-01 : f32
    %154 = vector.broadcast %cst_66 : f32 to vector<8x128xf32>
    %155 = arith.mulf %154, %153 : vector<8x128xf32>
    %156 = math.tanh %155 : vector<8x128xf32>
    %cst_67 = arith.constant 1.000000e+00 : f32
    %157 = vector.broadcast %cst_67 : f32 to vector<8x128xf32>
    %158 = arith.addf %156, %157 : vector<8x128xf32>
    %cst_68 = arith.constant 5.000000e-01 : f32
    %159 = vector.broadcast %cst_68 : f32 to vector<8x128xf32>
    %160 = arith.mulf %159, %158 : vector<8x128xf32>
    %161 = arith.mulf %150, %126 : vector<8x128xf32>
    %162 = arith.mulf %142, %152 : vector<8x128xf32>
    %163 = arith.addf %161, %162 : vector<8x128xf32>
    %164 = math.tanh %163 : vector<8x128xf32>
    %165 = arith.mulf %160, %164 : vector<8x128xf32>
    %c4_i32 = arith.constant 4 : i32
    %c8_i32_69 = arith.constant 8 : i32
    %166 = arith.muli %c4_i32, %c8_i32_69 : i32
    %167 = tpu.assume_multiple %166, 8 : i32
    %168 = arith.index_cast %167 : i32 to index
    %c0_70 = arith.constant 0 : index
    %169 = vector.load %arg11[%168, %c0_70] : memref<64x512xf32, #tpu.memory_space<vmem>>, vector<8x512xf32>
    %cst_71 = arith.constant dense<0.000000e+00> : vector<8x512xf32>
    %170 = tpu.matmul %165, %14, %cst_71 {dimension_numbers = #tpu.dot_dimension_numbers<[1], [0], [0], [1], [0, 0, 1, 1], [], []>} : vector<8x128xf32>, vector<128x512xf32>, vector<8x512xf32> -> vector<8x512xf32>
    %171 = arith.addf %169, %170 : vector<8x512xf32>
    %172 = vector.extract_strided_slice %171 {offsets = [0, 0], sizes = [8, 128], strides = [1, 1]} : vector<8x512xf32> to vector<8x128xf32>
    %cst_72 = arith.constant 5.000000e-01 : f32
    %173 = vector.broadcast %cst_72 : f32 to vector<8x128xf32>
    %174 = arith.mulf %173, %172 : vector<8x128xf32>
    %175 = math.tanh %174 : vector<8x128xf32>
    %cst_73 = arith.constant 1.000000e+00 : f32
    %176 = vector.broadcast %cst_73 : f32 to vector<8x128xf32>
    %177 = arith.addf %175, %176 : vector<8x128xf32>
    %cst_74 = arith.constant 5.000000e-01 : f32
    %178 = vector.broadcast %cst_74 : f32 to vector<8x128xf32>
    %179 = arith.mulf %178, %177 : vector<8x128xf32>
    %180 = vector.extract_strided_slice %171 {offsets = [0, 128], sizes = [8, 128], strides = [1, 1]} : vector<8x512xf32> to vector<8x128xf32>
    %cst_75 = arith.constant 5.000000e-01 : f32
    %181 = vector.broadcast %cst_75 : f32 to vector<8x128xf32>
    %182 = arith.mulf %181, %180 : vector<8x128xf32>
    %183 = math.tanh %182 : vector<8x128xf32>
    %cst_76 = arith.constant 1.000000e+00 : f32
    %184 = vector.broadcast %cst_76 : f32 to vector<8x128xf32>
    %185 = arith.addf %183, %184 : vector<8x128xf32>
    %cst_77 = arith.constant 5.000000e-01 : f32
    %186 = vector.broadcast %cst_77 : f32 to vector<8x128xf32>
    %187 = arith.mulf %186, %185 : vector<8x128xf32>
    %188 = vector.extract_strided_slice %171 {offsets = [0, 256], sizes = [8, 128], strides = [1, 1]} : vector<8x512xf32> to vector<8x128xf32>
    %189 = math.tanh %188 : vector<8x128xf32>
    %190 = vector.extract_strided_slice %171 {offsets = [0, 384], sizes = [8, 128], strides = [1, 1]} : vector<8x512xf32> to vector<8x128xf32>
    %cst_78 = arith.constant 5.000000e-01 : f32
    %191 = vector.broadcast %cst_78 : f32 to vector<8x128xf32>
    %192 = arith.mulf %191, %190 : vector<8x128xf32>
    %193 = math.tanh %192 : vector<8x128xf32>
    %cst_79 = arith.constant 1.000000e+00 : f32
    %194 = vector.broadcast %cst_79 : f32 to vector<8x128xf32>
    %195 = arith.addf %193, %194 : vector<8x128xf32>
    %cst_80 = arith.constant 5.000000e-01 : f32
    %196 = vector.broadcast %cst_80 : f32 to vector<8x128xf32>
    %197 = arith.mulf %196, %195 : vector<8x128xf32>
    %198 = arith.mulf %187, %163 : vector<8x128xf32>
    %199 = arith.mulf %179, %189 : vector<8x128xf32>
    %200 = arith.addf %198, %199 : vector<8x128xf32>
    %201 = math.tanh %200 : vector<8x128xf32>
    %202 = arith.mulf %197, %201 : vector<8x128xf32>
    %c5_i32 = arith.constant 5 : i32
    %c8_i32_81 = arith.constant 8 : i32
    %203 = arith.muli %c5_i32, %c8_i32_81 : i32
    %204 = tpu.assume_multiple %203, 8 : i32
    %205 = arith.index_cast %204 : i32 to index
    %c0_82 = arith.constant 0 : index
    %206 = vector.load %arg11[%205, %c0_82] : memref<64x512xf32, #tpu.memory_space<vmem>>, vector<8x512xf32>
    %cst_83 = arith.constant dense<0.000000e+00> : vector<8x512xf32>
    %207 = tpu.matmul %202, %14, %cst_83 {dimension_numbers = #tpu.dot_dimension_numbers<[1], [0], [0], [1], [0, 0, 1, 1], [], []>} : vector<8x128xf32>, vector<128x512xf32>, vector<8x512xf32> -> vector<8x512xf32>
    %208 = arith.addf %206, %207 : vector<8x512xf32>
    %209 = vector.extract_strided_slice %208 {offsets = [0, 0], sizes = [8, 128], strides = [1, 1]} : vector<8x512xf32> to vector<8x128xf32>
    %cst_84 = arith.constant 5.000000e-01 : f32
    %210 = vector.broadcast %cst_84 : f32 to vector<8x128xf32>
    %211 = arith.mulf %210, %209 : vector<8x128xf32>
    %212 = math.tanh %211 : vector<8x128xf32>
    %cst_85 = arith.constant 1.000000e+00 : f32
    %213 = vector.broadcast %cst_85 : f32 to vector<8x128xf32>
    %214 = arith.addf %212, %213 : vector<8x128xf32>
    %cst_86 = arith.constant 5.000000e-01 : f32
    %215 = vector.broadcast %cst_86 : f32 to vector<8x128xf32>
    %216 = arith.mulf %215, %214 : vector<8x128xf32>
    %217 = vector.extract_strided_slice %208 {offsets = [0, 128], sizes = [8, 128], strides = [1, 1]} : vector<8x512xf32> to vector<8x128xf32>
    %cst_87 = arith.constant 5.000000e-01 : f32
    %218 = vector.broadcast %cst_87 : f32 to vector<8x128xf32>
    %219 = arith.mulf %218, %217 : vector<8x128xf32>
    %220 = math.tanh %219 : vector<8x128xf32>
    %cst_88 = arith.constant 1.000000e+00 : f32
    %221 = vector.broadcast %cst_88 : f32 to vector<8x128xf32>
    %222 = arith.addf %220, %221 : vector<8x128xf32>
    %cst_89 = arith.constant 5.000000e-01 : f32
    %223 = vector.broadcast %cst_89 : f32 to vector<8x128xf32>
    %224 = arith.mulf %223, %222 : vector<8x128xf32>
    %225 = vector.extract_strided_slice %208 {offsets = [0, 256], sizes = [8, 128], strides = [1, 1]} : vector<8x512xf32> to vector<8x128xf32>
    %226 = math.tanh %225 : vector<8x128xf32>
    %227 = vector.extract_strided_slice %208 {offsets = [0, 384], sizes = [8, 128], strides = [1, 1]} : vector<8x512xf32> to vector<8x128xf32>
    %cst_90 = arith.constant 5.000000e-01 : f32
    %228 = vector.broadcast %cst_90 : f32 to vector<8x128xf32>
    %229 = arith.mulf %228, %227 : vector<8x128xf32>
    %230 = math.tanh %229 : vector<8x128xf32>
    %cst_91 = arith.constant 1.000000e+00 : f32
    %231 = vector.broadcast %cst_91 : f32 to vector<8x128xf32>
    %232 = arith.addf %230, %231 : vector<8x128xf32>
    %cst_92 = arith.constant 5.000000e-01 : f32
    %233 = vector.broadcast %cst_92 : f32 to vector<8x128xf32>
    %234 = arith.mulf %233, %232 : vector<8x128xf32>
    %235 = arith.mulf %224, %200 : vector<8x128xf32>
    %236 = arith.mulf %216, %226 : vector<8x128xf32>
    %237 = arith.addf %235, %236 : vector<8x128xf32>
    %238 = math.tanh %237 : vector<8x128xf32>
    %239 = arith.mulf %234, %238 : vector<8x128xf32>
    %c6_i32 = arith.constant 6 : i32
    %c8_i32_93 = arith.constant 8 : i32
    %240 = arith.muli %c6_i32, %c8_i32_93 : i32
    %241 = tpu.assume_multiple %240, 8 : i32
    %242 = arith.index_cast %241 : i32 to index
    %c0_94 = arith.constant 0 : index
    %243 = vector.load %arg11[%242, %c0_94] : memref<64x512xf32, #tpu.memory_space<vmem>>, vector<8x512xf32>
    %cst_95 = arith.constant dense<0.000000e+00> : vector<8x512xf32>
    %244 = tpu.matmul %239, %14, %cst_95 {dimension_numbers = #tpu.dot_dimension_numbers<[1], [0], [0], [1], [0, 0, 1, 1], [], []>} : vector<8x128xf32>, vector<128x512xf32>, vector<8x512xf32> -> vector<8x512xf32>
    %245 = arith.addf %243, %244 : vector<8x512xf32>
    %246 = vector.extract_strided_slice %245 {offsets = [0, 0], sizes = [8, 128], strides = [1, 1]} : vector<8x512xf32> to vector<8x128xf32>
    %cst_96 = arith.constant 5.000000e-01 : f32
    %247 = vector.broadcast %cst_96 : f32 to vector<8x128xf32>
    %248 = arith.mulf %247, %246 : vector<8x128xf32>
    %249 = math.tanh %248 : vector<8x128xf32>
    %cst_97 = arith.constant 1.000000e+00 : f32
    %250 = vector.broadcast %cst_97 : f32 to vector<8x128xf32>
    %251 = arith.addf %249, %250 : vector<8x128xf32>
    %cst_98 = arith.constant 5.000000e-01 : f32
    %252 = vector.broadcast %cst_98 : f32 to vector<8x128xf32>
    %253 = arith.mulf %252, %251 : vector<8x128xf32>
    %254 = vector.extract_strided_slice %245 {offsets = [0, 128], sizes = [8, 128], strides = [1, 1]} : vector<8x512xf32> to vector<8x128xf32>
    %cst_99 = arith.constant 5.000000e-01 : f32
    %255 = vector.broadcast %cst_99 : f32 to vector<8x128xf32>
    %256 = arith.mulf %255, %254 : vector<8x128xf32>
    %257 = math.tanh %256 : vector<8x128xf32>
    %cst_100 = arith.constant 1.000000e+00 : f32
    %258 = vector.broadcast %cst_100 : f32 to vector<8x128xf32>
    %259 = arith.addf %257, %258 : vector<8x128xf32>
    %cst_101 = arith.constant 5.000000e-01 : f32
    %260 = vector.broadcast %cst_101 : f32 to vector<8x128xf32>
    %261 = arith.mulf %260, %259 : vector<8x128xf32>
    %262 = vector.extract_strided_slice %245 {offsets = [0, 256], sizes = [8, 128], strides = [1, 1]} : vector<8x512xf32> to vector<8x128xf32>
    %263 = math.tanh %262 : vector<8x128xf32>
    %264 = vector.extract_strided_slice %245 {offsets = [0, 384], sizes = [8, 128], strides = [1, 1]} : vector<8x512xf32> to vector<8x128xf32>
    %cst_102 = arith.constant 5.000000e-01 : f32
    %265 = vector.broadcast %cst_102 : f32 to vector<8x128xf32>
    %266 = arith.mulf %265, %264 : vector<8x128xf32>
    %267 = math.tanh %266 : vector<8x128xf32>
    %cst_103 = arith.constant 1.000000e+00 : f32
    %268 = vector.broadcast %cst_103 : f32 to vector<8x128xf32>
    %269 = arith.addf %267, %268 : vector<8x128xf32>
    %cst_104 = arith.constant 5.000000e-01 : f32
    %270 = vector.broadcast %cst_104 : f32 to vector<8x128xf32>
    %271 = arith.mulf %270, %269 : vector<8x128xf32>
    %272 = arith.mulf %261, %237 : vector<8x128xf32>
    %273 = arith.mulf %253, %263 : vector<8x128xf32>
    %274 = arith.addf %272, %273 : vector<8x128xf32>
    %275 = math.tanh %274 : vector<8x128xf32>
    %276 = arith.mulf %271, %275 : vector<8x128xf32>
    %c7_i32 = arith.constant 7 : i32
    %c8_i32_105 = arith.constant 8 : i32
    %277 = arith.muli %c7_i32, %c8_i32_105 : i32
    %278 = tpu.assume_multiple %277, 8 : i32
    %279 = arith.index_cast %278 : i32 to index
    %c0_106 = arith.constant 0 : index
    %280 = vector.load %arg11[%279, %c0_106] : memref<64x512xf32, #tpu.memory_space<vmem>>, vector<8x512xf32>
    %cst_107 = arith.constant dense<0.000000e+00> : vector<8x512xf32>
    %281 = tpu.matmul %276, %14, %cst_107 {dimension_numbers = #tpu.dot_dimension_numbers<[1], [0], [0], [1], [0, 0, 1, 1], [], []>} : vector<8x128xf32>, vector<128x512xf32>, vector<8x512xf32> -> vector<8x512xf32>
    %282 = arith.addf %280, %281 : vector<8x512xf32>
    %283 = vector.extract_strided_slice %282 {offsets = [0, 0], sizes = [8, 128], strides = [1, 1]} : vector<8x512xf32> to vector<8x128xf32>
    %cst_108 = arith.constant 5.000000e-01 : f32
    %284 = vector.broadcast %cst_108 : f32 to vector<8x128xf32>
    %285 = arith.mulf %284, %283 : vector<8x128xf32>
    %286 = math.tanh %285 : vector<8x128xf32>
    %cst_109 = arith.constant 1.000000e+00 : f32
    %287 = vector.broadcast %cst_109 : f32 to vector<8x128xf32>
    %288 = arith.addf %286, %287 : vector<8x128xf32>
    %cst_110 = arith.constant 5.000000e-01 : f32
    %289 = vector.broadcast %cst_110 : f32 to vector<8x128xf32>
    %290 = arith.mulf %289, %288 : vector<8x128xf32>
    %291 = vector.extract_strided_slice %282 {offsets = [0, 128], sizes = [8, 128], strides = [1, 1]} : vector<8x512xf32> to vector<8x128xf32>
    %cst_111 = arith.constant 5.000000e-01 : f32
    %292 = vector.broadcast %cst_111 : f32 to vector<8x128xf32>
    %293 = arith.mulf %292, %291 : vector<8x128xf32>
    %294 = math.tanh %293 : vector<8x128xf32>
    %cst_112 = arith.constant 1.000000e+00 : f32
    %295 = vector.broadcast %cst_112 : f32 to vector<8x128xf32>
    %296 = arith.addf %294, %295 : vector<8x128xf32>
    %cst_113 = arith.constant 5.000000e-01 : f32
    %297 = vector.broadcast %cst_113 : f32 to vector<8x128xf32>
    %298 = arith.mulf %297, %296 : vector<8x128xf32>
    %299 = vector.extract_strided_slice %282 {offsets = [0, 256], sizes = [8, 128], strides = [1, 1]} : vector<8x512xf32> to vector<8x128xf32>
    %300 = math.tanh %299 : vector<8x128xf32>
    %301 = vector.extract_strided_slice %282 {offsets = [0, 384], sizes = [8, 128], strides = [1, 1]} : vector<8x512xf32> to vector<8x128xf32>
    %cst_114 = arith.constant 5.000000e-01 : f32
    %302 = vector.broadcast %cst_114 : f32 to vector<8x128xf32>
    %303 = arith.mulf %302, %301 : vector<8x128xf32>
    %304 = math.tanh %303 : vector<8x128xf32>
    %cst_115 = arith.constant 1.000000e+00 : f32
    %305 = vector.broadcast %cst_115 : f32 to vector<8x128xf32>
    %306 = arith.addf %304, %305 : vector<8x128xf32>
    %cst_116 = arith.constant 5.000000e-01 : f32
    %307 = vector.broadcast %cst_116 : f32 to vector<8x128xf32>
    %308 = arith.mulf %307, %306 : vector<8x128xf32>
    %309 = arith.mulf %298, %274 : vector<8x128xf32>
    %310 = arith.mulf %290, %300 : vector<8x128xf32>
    %311 = arith.addf %309, %310 : vector<8x128xf32>
    %312 = math.tanh %311 : vector<8x128xf32>
    %313 = arith.mulf %308, %312 : vector<8x128xf32>
    %c8_i32_117 = arith.constant 8 : i32
    %c0_i32_118 = arith.constant 0 : i32
    %c8_i32_119 = arith.constant 8 : i32
    %314 = arith.muli %c0_i32_118, %c8_i32_119 : i32
    %315 = tpu.assume_multiple %314, 8 : i32
    %316 = arith.index_cast %315 : i32 to index
    %c0_120 = arith.constant 0 : index
    %317 = vector.load %arg12[%316, %c0_120] : memref<64x512xf32, #tpu.memory_space<vmem>>, vector<8x512xf32>
    %cst_121 = arith.constant dense<0.000000e+00> : vector<8x512xf32>
    %318 = tpu.matmul %313, %15, %cst_121 {dimension_numbers = #tpu.dot_dimension_numbers<[1], [0], [0], [1], [0, 0, 1, 1], [], []>} : vector<8x128xf32>, vector<128x512xf32>, vector<8x512xf32> -> vector<8x512xf32>
    %319 = arith.addf %317, %318 : vector<8x512xf32>
    %320 = vector.extract_strided_slice %319 {offsets = [0, 0], sizes = [8, 128], strides = [1, 1]} : vector<8x512xf32> to vector<8x128xf32>
    %cst_122 = arith.constant 5.000000e-01 : f32
    %321 = vector.broadcast %cst_122 : f32 to vector<8x128xf32>
    %322 = arith.mulf %321, %320 : vector<8x128xf32>
    %323 = math.tanh %322 : vector<8x128xf32>
    %cst_123 = arith.constant 1.000000e+00 : f32
    %324 = vector.broadcast %cst_123 : f32 to vector<8x128xf32>
    %325 = arith.addf %323, %324 : vector<8x128xf32>
    %cst_124 = arith.constant 5.000000e-01 : f32
    %326 = vector.broadcast %cst_124 : f32 to vector<8x128xf32>
    %327 = arith.mulf %326, %325 : vector<8x128xf32>
    %328 = vector.extract_strided_slice %319 {offsets = [0, 128], sizes = [8, 128], strides = [1, 1]} : vector<8x512xf32> to vector<8x128xf32>
    %cst_125 = arith.constant 5.000000e-01 : f32
    %329 = vector.broadcast %cst_125 : f32 to vector<8x128xf32>
    %330 = arith.mulf %329, %328 : vector<8x128xf32>
    %331 = math.tanh %330 : vector<8x128xf32>
    %cst_126 = arith.constant 1.000000e+00 : f32
    %332 = vector.broadcast %cst_126 : f32 to vector<8x128xf32>
    %333 = arith.addf %331, %332 : vector<8x128xf32>
    %cst_127 = arith.constant 5.000000e-01 : f32
    %334 = vector.broadcast %cst_127 : f32 to vector<8x128xf32>
    %335 = arith.mulf %334, %333 : vector<8x128xf32>
    %336 = vector.extract_strided_slice %319 {offsets = [0, 256], sizes = [8, 128], strides = [1, 1]} : vector<8x512xf32> to vector<8x128xf32>
    %337 = math.tanh %336 : vector<8x128xf32>
    %338 = vector.extract_strided_slice %319 {offsets = [0, 384], sizes = [8, 128], strides = [1, 1]} : vector<8x512xf32> to vector<8x128xf32>
    %cst_128 = arith.constant 5.000000e-01 : f32
    %339 = vector.broadcast %cst_128 : f32 to vector<8x128xf32>
    %340 = arith.mulf %339, %338 : vector<8x128xf32>
    %341 = math.tanh %340 : vector<8x128xf32>
    %cst_129 = arith.constant 1.000000e+00 : f32
    %342 = vector.broadcast %cst_129 : f32 to vector<8x128xf32>
    %343 = arith.addf %341, %342 : vector<8x128xf32>
    %cst_130 = arith.constant 5.000000e-01 : f32
    %344 = vector.broadcast %cst_130 : f32 to vector<8x128xf32>
    %345 = arith.mulf %344, %343 : vector<8x128xf32>
    %346 = arith.mulf %335, %311 : vector<8x128xf32>
    %347 = arith.mulf %327, %337 : vector<8x128xf32>
    %348 = arith.addf %346, %347 : vector<8x128xf32>
    %349 = math.tanh %348 : vector<8x128xf32>
    %350 = arith.mulf %345, %349 : vector<8x128xf32>
    %351 = arith.index_cast %315 : i32 to index
    %c0_131 = arith.constant 0 : index
    %352 = vector.load %arg13[%351, %c0_131] : memref<64x128xf32, #tpu.memory_space<vmem>>, vector<8x128xf32>
    tpu.vector_store %arg13[%351, %c0_131], %350 {strides = array<i32>} : memref<64x128xf32, #tpu.memory_space<vmem>>, vector<8x128xf32>,
    %c1_i32_132 = arith.constant 1 : i32
    %c8_i32_133 = arith.constant 8 : i32
    %353 = arith.muli %c1_i32_132, %c8_i32_133 : i32
    %354 = tpu.assume_multiple %353, 8 : i32
    %355 = arith.index_cast %354 : i32 to index
    %c0_134 = arith.constant 0 : index
    %356 = vector.load %arg12[%355, %c0_134] : memref<64x512xf32, #tpu.memory_space<vmem>>, vector<8x512xf32>
    %cst_135 = arith.constant dense<0.000000e+00> : vector<8x512xf32>
    %357 = tpu.matmul %350, %15, %cst_135 {dimension_numbers = #tpu.dot_dimension_numbers<[1], [0], [0], [1], [0, 0, 1, 1], [], []>} : vector<8x128xf32>, vector<128x512xf32>, vector<8x512xf32> -> vector<8x512xf32>
    %358 = arith.addf %356, %357 : vector<8x512xf32>
    %359 = vector.extract_strided_slice %358 {offsets = [0, 0], sizes = [8, 128], strides = [1, 1]} : vector<8x512xf32> to vector<8x128xf32>
    %cst_136 = arith.constant 5.000000e-01 : f32
    %360 = vector.broadcast %cst_136 : f32 to vector<8x128xf32>
    %361 = arith.mulf %360, %359 : vector<8x128xf32>
    %362 = math.tanh %361 : vector<8x128xf32>
    %cst_137 = arith.constant 1.000000e+00 : f32
    %363 = vector.broadcast %cst_137 : f32 to vector<8x128xf32>
    %364 = arith.addf %362, %363 : vector<8x128xf32>
    %cst_138 = arith.constant 5.000000e-01 : f32
    %365 = vector.broadcast %cst_138 : f32 to vector<8x128xf32>
    %366 = arith.mulf %365, %364 : vector<8x128xf32>
    %367 = vector.extract_strided_slice %358 {offsets = [0, 128], sizes = [8, 128], strides = [1, 1]} : vector<8x512xf32> to vector<8x128xf32>
    %cst_139 = arith.constant 5.000000e-01 : f32
    %368 = vector.broadcast %cst_139 : f32 to vector<8x128xf32>
    %369 = arith.mulf %368, %367 : vector<8x128xf32>
    %370 = math.tanh %369 : vector<8x128xf32>
    %cst_140 = arith.constant 1.000000e+00 : f32
    %371 = vector.broadcast %cst_140 : f32 to vector<8x128xf32>
    %372 = arith.addf %370, %371 : vector<8x128xf32>
    %cst_141 = arith.constant 5.000000e-01 : f32
    %373 = vector.broadcast %cst_141 : f32 to vector<8x128xf32>
    %374 = arith.mulf %373, %372 : vector<8x128xf32>
    %375 = vector.extract_strided_slice %358 {offsets = [0, 256], sizes = [8, 128], strides = [1, 1]} : vector<8x512xf32> to vector<8x128xf32>
    %376 = math.tanh %375 : vector<8x128xf32>
    %377 = vector.extract_strided_slice %358 {offsets = [0, 384], sizes = [8, 128], strides = [1, 1]} : vector<8x512xf32> to vector<8x128xf32>
    %cst_142 = arith.constant 5.000000e-01 : f32
    %378 = vector.broadcast %cst_142 : f32 to vector<8x128xf32>
    %379 = arith.mulf %378, %377 : vector<8x128xf32>
    %380 = math.tanh %379 : vector<8x128xf32>
    %cst_143 = arith.constant 1.000000e+00 : f32
    %381 = vector.broadcast %cst_143 : f32 to vector<8x128xf32>
    %382 = arith.addf %380, %381 : vector<8x128xf32>
    %cst_144 = arith.constant 5.000000e-01 : f32
    %383 = vector.broadcast %cst_144 : f32 to vector<8x128xf32>
    %384 = arith.mulf %383, %382 : vector<8x128xf32>
    %385 = arith.mulf %374, %348 : vector<8x128xf32>
    %386 = arith.mulf %366, %376 : vector<8x128xf32>
    %387 = arith.addf %385, %386 : vector<8x128xf32>
    %388 = math.tanh %387 : vector<8x128xf32>
    %389 = arith.mulf %384, %388 : vector<8x128xf32>
    %390 = arith.index_cast %354 : i32 to index
    %c0_145 = arith.constant 0 : index
    %391 = vector.load %arg13[%390, %c0_145] : memref<64x128xf32, #tpu.memory_space<vmem>>, vector<8x128xf32>
    tpu.vector_store %arg13[%390, %c0_145], %389 {strides = array<i32>} : memref<64x128xf32, #tpu.memory_space<vmem>>, vector<8x128xf32>,
    %c2_i32_146 = arith.constant 2 : i32
    %c8_i32_147 = arith.constant 8 : i32
    %392 = arith.muli %c2_i32_146, %c8_i32_147 : i32
    %393 = tpu.assume_multiple %392, 8 : i32
    %394 = arith.index_cast %393 : i32 to index
    %c0_148 = arith.constant 0 : index
    %395 = vector.load %arg12[%394, %c0_148] : memref<64x512xf32, #tpu.memory_space<vmem>>, vector<8x512xf32>
    %cst_149 = arith.constant dense<0.000000e+00> : vector<8x512xf32>
    %396 = tpu.matmul %389, %15, %cst_149 {dimension_numbers = #tpu.dot_dimension_numbers<[1], [0], [0], [1], [0, 0, 1, 1], [], []>} : vector<8x128xf32>, vector<128x512xf32>, vector<8x512xf32> -> vector<8x512xf32>
    %397 = arith.addf %395, %396 : vector<8x512xf32>
    %398 = vector.extract_strided_slice %397 {offsets = [0, 0], sizes = [8, 128], strides = [1, 1]} : vector<8x512xf32> to vector<8x128xf32>
    %cst_150 = arith.constant 5.000000e-01 : f32
    %399 = vector.broadcast %cst_150 : f32 to vector<8x128xf32>
    %400 = arith.mulf %399, %398 : vector<8x128xf32>
    %401 = math.tanh %400 : vector<8x128xf32>
    %cst_151 = arith.constant 1.000000e+00 : f32
    %402 = vector.broadcast %cst_151 : f32 to vector<8x128xf32>
    %403 = arith.addf %401, %402 : vector<8x128xf32>
    %cst_152 = arith.constant 5.000000e-01 : f32
    %404 = vector.broadcast %cst_152 : f32 to vector<8x128xf32>
    %405 = arith.mulf %404, %403 : vector<8x128xf32>
    %406 = vector.extract_strided_slice %397 {offsets = [0, 128], sizes = [8, 128], strides = [1, 1]} : vector<8x512xf32> to vector<8x128xf32>
    %cst_153 = arith.constant 5.000000e-01 : f32
    %407 = vector.broadcast %cst_153 : f32 to vector<8x128xf32>
    %408 = arith.mulf %407, %406 : vector<8x128xf32>
    %409 = math.tanh %408 : vector<8x128xf32>
    %cst_154 = arith.constant 1.000000e+00 : f32
    %410 = vector.broadcast %cst_154 : f32 to vector<8x128xf32>
    %411 = arith.addf %409, %410 : vector<8x128xf32>
    %cst_155 = arith.constant 5.000000e-01 : f32
    %412 = vector.broadcast %cst_155 : f32 to vector<8x128xf32>
    %413 = arith.mulf %412, %411 : vector<8x128xf32>
    %414 = vector.extract_strided_slice %397 {offsets = [0, 256], sizes = [8, 128], strides = [1, 1]} : vector<8x512xf32> to vector<8x128xf32>
    %415 = math.tanh %414 : vector<8x128xf32>
    %416 = vector.extract_strided_slice %397 {offsets = [0, 384], sizes = [8, 128], strides = [1, 1]} : vector<8x512xf32> to vector<8x128xf32>
    %cst_156 = arith.constant 5.000000e-01 : f32
    %417 = vector.broadcast %cst_156 : f32 to vector<8x128xf32>
    %418 = arith.mulf %417, %416 : vector<8x128xf32>
    %419 = math.tanh %418 : vector<8x128xf32>
    %cst_157 = arith.constant 1.000000e+00 : f32
    %420 = vector.broadcast %cst_157 : f32 to vector<8x128xf32>
    %421 = arith.addf %419, %420 : vector<8x128xf32>
    %cst_158 = arith.constant 5.000000e-01 : f32
    %422 = vector.broadcast %cst_158 : f32 to vector<8x128xf32>
    %423 = arith.mulf %422, %421 : vector<8x128xf32>
    %424 = arith.mulf %413, %387 : vector<8x128xf32>
    %425 = arith.mulf %405, %415 : vector<8x128xf32>
    %426 = arith.addf %424, %425 : vector<8x128xf32>
    %427 = math.tanh %426 : vector<8x128xf32>
    %428 = arith.mulf %423, %427 : vector<8x128xf32>
    %429 = arith.index_cast %393 : i32 to index
    %c0_159 = arith.constant 0 : index
    %430 = vector.load %arg13[%429, %c0_159] : memref<64x128xf32, #tpu.memory_space<vmem>>, vector<8x128xf32>
    tpu.vector_store %arg13[%429, %c0_159], %428 {strides = array<i32>} : memref<64x128xf32, #tpu.memory_space<vmem>>, vector<8x128xf32>,
    %c3_i32_160 = arith.constant 3 : i32
    %c8_i32_161 = arith.constant 8 : i32
    %431 = arith.muli %c3_i32_160, %c8_i32_161 : i32
    %432 = tpu.assume_multiple %431, 8 : i32
    %433 = arith.index_cast %432 : i32 to index
    %c0_162 = arith.constant 0 : index
    %434 = vector.load %arg12[%433, %c0_162] : memref<64x512xf32, #tpu.memory_space<vmem>>, vector<8x512xf32>
    %cst_163 = arith.constant dense<0.000000e+00> : vector<8x512xf32>
    %435 = tpu.matmul %428, %15, %cst_163 {dimension_numbers = #tpu.dot_dimension_numbers<[1], [0], [0], [1], [0, 0, 1, 1], [], []>} : vector<8x128xf32>, vector<128x512xf32>, vector<8x512xf32> -> vector<8x512xf32>
    %436 = arith.addf %434, %435 : vector<8x512xf32>
    %437 = vector.extract_strided_slice %436 {offsets = [0, 0], sizes = [8, 128], strides = [1, 1]} : vector<8x512xf32> to vector<8x128xf32>
    %cst_164 = arith.constant 5.000000e-01 : f32
    %438 = vector.broadcast %cst_164 : f32 to vector<8x128xf32>
    %439 = arith.mulf %438, %437 : vector<8x128xf32>
    %440 = math.tanh %439 : vector<8x128xf32>
    %cst_165 = arith.constant 1.000000e+00 : f32
    %441 = vector.broadcast %cst_165 : f32 to vector<8x128xf32>
    %442 = arith.addf %440, %441 : vector<8x128xf32>
    %cst_166 = arith.constant 5.000000e-01 : f32
    %443 = vector.broadcast %cst_166 : f32 to vector<8x128xf32>
    %444 = arith.mulf %443, %442 : vector<8x128xf32>
    %445 = vector.extract_strided_slice %436 {offsets = [0, 128], sizes = [8, 128], strides = [1, 1]} : vector<8x512xf32> to vector<8x128xf32>
    %cst_167 = arith.constant 5.000000e-01 : f32
    %446 = vector.broadcast %cst_167 : f32 to vector<8x128xf32>
    %447 = arith.mulf %446, %445 : vector<8x128xf32>
    %448 = math.tanh %447 : vector<8x128xf32>
    %cst_168 = arith.constant 1.000000e+00 : f32
    %449 = vector.broadcast %cst_168 : f32 to vector<8x128xf32>
    %450 = arith.addf %448, %449 : vector<8x128xf32>
    %cst_169 = arith.constant 5.000000e-01 : f32
    %451 = vector.broadcast %cst_169 : f32 to vector<8x128xf32>
    %452 = arith.mulf %451, %450 : vector<8x128xf32>
    %453 = vector.extract_strided_slice %436 {offsets = [0, 256], sizes = [8, 128], strides = [1, 1]} : vector<8x512xf32> to vector<8x128xf32>
    %454 = math.tanh %453 : vector<8x128xf32>
    %455 = vector.extract_strided_slice %436 {offsets = [0, 384], sizes = [8, 128], strides = [1, 1]} : vector<8x512xf32> to vector<8x128xf32>
    %cst_170 = arith.constant 5.000000e-01 : f32
    %456 = vector.broadcast %cst_170 : f32 to vector<8x128xf32>
    %457 = arith.mulf %456, %455 : vector<8x128xf32>
    %458 = math.tanh %457 : vector<8x128xf32>
    %cst_171 = arith.constant 1.000000e+00 : f32
    %459 = vector.broadcast %cst_171 : f32 to vector<8x128xf32>
    %460 = arith.addf %458, %459 : vector<8x128xf32>
    %cst_172 = arith.constant 5.000000e-01 : f32
    %461 = vector.broadcast %cst_172 : f32 to vector<8x128xf32>
    %462 = arith.mulf %461, %460 : vector<8x128xf32>
    %463 = arith.mulf %452, %426 : vector<8x128xf32>
    %464 = arith.mulf %444, %454 : vector<8x128xf32>
    %465 = arith.addf %463, %464 : vector<8x128xf32>
    %466 = math.tanh %465 : vector<8x128xf32>
    %467 = arith.mulf %462, %466 : vector<8x128xf32>
    %468 = arith.index_cast %432 : i32 to index
    %c0_173 = arith.constant 0 : index
    %469 = vector.load %arg13[%468, %c0_173] : memref<64x128xf32, #tpu.memory_space<vmem>>, vector<8x128xf32>
    tpu.vector_store %arg13[%468, %c0_173], %467 {strides = array<i32>} : memref<64x128xf32, #tpu.memory_space<vmem>>, vector<8x128xf32>,
    %c4_i32_174 = arith.constant 4 : i32
    %c8_i32_175 = arith.constant 8 : i32
    %470 = arith.muli %c4_i32_174, %c8_i32_175 : i32
    %471 = tpu.assume_multiple %470, 8 : i32
    %472 = arith.index_cast %471 : i32 to index
    %c0_176 = arith.constant 0 : index
    %473 = vector.load %arg12[%472, %c0_176] : memref<64x512xf32, #tpu.memory_space<vmem>>, vector<8x512xf32>
    %cst_177 = arith.constant dense<0.000000e+00> : vector<8x512xf32>
    %474 = tpu.matmul %467, %15, %cst_177 {dimension_numbers = #tpu.dot_dimension_numbers<[1], [0], [0], [1], [0, 0, 1, 1], [], []>} : vector<8x128xf32>, vector<128x512xf32>, vector<8x512xf32> -> vector<8x512xf32>
    %475 = arith.addf %473, %474 : vector<8x512xf32>
    %476 = vector.extract_strided_slice %475 {offsets = [0, 0], sizes = [8, 128], strides = [1, 1]} : vector<8x512xf32> to vector<8x128xf32>
    %cst_178 = arith.constant 5.000000e-01 : f32
    %477 = vector.broadcast %cst_178 : f32 to vector<8x128xf32>
    %478 = arith.mulf %477, %476 : vector<8x128xf32>
    %479 = math.tanh %478 : vector<8x128xf32>
    %cst_179 = arith.constant 1.000000e+00 : f32
    %480 = vector.broadcast %cst_179 : f32 to vector<8x128xf32>
    %481 = arith.addf %479, %480 : vector<8x128xf32>
    %cst_180 = arith.constant 5.000000e-01 : f32
    %482 = vector.broadcast %cst_180 : f32 to vector<8x128xf32>
    %483 = arith.mulf %482, %481 : vector<8x128xf32>
    %484 = vector.extract_strided_slice %475 {offsets = [0, 128], sizes = [8, 128], strides = [1, 1]} : vector<8x512xf32> to vector<8x128xf32>
    %cst_181 = arith.constant 5.000000e-01 : f32
    %485 = vector.broadcast %cst_181 : f32 to vector<8x128xf32>
    %486 = arith.mulf %485, %484 : vector<8x128xf32>
    %487 = math.tanh %486 : vector<8x128xf32>
    %cst_182 = arith.constant 1.000000e+00 : f32
    %488 = vector.broadcast %cst_182 : f32 to vector<8x128xf32>
    %489 = arith.addf %487, %488 : vector<8x128xf32>
    %cst_183 = arith.constant 5.000000e-01 : f32
    %490 = vector.broadcast %cst_183 : f32 to vector<8x128xf32>
    %491 = arith.mulf %490, %489 : vector<8x128xf32>
    %492 = vector.extract_strided_slice %475 {offsets = [0, 256], sizes = [8, 128], strides = [1, 1]} : vector<8x512xf32> to vector<8x128xf32>
    %493 = math.tanh %492 : vector<8x128xf32>
    %494 = vector.extract_strided_slice %475 {offsets = [0, 384], sizes = [8, 128], strides = [1, 1]} : vector<8x512xf32> to vector<8x128xf32>
    %cst_184 = arith.constant 5.000000e-01 : f32
    %495 = vector.broadcast %cst_184 : f32 to vector<8x128xf32>
    %496 = arith.mulf %495, %494 : vector<8x128xf32>
    %497 = math.tanh %496 : vector<8x128xf32>
    %cst_185 = arith.constant 1.000000e+00 : f32
    %498 = vector.broadcast %cst_185 : f32 to vector<8x128xf32>
    %499 = arith.addf %497, %498 : vector<8x128xf32>
    %cst_186 = arith.constant 5.000000e-01 : f32
    %500 = vector.broadcast %cst_186 : f32 to vector<8x128xf32>
    %501 = arith.mulf %500, %499 : vector<8x128xf32>
    %502 = arith.mulf %491, %465 : vector<8x128xf32>
    %503 = arith.mulf %483, %493 : vector<8x128xf32>
    %504 = arith.addf %502, %503 : vector<8x128xf32>
    %505 = math.tanh %504 : vector<8x128xf32>
    %506 = arith.mulf %501, %505 : vector<8x128xf32>
    %507 = arith.index_cast %471 : i32 to index
    %c0_187 = arith.constant 0 : index
    %508 = vector.load %arg13[%507, %c0_187] : memref<64x128xf32, #tpu.memory_space<vmem>>, vector<8x128xf32>
    tpu.vector_store %arg13[%507, %c0_187], %506 {strides = array<i32>} : memref<64x128xf32, #tpu.memory_space<vmem>>, vector<8x128xf32>,
    %c5_i32_188 = arith.constant 5 : i32
    %c8_i32_189 = arith.constant 8 : i32
    %509 = arith.muli %c5_i32_188, %c8_i32_189 : i32
    %510 = tpu.assume_multiple %509, 8 : i32
    %511 = arith.index_cast %510 : i32 to index
    %c0_190 = arith.constant 0 : index
    %512 = vector.load %arg12[%511, %c0_190] : memref<64x512xf32, #tpu.memory_space<vmem>>, vector<8x512xf32>
    %cst_191 = arith.constant dense<0.000000e+00> : vector<8x512xf32>
    %513 = tpu.matmul %506, %15, %cst_191 {dimension_numbers = #tpu.dot_dimension_numbers<[1], [0], [0], [1], [0, 0, 1, 1], [], []>} : vector<8x128xf32>, vector<128x512xf32>, vector<8x512xf32> -> vector<8x512xf32>
    %514 = arith.addf %512, %513 : vector<8x512xf32>
    %515 = vector.extract_strided_slice %514 {offsets = [0, 0], sizes = [8, 128], strides = [1, 1]} : vector<8x512xf32> to vector<8x128xf32>
    %cst_192 = arith.constant 5.000000e-01 : f32
    %516 = vector.broadcast %cst_192 : f32 to vector<8x128xf32>
    %517 = arith.mulf %516, %515 : vector<8x128xf32>
    %518 = math.tanh %517 : vector<8x128xf32>
    %cst_193 = arith.constant 1.000000e+00 : f32
    %519 = vector.broadcast %cst_193 : f32 to vector<8x128xf32>
    %520 = arith.addf %518, %519 : vector<8x128xf32>
    %cst_194 = arith.constant 5.000000e-01 : f32
    %521 = vector.broadcast %cst_194 : f32 to vector<8x128xf32>
    %522 = arith.mulf %521, %520 : vector<8x128xf32>
    %523 = vector.extract_strided_slice %514 {offsets = [0, 128], sizes = [8, 128], strides = [1, 1]} : vector<8x512xf32> to vector<8x128xf32>
    %cst_195 = arith.constant 5.000000e-01 : f32
    %524 = vector.broadcast %cst_195 : f32 to vector<8x128xf32>
    %525 = arith.mulf %524, %523 : vector<8x128xf32>
    %526 = math.tanh %525 : vector<8x128xf32>
    %cst_196 = arith.constant 1.000000e+00 : f32
    %527 = vector.broadcast %cst_196 : f32 to vector<8x128xf32>
    %528 = arith.addf %526, %527 : vector<8x128xf32>
    %cst_197 = arith.constant 5.000000e-01 : f32
    %529 = vector.broadcast %cst_197 : f32 to vector<8x128xf32>
    %530 = arith.mulf %529, %528 : vector<8x128xf32>
    %531 = vector.extract_strided_slice %514 {offsets = [0, 256], sizes = [8, 128], strides = [1, 1]} : vector<8x512xf32> to vector<8x128xf32>
    %532 = math.tanh %531 : vector<8x128xf32>
    %533 = vector.extract_strided_slice %514 {offsets = [0, 384], sizes = [8, 128], strides = [1, 1]} : vector<8x512xf32> to vector<8x128xf32>
    %cst_198 = arith.constant 5.000000e-01 : f32
    %534 = vector.broadcast %cst_198 : f32 to vector<8x128xf32>
    %535 = arith.mulf %534, %533 : vector<8x128xf32>
    %536 = math.tanh %535 : vector<8x128xf32>
    %cst_199 = arith.constant 1.000000e+00 : f32
    %537 = vector.broadcast %cst_199 : f32 to vector<8x128xf32>
    %538 = arith.addf %536, %537 : vector<8x128xf32>
    %cst_200 = arith.constant 5.000000e-01 : f32
    %539 = vector.broadcast %cst_200 : f32 to vector<8x128xf32>
    %540 = arith.mulf %539, %538 : vector<8x128xf32>
    %541 = arith.mulf %530, %504 : vector<8x128xf32>
    %542 = arith.mulf %522, %532 : vector<8x128xf32>
    %543 = arith.addf %541, %542 : vector<8x128xf32>
    %544 = math.tanh %543 : vector<8x128xf32>
    %545 = arith.mulf %540, %544 : vector<8x128xf32>
    %546 = arith.index_cast %510 : i32 to index
    %c0_201 = arith.constant 0 : index
    %547 = vector.load %arg13[%546, %c0_201] : memref<64x128xf32, #tpu.memory_space<vmem>>, vector<8x128xf32>
    tpu.vector_store %arg13[%546, %c0_201], %545 {strides = array<i32>} : memref<64x128xf32, #tpu.memory_space<vmem>>, vector<8x128xf32>,
    %c6_i32_202 = arith.constant 6 : i32
    %c8_i32_203 = arith.constant 8 : i32
    %548 = arith.muli %c6_i32_202, %c8_i32_203 : i32
    %549 = tpu.assume_multiple %548, 8 : i32
    %550 = arith.index_cast %549 : i32 to index
    %c0_204 = arith.constant 0 : index
    %551 = vector.load %arg12[%550, %c0_204] : memref<64x512xf32, #tpu.memory_space<vmem>>, vector<8x512xf32>
    %cst_205 = arith.constant dense<0.000000e+00> : vector<8x512xf32>
    %552 = tpu.matmul %545, %15, %cst_205 {dimension_numbers = #tpu.dot_dimension_numbers<[1], [0], [0], [1], [0, 0, 1, 1], [], []>} : vector<8x128xf32>, vector<128x512xf32>, vector<8x512xf32> -> vector<8x512xf32>
    %553 = arith.addf %551, %552 : vector<8x512xf32>
    %554 = vector.extract_strided_slice %553 {offsets = [0, 0], sizes = [8, 128], strides = [1, 1]} : vector<8x512xf32> to vector<8x128xf32>
    %cst_206 = arith.constant 5.000000e-01 : f32
    %555 = vector.broadcast %cst_206 : f32 to vector<8x128xf32>
    %556 = arith.mulf %555, %554 : vector<8x128xf32>
    %557 = math.tanh %556 : vector<8x128xf32>
    %cst_207 = arith.constant 1.000000e+00 : f32
    %558 = vector.broadcast %cst_207 : f32 to vector<8x128xf32>
    %559 = arith.addf %557, %558 : vector<8x128xf32>
    %cst_208 = arith.constant 5.000000e-01 : f32
    %560 = vector.broadcast %cst_208 : f32 to vector<8x128xf32>
    %561 = arith.mulf %560, %559 : vector<8x128xf32>
    %562 = vector.extract_strided_slice %553 {offsets = [0, 128], sizes = [8, 128], strides = [1, 1]} : vector<8x512xf32> to vector<8x128xf32>
    %cst_209 = arith.constant 5.000000e-01 : f32
    %563 = vector.broadcast %cst_209 : f32 to vector<8x128xf32>
    %564 = arith.mulf %563, %562 : vector<8x128xf32>
    %565 = math.tanh %564 : vector<8x128xf32>
    %cst_210 = arith.constant 1.000000e+00 : f32
    %566 = vector.broadcast %cst_210 : f32 to vector<8x128xf32>
    %567 = arith.addf %565, %566 : vector<8x128xf32>
    %cst_211 = arith.constant 5.000000e-01 : f32
    %568 = vector.broadcast %cst_211 : f32 to vector<8x128xf32>
    %569 = arith.mulf %568, %567 : vector<8x128xf32>
    %570 = vector.extract_strided_slice %553 {offsets = [0, 256], sizes = [8, 128], strides = [1, 1]} : vector<8x512xf32> to vector<8x128xf32>
    %571 = math.tanh %570 : vector<8x128xf32>
    %572 = vector.extract_strided_slice %553 {offsets = [0, 384], sizes = [8, 128], strides = [1, 1]} : vector<8x512xf32> to vector<8x128xf32>
    %cst_212 = arith.constant 5.000000e-01 : f32
    %573 = vector.broadcast %cst_212 : f32 to vector<8x128xf32>
    %574 = arith.mulf %573, %572 : vector<8x128xf32>
    %575 = math.tanh %574 : vector<8x128xf32>
    %cst_213 = arith.constant 1.000000e+00 : f32
    %576 = vector.broadcast %cst_213 : f32 to vector<8x128xf32>
    %577 = arith.addf %575, %576 : vector<8x128xf32>
    %cst_214 = arith.constant 5.000000e-01 : f32
    %578 = vector.broadcast %cst_214 : f32 to vector<8x128xf32>
    %579 = arith.mulf %578, %577 : vector<8x128xf32>
    %580 = arith.mulf %569, %543 : vector<8x128xf32>
    %581 = arith.mulf %561, %571 : vector<8x128xf32>
    %582 = arith.addf %580, %581 : vector<8x128xf32>
    %583 = math.tanh %582 : vector<8x128xf32>
    %584 = arith.mulf %579, %583 : vector<8x128xf32>
    %585 = arith.index_cast %549 : i32 to index
    %c0_215 = arith.constant 0 : index
    %586 = vector.load %arg13[%585, %c0_215] : memref<64x128xf32, #tpu.memory_space<vmem>>, vector<8x128xf32>
    tpu.vector_store %arg13[%585, %c0_215], %584 {strides = array<i32>} : memref<64x128xf32, #tpu.memory_space<vmem>>, vector<8x128xf32>,
    %c7_i32_216 = arith.constant 7 : i32
    %c8_i32_217 = arith.constant 8 : i32
    %587 = arith.muli %c7_i32_216, %c8_i32_217 : i32
    %588 = tpu.assume_multiple %587, 8 : i32
    %589 = arith.index_cast %588 : i32 to index
    %c0_218 = arith.constant 0 : index
    %590 = vector.load %arg12[%589, %c0_218] : memref<64x512xf32, #tpu.memory_space<vmem>>, vector<8x512xf32>
    %cst_219 = arith.constant dense<0.000000e+00> : vector<8x512xf32>
    %591 = tpu.matmul %584, %15, %cst_219 {dimension_numbers = #tpu.dot_dimension_numbers<[1], [0], [0], [1], [0, 0, 1, 1], [], []>} : vector<8x128xf32>, vector<128x512xf32>, vector<8x512xf32> -> vector<8x512xf32>
    %592 = arith.addf %590, %591 : vector<8x512xf32>
    %593 = vector.extract_strided_slice %592 {offsets = [0, 0], sizes = [8, 128], strides = [1, 1]} : vector<8x512xf32> to vector<8x128xf32>
    %cst_220 = arith.constant 5.000000e-01 : f32
    %594 = vector.broadcast %cst_220 : f32 to vector<8x128xf32>
    %595 = arith.mulf %594, %593 : vector<8x128xf32>
    %596 = math.tanh %595 : vector<8x128xf32>
    %cst_221 = arith.constant 1.000000e+00 : f32
    %597 = vector.broadcast %cst_221 : f32 to vector<8x128xf32>
    %598 = arith.addf %596, %597 : vector<8x128xf32>
    %cst_222 = arith.constant 5.000000e-01 : f32
    %599 = vector.broadcast %cst_222 : f32 to vector<8x128xf32>
    %600 = arith.mulf %599, %598 : vector<8x128xf32>
    %601 = vector.extract_strided_slice %592 {offsets = [0, 128], sizes = [8, 128], strides = [1, 1]} : vector<8x512xf32> to vector<8x128xf32>
    %cst_223 = arith.constant 5.000000e-01 : f32
    %602 = vector.broadcast %cst_223 : f32 to vector<8x128xf32>
    %603 = arith.mulf %602, %601 : vector<8x128xf32>
    %604 = math.tanh %603 : vector<8x128xf32>
    %cst_224 = arith.constant 1.000000e+00 : f32
    %605 = vector.broadcast %cst_224 : f32 to vector<8x128xf32>
    %606 = arith.addf %604, %605 : vector<8x128xf32>
    %cst_225 = arith.constant 5.000000e-01 : f32
    %607 = vector.broadcast %cst_225 : f32 to vector<8x128xf32>
    %608 = arith.mulf %607, %606 : vector<8x128xf32>
    %609 = vector.extract_strided_slice %592 {offsets = [0, 256], sizes = [8, 128], strides = [1, 1]} : vector<8x512xf32> to vector<8x128xf32>
    %610 = math.tanh %609 : vector<8x128xf32>
    %611 = vector.extract_strided_slice %592 {offsets = [0, 384], sizes = [8, 128], strides = [1, 1]} : vector<8x512xf32> to vector<8x128xf32>
    %cst_226 = arith.constant 5.000000e-01 : f32
    %612 = vector.broadcast %cst_226 : f32 to vector<8x128xf32>
    %613 = arith.mulf %612, %611 : vector<8x128xf32>
    %614 = math.tanh %613 : vector<8x128xf32>
    %cst_227 = arith.constant 1.000000e+00 : f32
    %615 = vector.broadcast %cst_227 : f32 to vector<8x128xf32>
    %616 = arith.addf %614, %615 : vector<8x128xf32>
    %cst_228 = arith.constant 5.000000e-01 : f32
    %617 = vector.broadcast %cst_228 : f32 to vector<8x128xf32>
    %618 = arith.mulf %617, %616 : vector<8x128xf32>
    %619 = arith.mulf %608, %582 : vector<8x128xf32>
    %620 = arith.mulf %600, %610 : vector<8x128xf32>
    %621 = arith.addf %619, %620 : vector<8x128xf32>
    %622 = math.tanh %621 : vector<8x128xf32>
    %623 = arith.mulf %618, %622 : vector<8x128xf32>
    %624 = arith.index_cast %588 : i32 to index
    %c0_229 = arith.constant 0 : index
    %625 = vector.load %arg13[%624, %c0_229] : memref<64x128xf32, #tpu.memory_space<vmem>>, vector<8x128xf32>
    tpu.vector_store %arg13[%624, %c0_229], %623 {strides = array<i32>} : memref<64x128xf32, #tpu.memory_space<vmem>>, vector<8x128xf32>,
    %c8_i32_230 = arith.constant 8 : i32
    %c0_231 = arith.constant 0 : index
    %c0_232 = arith.constant 0 : index
    %626 = vector.load %arg13[%c0_231, %c0_232] : memref<64x128xf32, #tpu.memory_space<vmem>>, vector<64x128xf32>
    %c0_233 = arith.constant 0 : index
    %c0_234 = arith.constant 0 : index
    %627 = vector.load %arg8[%c0_233, %c0_234] : memref<128x128xf32, #tpu.memory_space<vmem>>, vector<128x128xf32>
    %cst_235 = arith.constant dense<0.000000e+00> : vector<64x128xf32>
    %628 = tpu.matmul %626, %627, %cst_235 {dimension_numbers = #tpu.dot_dimension_numbers<[1], [0], [0], [1], [0, 0, 1, 1], [], []>} : vector<64x128xf32>, vector<128x128xf32>, vector<64x128xf32> -> vector<64x128xf32>
    %c0_236 = arith.constant 0 : index
    %c0_237 = arith.constant 0 : index
    %629 = vector.load %arg9[%c0_236, %c0_237] : memref<1x128xf32, #tpu.memory_space<vmem>>, vector<1x128xf32>
    %630 = vector.broadcast %629 : vector<1x128xf32> to vector<64x128xf32>
    %631 = arith.addf %628, %630 : vector<64x128xf32>
    %c0_238 = arith.constant 0 : index
    %c0_239 = arith.constant 0 : index
    %632 = vector.load %arg10[%c0_238, %c0_239] : memref<64x128xf32, #tpu.memory_space<vmem>>, vector<64x128xf32>
    tpu.vector_store %arg10[%c0_238, %c0_239], %631 {strides = array<i32>} : memref<64x128xf32, #tpu.memory_space<vmem>>, vector<64x128xf32>,
    return
  }
}

</mosaic_0001>

<llo_original>
// kernel: seq2seq_forward.1
$region0: #{seq2seq_forward.1}
  #allocation0 [shape = 'u32[]', space=smem, size = 0x4, offset = 0x4, fixed_abs, tag = 'smem constant byte address 0x4 - core index']
  #allocation1 [shape = 'u32[144,128]{1,0:T(1,128)}', space=vmem, size = 0x12000, scoped, tag = 'internal scratch']
  #allocation2 [shape = 'f32[64,512]{1,0:T(8,128)}', space=vmem, size = 0x20000, scoped, tag = 'scratch operand']
  #allocation3 [shape = 'f32[64,512]{1,0:T(8,128)}', space=vmem, size = 0x20000, scoped, tag = 'scratch operand']
  #allocation4 [shape = 'f32[64,128]{1,0:T(8,128)}', space=vmem, size = 0x8000, scoped, tag = 'scratch operand']
  %s0 = inlined_call_operand.vmem [shape: f32[64,4], index: 0, kind: input, shape index: {}]
  %s1 = inlined_call_operand.vmem [shape: f32[64,3], index: 1, kind: input, shape index: {}]
  %s2 = inlined_call_operand.vmem [shape: f32[4,512], index: 2, kind: input, shape index: {}]
  %s3 = inlined_call_operand.vmem [shape: f32[128,512], index: 3, kind: input, shape index: {}]
  %s4 = inlined_call_operand.vmem [shape: f32[1,512], index: 4, kind: input, shape index: {}]
  %s5 = inlined_call_operand.vmem [shape: f32[3,512], index: 5, kind: input, shape index: {}]
  %s6 = inlined_call_operand.vmem [shape: f32[128,512], index: 6, kind: input, shape index: {}]
  %s7 = inlined_call_operand.vmem [shape: f32[1,512], index: 7, kind: input, shape index: {}]
  %s8 = inlined_call_operand.vmem [shape: f32[128,128], index: 8, kind: input, shape index: {}]
  %s9 = inlined_call_operand.vmem [shape: f32[1,128], index: 9, kind: input, shape index: {}]
  %s10 = inlined_call_operand.vmem [shape: f32[64,128], index: 10, kind: output, shape index: {}]
  %s11 = sld [smem:[#allocation0]]
  $region50: #{seq2seq_forward.1} parent=0
    _
  %s13 = ssub.s32 1, %s11
  %s14 = scalar_select 0, %s13, %s11
  // Predicated region
  $region2: #{seq2seq_forward.1} parent=0 // pred_check
    _
  $region3: #{seq2seq_forward.1} parent=0 // pred_check_branch
    %16 = sbr.rel (0) target = $region5
  $region4: #{seq2seq_forward.1} parent=0 // pred_region
    _
  $region5: #{seq2seq_forward.1} parent=0 // pred_fallthru
    _
  // Predicated region
  $region6: #{seq2seq_forward.1} parent=0 // pred_check
    _
  $region7: #{seq2seq_forward.1} parent=0 // pred_check_branch
    %18 = sbr.rel (0) target = $region9
  $region8: #{seq2seq_forward.1} parent=0 // pred_region
    _
  $region9: #{seq2seq_forward.1} parent=0 // pred_fallthru
    _
  // Predicated region
  $region10: #{seq2seq_forward.1} parent=0 // pred_check
    _
  $region11: #{seq2seq_forward.1} parent=0 // pred_check_branch
    %20 = sbr.rel (0) target = $region13
  $region12: #{seq2seq_forward.1} parent=0 // pred_region
    _
  $region13: #{seq2seq_forward.1} parent=0 // pred_fallthru
    _
  // Predicated region
  $region14: #{seq2seq_forward.1} parent=0 // pred_check
    _
  $region15: #{seq2seq_forward.1} parent=0 // pred_check_branch
    %22 = sbr.rel (0) target = $region17
  $region16: #{seq2seq_forward.1} parent=0 // pred_region
    _
  $region17: #{seq2seq_forward.1} parent=0 // pred_fallthru
    _
  // Predicated region
  $region18: #{seq2seq_forward.1} parent=0 // pred_check
    _
  $region19: #{seq2seq_forward.1} parent=0 // pred_check_branch
    %24 = sbr.rel (0) target = $region21
  $region20: #{seq2seq_forward.1} parent=0 // pred_region
    _
  $region21: #{seq2seq_forward.1} parent=0 // pred_fallthru
    _
  // Predicated region
  $region22: #{seq2seq_forward.1} parent=0 // pred_check
    _
  $region23: #{seq2seq_forward.1} parent=0 // pred_check_branch
    %26 = sbr.rel (0) target = $region25
  $region24: #{seq2seq_forward.1} parent=0 // pred_region
    _
  $region25: #{seq2seq_forward.1} parent=0 // pred_fallthru
    _
  // Predicated region
  $region26: #{seq2seq_forward.1} parent=0 // pred_check
    _
  $region27: #{seq2seq_forward.1} parent=0 // pred_check_branch
    %28 = sbr.rel (0) target = $region29
  $region28: #{seq2seq_forward.1} parent=0 // pred_region
    _
  $region29: #{seq2seq_forward.1} parent=0 // pred_fallthru
    _
  // Predicated region
  $region30: #{seq2seq_forward.1} parent=0 // pred_check
    _
  $region31: #{seq2seq_forward.1} parent=0 // pred_check_branch
    %30 = sbr.rel (0) target = $region33
  $region32: #{seq2seq_forward.1} parent=0 // pred_region
    _
  $region33: #{seq2seq_forward.1} parent=0 // pred_fallthru
    _
  // Predicated region
  $region34: #{seq2seq_forward.1} parent=0 // pred_check
    _
  $region35: #{seq2seq_forward.1} parent=0 // pred_check_branch
    %32 = sbr.rel (0) target = $region37
  $region36: #{seq2seq_forward.1} parent=0 // pred_region
    _
  $region37: #{seq2seq_forward.1} parent=0 // pred_fallthru
    _
  // Predicated region
  $region38: #{seq2seq_forward.1} parent=0 // pred_check
    _
  $region39: #{seq2seq_forward.1} parent=0 // pred_check_branch
    %34 = sbr.rel (0) target = $region41
  $region40: #{seq2seq_forward.1} parent=0 // pred_region
    _
  $region41: #{seq2seq_forward.1} parent=0 // pred_fallthru
    _
  %v35 = vld [vmem:[%s0] sm:$0xff]
  %v36 = vld [vmem:[%s0 + $0x8] sm:$0xff]
  %v37 = vld [vmem:[%s0 + $0x10] sm:$0xff]
  %v38 = vld [vmem:[%s0 + $0x18] sm:$0xff]
  %v39 = vld [vmem:[%s0 + $0x20] sm:$0xff]
  %v40 = vld [vmem:[%s0 + $0x28] sm:$0xff]
  %v41 = vld [vmem:[%s0 + $0x30] sm:$0xff]
  %v42 = vld [vmem:[%s0 + $0x38] sm:$0xff]
  %v43 = vld [vmem:[%s2] sm:$0xff]
  %v44 = vld [vmem:[%s2 + $0x8] sm:$0xff]
  %v45 = vld [vmem:[%s4] sm:$0xf]
  %v47 = vlaneseq
  %v48 = vshrl.u32 %v47, 7
  %v49 = vsub.s32 0, %v48
  %v50 = vrot.slane %v45, %v49
  %v51 = vlaneseq
  %v52 = vshrl.u32 %v51, 7
  %v53 = vsub.s32 1, %v52
  %v54 = vrot.slane %v45, %v53
  %v55 = vlaneseq
  %v56 = vshrl.u32 %v55, 7
  %v57 = vsub.s32 2, %v56
  %v58 = vrot.slane %v45, %v57
  %v59 = vlaneseq
  %v60 = vshrl.u32 %v59, 7
  %v61 = vsub.s32 3, %v60
  %v62 = vrot.slane %v45, %v61
  %v69 = vcombine.high %v43, %v43
  %v70 = vcombine.high %v44, %v44
  %vm71 = vcmask 31744
  %v73 = vsel %vm71, %v35, 0
  %v76 = vsel %vm71, %v36, 0
  %v79 = vsel %vm71, %v37, 0
  %v82 = vsel %vm71, %v38, 0
  %v85 = vsel %vm71, %v39, 0
  %v88 = vsel %vm71, %v40, 0
  %v91 = vsel %vm71, %v41, 0
  %v94 = vsel %vm71, %v42, 0
  %vm96 = vcmask 1043456
  %v97 = vsel %vm96, %v43, 0
  %v99 = vsel %vm96, %v69, 0
  %v101 = vsel %vm96, %v44, 0
  %v103 = vsel %vm96, %v70, 0
  %105 = vmatprep.subr.mxu0 0.0
  %106 = vmatpush1.msra.mxu0 0.0
  %107 = vmatprep.subr.mxu0 0.0
  %108 = vmatpush1.msra.mxu0 0.0
  %109 = vmatprep.subr.mxu0 0.0
  %110 = vmatpush1.msra.mxu0 0.0
  %111 = vmatprep.subr.mxu0 0.0
  %112 = vmatpush1.msra.mxu0 0.0
  %113 = vmatprep.subr.mxu0 0.0
  %114 = vmatpush1.msra.mxu0 0.0
  %115 = vmatprep.subr.mxu0 0.0
  %116 = vmatpush1.msra.mxu0 0.0
  %117 = vmatprep.subr.mxu0 0.0
  %118 = vmatpush1.msra.mxu0 0.0
  %119 = vmatprep.subr.mxu0 0.0
  %120 = vmatpush1.msra.mxu0 0.0
  %121 = vmatprep.subr.mxu0 0.0
  %122 = vmatpush1.msra.mxu0 0.0
  %123 = vmatprep.subr.mxu0 0.0
  %124 = vmatpush1.msra.mxu0 0.0
  %125 = vmatprep.subr.mxu0 0.0
  %126 = vmatpush1.msra.mxu0 0.0
  %127 = vmatprep.subr.mxu0 0.0
  %128 = vmatpush1.msra.mxu0 0.0
  %129 = vmatprep.subr.mxu0 0.0
  %130 = vmatpush1.msra.mxu0 0.0
  %131 = vmatprep.subr.mxu0 0.0
  %132 = vmatpush1.msra.mxu0 0.0
  %133 = vmatprep.subr.mxu0 0.0
  %134 = vmatpush1.msra.mxu0 0.0
  %135 = vmatprep.subr.mxu0 %v99
  %136 = vmatpush1.msra.mxu0 %v97
  %137 = vmatprep.subr.mxu0 0.0
  %138 = vmatpush2.msra.mxu0 0.0
  %139 = vmatprep.subr.mxu0 0.0
  %140 = vmatpush2.msra.mxu0 0.0
  %141 = vmatprep.subr.mxu0 0.0
  %142 = vmatpush2.msra.mxu0 0.0
  %143 = vmatprep.subr.mxu0 0.0
  %144 = vmatpush2.msra.mxu0 0.0
  %145 = vmatprep.subr.mxu0 0.0
  %146 = vmatpush2.msra.mxu0 0.0
  %147 = vmatprep.subr.mxu0 0.0
  %148 = vmatpush2.msra.mxu0 0.0
  %149 = vmatprep.subr.mxu0 0.0
  %150 = vmatpush2.msra.mxu0 0.0
  %151 = vmatprep.subr.mxu0 0.0
  %152 = vmatpush2.msra.mxu0 0.0
  %153 = vmatprep.subr.mxu0 0.0
  %154 = vmatpush2.msra.mxu0 0.0
  %155 = vmatprep.subr.mxu0 0.0
  %156 = vmatpush2.msra.mxu0 0.0
  %157 = vmatprep.subr.mxu0 0.0
  %158 = vmatpush2.msra.mxu0 0.0
  %159 = vmatprep.subr.mxu0 0.0
  %160 = vmatpush2.msra.mxu0 0.0
  %161 = vmatprep.subr.mxu0 0.0
  %162 = vmatpush2.msra.mxu0 0.0
  %163 = vmatprep.subr.mxu0 0.0
  %164 = vmatpush2.msra.mxu0 0.0
  %165 = vmatprep.subr.mxu0 0.0
  %166 = vmatpush2.msra.mxu0 0.0
  %167 = vmatprep.subr.mxu0 0.0
  %168 = vmatpush2.msra.mxu0 0.0
  %169 = vmatprep.mubr.f32.mxu0 0.0
  %170 = vmatmul.mubr.f32.gmra.mxu0 %v73
  %v171 = vpop.f32.mrf.mxu0
  %v172 = vadd.f32 %v50, %v171
  %v173 = vpop.f32.mrf.mxu0
  %v174 = vadd.f32 %v54, %v173
  %175 = vmatprep.mubr.f32.mxu0 0.0
  %176 = vmatmul.mubr.f32.gmra.mxu0 %v76
  %v177 = vpop.f32.mrf.mxu0
  %v178 = vadd.f32 %v50, %v177
  %v179 = vpop.f32.mrf.mxu0
  %v180 = vadd.f32 %v54, %v179
  %181 = vmatprep.mubr.f32.mxu0 0.0
  %182 = vmatmul.mubr.f32.gmra.mxu0 %v79
  %v183 = vpop.f32.mrf.mxu0
  %v184 = vadd.f32 %v50, %v183
  %v185 = vpop.f32.mrf.mxu0
  %v186 = vadd.f32 %v54, %v185
  %187 = vmatprep.mubr.f32.mxu0 0.0
  %188 = vmatmul.mubr.f32.gmra.mxu0 %v82
  %v189 = vpop.f32.mrf.mxu0
  %v190 = vadd.f32 %v50, %v189
  %v191 = vpop.f32.mrf.mxu0
  %v192 = vadd.f32 %v54, %v191
  %193 = vmatprep.mubr.f32.mxu0 0.0
  %194 = vmatmul.mubr.f32.gmra.mxu0 %v85
  %v195 = vpop.f32.mrf.mxu0
  %v196 = vadd.f32 %v50, %v195
  %v197 = vpop.f32.mrf.mxu0
  %v198 = vadd.f32 %v54, %v197
  %199 = vmatprep.mubr.f32.mxu0 0.0
  %200 = vmatmul.mubr.f32.gmra.mxu0 %v88
  %v201 = vpop.f32.mrf.mxu0
  %v202 = vadd.f32 %v50, %v201
  %v203 = vpop.f32.mrf.mxu0
  %v204 = vadd.f32 %v54, %v203
  %205 = vmatprep.mubr.f32.mxu0 0.0
  %206 = vmatmul.mubr.f32.gmra.mxu0 %v91
  %v207 = vpop.f32.mrf.mxu0
  %v208 = vadd.f32 %v50, %v207
  %v209 = vpop.f32.mrf.mxu0
  %v210 = vadd.f32 %v54, %v209
  %211 = vmatprep.mubr.f32.mxu0 0.0
  %212 = vmatmul.mubr.f32.gmra.mxu0 %v94
  %v213 = vpop.f32.mrf.mxu0
  %v214 = vadd.f32 %v50, %v213
  %v215 = vpop.f32.mrf.mxu0
  %v216 = vadd.f32 %v54, %v215
  %217 = vdwg.mxu0
  %218 = vmatprep.subr.mxu0 0.0
  %219 = vmatpush1.msra.mxu0 0.0
  %220 = vmatprep.subr.mxu0 0.0
  %221 = vmatpush1.msra.mxu0 0.0
  %222 = vmatprep.subr.mxu0 0.0
  %223 = vmatpush1.msra.mxu0 0.0
  %224 = vmatprep.subr.mxu0 0.0
  %225 = vmatpush1.msra.mxu0 0.0
  %226 = vmatprep.subr.mxu0 0.0
  %227 = vmatpush1.msra.mxu0 0.0
  %228 = vmatprep.subr.mxu0 0.0
  %229 = vmatpush1.msra.mxu0 0.0
  %230 = vmatprep.subr.mxu0 0.0
  %231 = vmatpush1.msra.mxu0 0.0
  %232 = vmatprep.subr.mxu0 0.0
  %233 = vmatpush1.msra.mxu0 0.0
  %234 = vmatprep.subr.mxu0 0.0
  %235 = vmatpush1.msra.mxu0 0.0
  %236 = vmatprep.subr.mxu0 0.0
  %237 = vmatpush1.msra.mxu0 0.0
  %238 = vmatprep.subr.mxu0 0.0
  %239 = vmatpush1.msra.mxu0 0.0
  %240 = vmatprep.subr.mxu0 0.0
  %241 = vmatpush1.msra.mxu0 0.0
  %242 = vmatprep.subr.mxu0 0.0
  %243 = vmatpush1.msra.mxu0 0.0
  %244 = vmatprep.subr.mxu0 0.0
  %245 = vmatpush1.msra.mxu0 0.0
  %246 = vmatprep.subr.mxu0 0.0
  %247 = vmatpush1.msra.mxu0 0.0
  %248 = vmatprep.subr.mxu0 %v103
  %249 = vmatpush1.msra.mxu0 %v101
  %250 = vmatprep.subr.mxu0 0.0
  %251 = vmatpush2.msra.mxu0 0.0
  %252 = vmatprep.subr.mxu0 0.0
  %253 = vmatpush2.msra.mxu0 0.0
  %254 = vmatprep.subr.mxu0 0.0
  %255 = vmatpush2.msra.mxu0 0.0
  %256 = vmatprep.subr.mxu0 0.0
  %257 = vmatpush2.msra.mxu0 0.0
  %258 = vmatprep.subr.mxu0 0.0
  %259 = vmatpush2.msra.mxu0 0.0
  %260 = vmatprep.subr.mxu0 0.0
  %261 = vmatpush2.msra.mxu0 0.0
  %262 = vmatprep.subr.mxu0 0.0
  %263 = vmatpush2.msra.mxu0 0.0
  %264 = vmatprep.subr.mxu0 0.0
  %265 = vmatpush2.msra.mxu0 0.0
  %266 = vmatprep.subr.mxu0 0.0
  %267 = vmatpush2.msra.mxu0 0.0
  %268 = vmatprep.subr.mxu0 0.0
  %269 = vmatpush2.msra.mxu0 0.0
  %270 = vmatprep.subr.mxu0 0.0
  %271 = vmatpush2.msra.mxu0 0.0
  %272 = vmatprep.subr.mxu0 0.0
  %273 = vmatpush2.msra.mxu0 0.0
  %274 = vmatprep.subr.mxu0 0.0
  %275 = vmatpush2.msra.mxu0 0.0
  %276 = vmatprep.subr.mxu0 0.0
  %277 = vmatpush2.msra.mxu0 0.0
  %278 = vmatprep.subr.mxu0 0.0
  %279 = vmatpush2.msra.mxu0 0.0
  %280 = vmatprep.subr.mxu0 0.0
  %281 = vmatpush2.msra.mxu0 0.0
  %282 = vmatprep.mubr.f32.mxu0 0.0
  %283 = vmatmul.mubr.f32.gmra.mxu0 %v73
  %v284 = vpop.f32.mrf.mxu0
  %v285 = vadd.f32 %v58, %v284
  %v286 = vpop.f32.mrf.mxu0
  %v287 = vadd.f32 %v62, %v286
  %288 = vmatprep.mubr.f32.mxu0 0.0
  %289 = vmatmul.mubr.f32.gmra.mxu0 %v76
  %v290 = vpop.f32.mrf.mxu0
  %v291 = vadd.f32 %v58, %v290
  %v292 = vpop.f32.mrf.mxu0
  %v293 = vadd.f32 %v62, %v292
  %294 = vmatprep.mubr.f32.mxu0 0.0
  %295 = vmatmul.mubr.f32.gmra.mxu0 %v79
  %v296 = vpop.f32.mrf.mxu0
  %v297 = vadd.f32 %v58, %v296
  %v298 = vpop.f32.mrf.mxu0
  %v299 = vadd.f32 %v62, %v298
  %300 = vmatprep.mubr.f32.mxu0 0.0
  %301 = vmatmul.mubr.f32.gmra.mxu0 %v82
  %v302 = vpop.f32.mrf.mxu0
  %v303 = vadd.f32 %v58, %v302
  %v304 = vpop.f32.mrf.mxu0
  %v305 = vadd.f32 %v62, %v304
  %306 = vmatprep.mubr.f32.mxu0 0.0
  %307 = vmatmul.mubr.f32.gmra.mxu0 %v85
  %v308 = vpop.f32.mrf.mxu0
  %v309 = vadd.f32 %v58, %v308
  %v310 = vpop.f32.mrf.mxu0
  %v311 = vadd.f32 %v62, %v310
  %312 = vmatprep.mubr.f32.mxu0 0.0
  %313 = vmatmul.mubr.f32.gmra.mxu0 %v88
  %v314 = vpop.f32.mrf.mxu0
  %v315 = vadd.f32 %v58, %v314
  %v316 = vpop.f32.mrf.mxu0
  %v317 = vadd.f32 %v62, %v316
  %318 = vmatprep.mubr.f32.mxu0 0.0
  %319 = vmatmul.mubr.f32.gmra.mxu0 %v91
  %v320 = vpop.f32.mrf.mxu0
  %v321 = vadd.f32 %v58, %v320
  %v322 = vpop.f32.mrf.mxu0
  %v323 = vadd.f32 %v62, %v322
  %324 = vmatprep.mubr.f32.mxu0 0.0
  %325 = vmatmul.mubr.f32.gmra.mxu0 %v94
  %v326 = vpop.f32.mrf.mxu0
  %v327 = vadd.f32 %v58, %v326
  %v328 = vpop.f32.mrf.mxu0
  %v329 = vadd.f32 %v62, %v328
  %330 = vdwg.mxu0
  %331 = vst [vmem:[#allocation2] sm:$0xff] %v172
  %332 = vst [vmem:[#allocation2 + $0x8] sm:$0xff] %v174
  %333 = vst [vmem:[#allocation2 + $0x10] sm:$0xff] %v285
  %334 = vst [vmem:[#allocation2 + $0x18] sm:$0xff] %v287
  %335 = vst [vmem:[#allocation2 + $0x20] sm:$0xff] %v178
  %336 = vst [vmem:[#allocation2 + $0x28] sm:$0xff] %v180
  %337 = vst [vmem:[#allocation2 + $0x30] sm:$0xff] %v291
  %338 = vst [vmem:[#allocation2 + $0x38] sm:$0xff] %v293
  %339 = vst [vmem:[#allocation2 + $0x40] sm:$0xff] %v184
  %340 = vst [vmem:[#allocation2 + $0x48] sm:$0xff] %v186
  %341 = vst [vmem:[#allocation2 + $0x50] sm:$0xff] %v297
  %342 = vst [vmem:[#allocation2 + $0x58] sm:$0xff] %v299
  %343 = vst [vmem:[#allocation2 + $0x60] sm:$0xff] %v190
  %344 = vst [vmem:[#allocation2 + $0x68] sm:$0xff] %v192
  %345 = vst [vmem:[#allocation2 + $0x70] sm:$0xff] %v303
  %346 = vst [vmem:[#allocation2 + $0x78] sm:$0xff] %v305
  %347 = vst [vmem:[#allocation2 + $0x80] sm:$0xff] %v196
  %348 = vst [vmem:[#allocation2 + $0x88] sm:$0xff] %v198
  %349 = vst [vmem:[#allocation2 + $0x90] sm:$0xff] %v309
  %350 = vst [vmem:[#allocation2 + $0x98] sm:$0xff] %v311
  %351 = vst [vmem:[#allocation2 + $0xa0] sm:$0xff] %v202
  %352 = vst [vmem:[#allocation2 + $0xa8] sm:$0xff] %v204
  %353 = vst [vmem:[#allocation2 + $0xb0] sm:$0xff] %v315
  %354 = vst [vmem:[#allocation2 + $0xb8] sm:$0xff] %v317
  %355 = vst [vmem:[#allocation2 + $0xc0] sm:$0xff] %v208
  %356 = vst [vmem:[#allocation2 + $0xc8] sm:$0xff] %v210
  %357 = vst [vmem:[#allocation2 + $0xd0] sm:$0xff] %v321
  %358 = vst [vmem:[#allocation2 + $0xd8] sm:$0xff] %v323
  %359 = vst [vmem:[#allocation2 + $0xe0] sm:$0xff] %v214
  %360 = vst [vmem:[#allocation2 + $0xe8] sm:$0xff] %v216
  %361 = vst [vmem:[#allocation2 + $0xf0] sm:$0xff] %v327
  %362 = vst [vmem:[#allocation2 + $0xf8] sm:$0xff] %v329
  %v363 = vld [vmem:[%s1] sm:$0xff]
  %v364 = vld [vmem:[%s1 + $0x8] sm:$0xff]
  %v365 = vld [vmem:[%s1 + $0x10] sm:$0xff]
  %v366 = vld [vmem:[%s1 + $0x18] sm:$0xff]
  %v367 = vld [vmem:[%s1 + $0x20] sm:$0xff]
  %v368 = vld [vmem:[%s1 + $0x28] sm:$0xff]
  %v369 = vld [vmem:[%s1 + $0x30] sm:$0xff]
  %v370 = vld [vmem:[%s1 + $0x38] sm:$0xff]
  %v371 = vld [vmem:[%s5] sm:$0x77]
  %v372 = vld [vmem:[%s5 + $0x8] sm:$0x77]
  %v373 = vld [vmem:[%s7] sm:$0xf]
  %v375 = vlaneseq
  %v376 = vshrl.u32 %v375, 7
  %v377 = vsub.s32 0, %v376
  %v378 = vrot.slane %v373, %v377
  %v379 = vlaneseq
  %v380 = vshrl.u32 %v379, 7
  %v381 = vsub.s32 1, %v380
  %v382 = vrot.slane %v373, %v381
  %v383 = vlaneseq
  %v384 = vshrl.u32 %v383, 7
  %v385 = vsub.s32 2, %v384
  %v386 = vrot.slane %v373, %v385
  %v387 = vlaneseq
  %v388 = vshrl.u32 %v387, 7
  %v389 = vsub.s32 3, %v388
  %v390 = vrot.slane %v373, %v389
  %v397 = vcombine.high %v371, %v371
  %v398 = vcombine.high %v372, %v372
  %vm399 = vcmask 23552
  %v401 = vsel %vm399, %v363, 0
  %v404 = vsel %vm399, %v364, 0
  %v407 = vsel %vm399, %v365, 0
  %v410 = vsel %vm399, %v366, 0
  %v413 = vsel %vm399, %v367, 0
  %v416 = vsel %vm399, %v368, 0
  %v419 = vsel %vm399, %v369, 0
  %v422 = vsel %vm399, %v370, 0
  %vm424 = vcmask 1042432
  %v425 = vsel %vm424, %v371, 0
  %v427 = vsel %vm424, %v397, 0
  %v429 = vsel %vm424, %v372, 0
  %v431 = vsel %vm424, %v398, 0
  %433 = vmatprep.subr.mxu0 0.0
  %434 = vmatpush1.msra.mxu0 0.0
  %435 = vmatprep.subr.mxu0 0.0
  %436 = vmatpush1.msra.mxu0 0.0
  %437 = vmatprep.subr.mxu0 0.0
  %438 = vmatpush1.msra.mxu0 0.0
  %439 = vmatprep.subr.mxu0 0.0
  %440 = vmatpush1.msra.mxu0 0.0
  %441 = vmatprep.subr.mxu0 0.0
  %442 = vmatpush1.msra.mxu0 0.0
  %443 = vmatprep.subr.mxu0 0.0
  %444 = vmatpush1.msra.mxu0 0.0
  %445 = vmatprep.subr.mxu0 0.0
  %446 = vmatpush1.msra.mxu0 0.0
  %447 = vmatprep.subr.mxu0 0.0
  %448 = vmatpush1.msra.mxu0 0.0
  %449 = vmatprep.subr.mxu0 0.0
  %450 = vmatpush1.msra.mxu0 0.0
  %451 = vmatprep.subr.mxu0 0.0
  %452 = vmatpush1.msra.mxu0 0.0
  %453 = vmatprep.subr.mxu0 0.0
  %454 = vmatpush1.msra.mxu0 0.0
  %455 = vmatprep.subr.mxu0 0.0
  %456 = vmatpush1.msra.mxu0 0.0
  %457 = vmatprep.subr.mxu0 0.0
  %458 = vmatpush1.msra.mxu0 0.0
  %459 = vmatprep.subr.mxu0 0.0
  %460 = vmatpush1.msra.mxu0 0.0
  %461 = vmatprep.subr.mxu0 0.0
  %462 = vmatpush1.msra.mxu0 0.0
  %463 = vmatprep.subr.mxu0 %v427
  %464 = vmatpush1.msra.mxu0 %v425
  %465 = vmatprep.subr.mxu0 0.0
  %466 = vmatpush2.msra.mxu0 0.0
  %467 = vmatprep.subr.mxu0 0.0
  %468 = vmatpush2.msra.mxu0 0.0
  %469 = vmatprep.subr.mxu0 0.0
  %470 = vmatpush2.msra.mxu0 0.0
  %471 = vmatprep.subr.mxu0 0.0
  %472 = vmatpush2.msra.mxu0 0.0
  %473 = vmatprep.subr.mxu0 0.0
  %474 = vmatpush2.msra.mxu0 0.0
  %475 = vmatprep.subr.mxu0 0.0
  %476 = vmatpush2.msra.mxu0 0.0
  %477 = vmatprep.subr.mxu0 0.0
  %478 = vmatpush2.msra.mxu0 0.0
  %479 = vmatprep.subr.mxu0 0.0
  %480 = vmatpush2.msra.mxu0 0.0
  %481 = vmatprep.subr.mxu0 0.0
  %482 = vmatpush2.msra.mxu0 0.0
  %483 = vmatprep.subr.mxu0 0.0
  %484 = vmatpush2.msra.mxu0 0.0
  %485 = vmatprep.subr.mxu0 0.0
  %486 = vmatpush2.msra.mxu0 0.0
  %487 = vmatprep.subr.mxu0 0.0
  %488 = vmatpush2.msra.mxu0 0.0
  %489 = vmatprep.subr.mxu0 0.0
  %490 = vmatpush2.msra.mxu0 0.0
  %491 = vmatprep.subr.mxu0 0.0
  %492 = vmatpush2.msra.mxu0 0.0
  %493 = vmatprep.subr.mxu0 0.0
  %494 = vmatpush2.msra.mxu0 0.0
  %495 = vmatprep.subr.mxu0 0.0
  %496 = vmatpush2.msra.mxu0 0.0
  %497 = vmatprep.mubr.f32.mxu0 0.0
  %498 = vmatmul.mubr.f32.gmra.mxu0 %v401
  %v499 = vpop.f32.mrf.mxu0
  %v500 = vadd.f32 %v378, %v499
  %v501 = vpop.f32.mrf.mxu0
  %v502 = vadd.f32 %v382, %v501
  %503 = vmatprep.mubr.f32.mxu0 0.0
  %504 = vmatmul.mubr.f32.gmra.mxu0 %v404
  %v505 = vpop.f32.mrf.mxu0
  %v506 = vadd.f32 %v378, %v505
  %v507 = vpop.f32.mrf.mxu0
  %v508 = vadd.f32 %v382, %v507
  %509 = vmatprep.mubr.f32.mxu0 0.0
  %510 = vmatmul.mubr.f32.gmra.mxu0 %v407
  %v511 = vpop.f32.mrf.mxu0
  %v512 = vadd.f32 %v378, %v511
  %v513 = vpop.f32.mrf.mxu0
  %v514 = vadd.f32 %v382, %v513
  %515 = vmatprep.mubr.f32.mxu0 0.0
  %516 = vmatmul.mubr.f32.gmra.mxu0 %v410
  %v517 = vpop.f32.mrf.mxu0
  %v518 = vadd.f32 %v378, %v517
  %v519 = vpop.f32.mrf.mxu0
  %v520 = vadd.f32 %v382, %v519
  %521 = vmatprep.mubr.f32.mxu0 0.0
  %522 = vmatmul.mubr.f32.gmra.mxu0 %v413
  %v523 = vpop.f32.mrf.mxu0
  %v524 = vadd.f32 %v378, %v523
  %v525 = vpop.f32.mrf.mxu0
  %v526 = vadd.f32 %v382, %v525
  %527 = vmatprep.mubr.f32.mxu0 0.0
  %528 = vmatmul.mubr.f32.gmra.mxu0 %v416
  %v529 = vpop.f32.mrf.mxu0
  %v530 = vadd.f32 %v378, %v529
  %v531 = vpop.f32.mrf.mxu0
  %v532 = vadd.f32 %v382, %v531
  %533 = vmatprep.mubr.f32.mxu0 0.0
  %534 = vmatmul.mubr.f32.gmra.mxu0 %v419
  %v535 = vpop.f32.mrf.mxu0
  %v536 = vadd.f32 %v378, %v535
  %v537 = vpop.f32.mrf.mxu0
  %v538 = vadd.f32 %v382, %v537
  %539 = vmatprep.mubr.f32.mxu0 0.0
  %540 = vmatmul.mubr.f32.gmra.mxu0 %v422
  %v541 = vpop.f32.mrf.mxu0
  %v542 = vadd.f32 %v378, %v541
  %v543 = vpop.f32.mrf.mxu0
  %v544 = vadd.f32 %v382, %v543
  %545 = vdwg.mxu0
  %546 = vmatprep.subr.mxu0 0.0
  %547 = vmatpush1.msra.mxu0 0.0
  %548 = vmatprep.subr.mxu0 0.0
  %549 = vmatpush1.msra.mxu0 0.0
  %550 = vmatprep.subr.mxu0 0.0
  %551 = vmatpush1.msra.mxu0 0.0
  %552 = vmatprep.subr.mxu0 0.0
  %553 = vmatpush1.msra.mxu0 0.0
  %554 = vmatprep.subr.mxu0 0.0
  %555 = vmatpush1.msra.mxu0 0.0
  %556 = vmatprep.subr.mxu0 0.0
  %557 = vmatpush1.msra.mxu0 0.0
  %558 = vmatprep.subr.mxu0 0.0
  %559 = vmatpush1.msra.mxu0 0.0
  %560 = vmatprep.subr.mxu0 0.0
  %561 = vmatpush1.msra.mxu0 0.0
  %562 = vmatprep.subr.mxu0 0.0
  %563 = vmatpush1.msra.mxu0 0.0
  %564 = vmatprep.subr.mxu0 0.0
  %565 = vmatpush1.msra.mxu0 0.0
  %566 = vmatprep.subr.mxu0 0.0
  %567 = vmatpush1.msra.mxu0 0.0
  %568 = vmatprep.subr.mxu0 0.0
  %569 = vmatpush1.msra.mxu0 0.0
  %570 = vmatprep.subr.mxu0 0.0
  %571 = vmatpush1.msra.mxu0 0.0
  %572 = vmatprep.subr.mxu0 0.0
  %573 = vmatpush1.msra.mxu0 0.0
  %574 = vmatprep.subr.mxu0 0.0
  %575 = vmatpush1.msra.mxu0 0.0
  %576 = vmatprep.subr.mxu0 %v431
  %577 = vmatpush1.msra.mxu0 %v429
  %578 = vmatprep.subr.mxu0 0.0
  %579 = vmatpush2.msra.mxu0 0.0
  %580 = vmatprep.subr.mxu0 0.0
  %581 = vmatpush2.msra.mxu0 0.0
  %582 = vmatprep.subr.mxu0 0.0
  %583 = vmatpush2.msra.mxu0 0.0
  %584 = vmatprep.subr.mxu0 0.0
  %585 = vmatpush2.msra.mxu0 0.0
  %586 = vmatprep.subr.mxu0 0.0
  %587 = vmatpush2.msra.mxu0 0.0
  %588 = vmatprep.subr.mxu0 0.0
  %589 = vmatpush2.msra.mxu0 0.0
  %590 = vmatprep.subr.mxu0 0.0
  %591 = vmatpush2.msra.mxu0 0.0
  %592 = vmatprep.subr.mxu0 0.0
  %593 = vmatpush2.msra.mxu0 0.0
  %594 = vmatprep.subr.mxu0 0.0
  %595 = vmatpush2.msra.mxu0 0.0
  %596 = vmatprep.subr.mxu0 0.0
  %597 = vmatpush2.msra.mxu0 0.0
  %598 = vmatprep.subr.mxu0 0.0
  %599 = vmatpush2.msra.mxu0 0.0
  %600 = vmatprep.subr.mxu0 0.0
  %601 = vmatpush2.msra.mxu0 0.0
  %602 = vmatprep.subr.mxu0 0.0
  %603 = vmatpush2.msra.mxu0 0.0
  %604 = vmatprep.subr.mxu0 0.0
  %605 = vmatpush2.msra.mxu0 0.0
  %606 = vmatprep.subr.mxu0 0.0
  %607 = vmatpush2.msra.mxu0 0.0
  %608 = vmatprep.subr.mxu0 0.0
  %609 = vmatpush2.msra.mxu0 0.0
  %610 = vmatprep.mubr.f32.mxu0 0.0
  %611 = vmatmul.mubr.f32.gmra.mxu0 %v401
  %v612 = vpop.f32.mrf.mxu0
  %v613 = vadd.f32 %v386, %v612
  %v614 = vpop.f32.mrf.mxu0
  %v615 = vadd.f32 %v390, %v614
  %616 = vmatprep.mubr.f32.mxu0 0.0
  %617 = vmatmul.mubr.f32.gmra.mxu0 %v404
  %v618 = vpop.f32.mrf.mxu0
  %v619 = vadd.f32 %v386, %v618
  %v620 = vpop.f32.mrf.mxu0
  %v621 = vadd.f32 %v390, %v620
  %622 = vmatprep.mubr.f32.mxu0 0.0
  %623 = vmatmul.mubr.f32.gmra.mxu0 %v407
  %v624 = vpop.f32.mrf.mxu0
  %v625 = vadd.f32 %v386, %v624
  %v626 = vpop.f32.mrf.mxu0
  %v627 = vadd.f32 %v390, %v626
  %628 = vmatprep.mubr.f32.mxu0 0.0
  %629 = vmatmul.mubr.f32.gmra.mxu0 %v410
  %v630 = vpop.f32.mrf.mxu0
  %v631 = vadd.f32 %v386, %v630
  %v632 = vpop.f32.mrf.mxu0
  %v633 = vadd.f32 %v390, %v632
  %634 = vmatprep.mubr.f32.mxu0 0.0
  %635 = vmatmul.mubr.f32.gmra.mxu0 %v413
  %v636 = vpop.f32.mrf.mxu0
  %v637 = vadd.f32 %v386, %v636
  %v638 = vpop.f32.mrf.mxu0
  %v639 = vadd.f32 %v390, %v638
  %640 = vmatprep.mubr.f32.mxu0 0.0
  %641 = vmatmul.mubr.f32.gmra.mxu0 %v416
  %v642 = vpop.f32.mrf.mxu0
  %v643 = vadd.f32 %v386, %v642
  %v644 = vpop.f32.mrf.mxu0
  %v645 = vadd.f32 %v390, %v644
  %646 = vmatprep.mubr.f32.mxu0 0.0
  %647 = vmatmul.mubr.f32.gmra.mxu0 %v419
  %v648 = vpop.f32.mrf.mxu0
  %v649 = vadd.f32 %v386, %v648
  %v650 = vpop.f32.mrf.mxu0
  %v651 = vadd.f32 %v390, %v650
  %652 = vmatprep.mubr.f32.mxu0 0.0
  %653 = vmatmul.mubr.f32.gmra.mxu0 %v422
  %v654 = vpop.f32.mrf.mxu0
  %v655 = vadd.f32 %v386, %v654
  %v656 = vpop.f32.mrf.mxu0
  %v657 = vadd.f32 %v390, %v656
  %658 = vdwg.mxu0
  %659 = vst [vmem:[#allocation3] sm:$0xff] %v500
  %660 = vst [vmem:[#allocation3 + $0x8] sm:$0xff] %v502
  %661 = vst [vmem:[#allocation3 + $0x10] sm:$0xff] %v613
  %662 = vst [vmem:[#allocation3 + $0x18] sm:$0xff] %v615
  %663 = vst [vmem:[#allocation3 + $0x20] sm:$0xff] %v506
  %664 = vst [vmem:[#allocation3 + $0x28] sm:$0xff] %v508
  %665 = vst [vmem:[#allocation3 + $0x30] sm:$0xff] %v619
  %666 = vst [vmem:[#allocation3 + $0x38] sm:$0xff] %v621
  %667 = vst [vmem:[#allocation3 + $0x40] sm:$0xff] %v512
  %668 = vst [vmem:[#allocation3 + $0x48] sm:$0xff] %v514
  %669 = vst [vmem:[#allocation3 + $0x50] sm:$0xff] %v625
  %670 = vst [vmem:[#allocation3 + $0x58] sm:$0xff] %v627
  %671 = vst [vmem:[#allocation3 + $0x60] sm:$0xff] %v518
  %672 = vst [vmem:[#allocation3 + $0x68] sm:$0xff] %v520
  %673 = vst [vmem:[#allocation3 + $0x70] sm:$0xff] %v631
  %674 = vst [vmem:[#allocation3 + $0x78] sm:$0xff] %v633
  %675 = vst [vmem:[#allocation3 + $0x80] sm:$0xff] %v524
  %676 = vst [vmem:[#allocation3 + $0x88] sm:$0xff] %v526
  %677 = vst [vmem:[#allocation3 + $0x90] sm:$0xff] %v637
  %678 = vst [vmem:[#allocation3 + $0x98] sm:$0xff] %v639
  %679 = vst [vmem:[#allocation3 + $0xa0] sm:$0xff] %v530
  %680 = vst [vmem:[#allocation3 + $0xa8] sm:$0xff] %v532
  %681 = vst [vmem:[#allocation3 + $0xb0] sm:$0xff] %v643
  %682 = vst [vmem:[#allocation3 + $0xb8] sm:$0xff] %v645
  %683 = vst [vmem:[#allocation3 + $0xc0] sm:$0xff] %v536
  %684 = vst [vmem:[#allocation3 + $0xc8] sm:$0xff] %v538
  %685 = vst [vmem:[#allocation3 + $0xd0] sm:$0xff] %v649
  %686 = vst [vmem:[#allocation3 + $0xd8] sm:$0xff] %v651
  %687 = vst [vmem:[#allocation3 + $0xe0] sm:$0xff] %v542
  %688 = vst [vmem:[#allocation3 + $0xe8] sm:$0xff] %v544
  %689 = vst [vmem:[#allocation3 + $0xf0] sm:$0xff] %v655
  %690 = vst [vmem:[#allocation3 + $0xf8] sm:$0xff] %v657
  %v691 = vld [vmem:[%s3] sm:$0xff]
  %v692 = vld [vmem:[%s3 + $0x8] sm:$0xff]
  %v693 = vld [vmem:[%s3 + $0x10] sm:$0xff]
  %v694 = vld [vmem:[%s3 + $0x18] sm:$0xff]
  %v695 = vld [vmem:[%s3 + $0x20] sm:$0xff]
  %v696 = vld [vmem:[%s3 + $0x28] sm:$0xff]
  %v697 = vld [vmem:[%s3 + $0x30] sm:$0xff]
  %v698 = vld [vmem:[%s3 + $0x38] sm:$0xff]
  %v699 = vld [vmem:[%s3 + $0x40] sm:$0xff]
  %v700 = vld [vmem:[%s3 + $0x48] sm:$0xff]
  %v701 = vld [vmem:[%s3 + $0x50] sm:$0xff]
  %v702 = vld [vmem:[%s3 + $0x58] sm:$0xff]
  %v703 = vld [vmem:[%s3 + $0x60] sm:$0xff]
  %v704 = vld [vmem:[%s3 + $0x68] sm:$0xff]
  %v705 = vld [vmem:[%s3 + $0x70] sm:$0xff]
  %v706 = vld [vmem:[%s3 + $0x78] sm:$0xff]
  %v707 = vld [vmem:[%s3 + $0x80] sm:$0xff]
  %v708 = vld [vmem:[%s3 + $0x88] sm:$0xff]
  %v709 = vld [vmem:[%s3 + $0x90] sm:$0xff]
  %v710 = vld [vmem:[%s3 + $0x98] sm:$0xff]
  %v711 = vld [vmem:[%s3 + $0xa0] sm:$0xff]
  %v712 = vld [vmem:[%s3 + $0xa8] sm:$0xff]
  %v713 = vld [vmem:[%s3 + $0xb0] sm:$0xff]
  %v714 = vld [vmem:[%s3 + $0xb8] sm:$0xff]
  %v715 = vld [vmem:[%s3 + $0xc0] sm:$0xff]
  %v716 = vld [vmem:[%s3 + $0xc8] sm:$0xff]
  %v717 = vld [vmem:[%s3 + $0xd0] sm:$0xff]
  %v718 = vld [vmem:[%s3 + $0xd8] sm:$0xff]
  %v719 = vld [vmem:[%s3 + $0xe0] sm:$0xff]
  %v720 = vld [vmem:[%s3 + $0xe8] sm:$0xff]
  %v721 = vld [vmem:[%s3 + $0xf0] sm:$0xff]
  %v722 = vld [vmem:[%s3 + $0xf8] sm:$0xff]
  %v723 = vld [vmem:[%s3 + $0x100] sm:$0xff]
  %v724 = vld [vmem:[%s3 + $0x108] sm:$0xff]
  %v725 = vld [vmem:[%s3 + $0x110] sm:$0xff]
  %v726 = vld [vmem:[%s3 + $0x118] sm:$0xff]
  %v727 = vld [vmem:[%s3 + $0x120] sm:$0xff]
  %v728 = vld [vmem:[%s3 + $0x128] sm:$0xff]
  %v729 = vld [vmem:[%s3 + $0x130] sm:$0xff]
  %v730 = vld [vmem:[%s3 + $0x138] sm:$0xff]
  %v731 = vld [vmem:[%s3 + $0x140] sm:$0xff]
  %v732 = vld [vmem:[%s3 + $0x148] sm:$0xff]
  %v733 = vld [vmem:[%s3 + $0x150] sm:$0xff]
  %v734 = vld [vmem:[%s3 + $0x158] sm:$0xff]
  %v735 = vld [vmem:[%s3 + $0x160] sm:$0xff]
  %v736 = vld [vmem:[%s3 + $0x168] sm:$0xff]
  %v737 = vld [vmem:[%s3 + $0x170] sm:$0xff]
  %v738 = vld [vmem:[%s3 + $0x178] sm:$0xff]
  %v739 = vld [vmem:[%s3 + $0x180] sm:$0xff]
  %v740 = vld [vmem:[%s3 + $0x188] sm:$0xff]
  %v741 = vld [vmem:[%s3 + $0x190] sm:$0xff]
  %v742 = vld [vmem:[%s3 + $0x198] sm:$0xff]
  %v743 = vld [vmem:[%s3 + $0x1a0] sm:$0xff]
  %v744 = vld [vmem:[%s3 + $0x1a8] sm:$0xff]
  %v745 = vld [vmem:[%s3 + $0x1b0] sm:$0xff]
  %v746 = vld [vmem:[%s3 + $0x1b8] sm:$0xff]
  %v747 = vld [vmem:[%s3 + $0x1c0] sm:$0xff]
  %v748 = vld [vmem:[%s3 + $0x1c8] sm:$0xff]
  %v749 = vld [vmem:[%s3 + $0x1d0] sm:$0xff]
  %v750 = vld [vmem:[%s3 + $0x1d8] sm:$0xff]
  %v751 = vld [vmem:[%s3 + $0x1e0] sm:$0xff]
  %v752 = vld [vmem:[%s3 + $0x1e8] sm:$0xff]
  %v753 = vld [vmem:[%s3 + $0x1f0] sm:$0xff]
  %v754 = vld [vmem:[%s3 + $0x1f8] sm:$0xff]
  %v755 = vld [vmem:[%s6] sm:$0xff]
  %v756 = vld [vmem:[%s6 + $0x8] sm:$0xff]
  %v757 = vld [vmem:[%s6 + $0x10] sm:$0xff]
  %v758 = vld [vmem:[%s6 + $0x18] sm:$0xff]
  %v759 = vld [vmem:[%s6 + $0x20] sm:$0xff]
  %v760 = vld [vmem:[%s6 + $0x28] sm:$0xff]
  %v761 = vld [vmem:[%s6 + $0x30] sm:$0xff]
  %v762 = vld [vmem:[%s6 + $0x38] sm:$0xff]
  %v763 = vld [vmem:[%s6 + $0x40] sm:$0xff]
  %v764 = vld [vmem:[%s6 + $0x48] sm:$0xff]
  %v765 = vld [vmem:[%s6 + $0x50] sm:$0xff]
  %v766 = vld [vmem:[%s6 + $0x58] sm:$0xff]
  %v767 = vld [vmem:[%s6 + $0x60] sm:$0xff]
  %v768 = vld [vmem:[%s6 + $0x68] sm:$0xff]
  %v769 = vld [vmem:[%s6 + $0x70] sm:$0xff]
  %v770 = vld [vmem:[%s6 + $0x78] sm:$0xff]
  %v771 = vld [vmem:[%s6 + $0x80] sm:$0xff]
  %v772 = vld [vmem:[%s6 + $0x88] sm:$0xff]
  %v773 = vld [vmem:[%s6 + $0x90] sm:$0xff]
  %v774 = vld [vmem:[%s6 + $0x98] sm:$0xff]
  %v775 = vld [vmem:[%s6 + $0xa0] sm:$0xff]
  %v776 = vld [vmem:[%s6 + $0xa8] sm:$0xff]
  %v777 = vld [vmem:[%s6 + $0xb0] sm:$0xff]
  %v778 = vld [vmem:[%s6 + $0xb8] sm:$0xff]
  %v779 = vld [vmem:[%s6 + $0xc0] sm:$0xff]
  %v780 = vld [vmem:[%s6 + $0xc8] sm:$0xff]
  %v781 = vld [vmem:[%s6 + $0xd0] sm:$0xff]
  %v782 = vld [vmem:[%s6 + $0xd8] sm:$0xff]
  %v783 = vld [vmem:[%s6 + $0xe0] sm:$0xff]
  %v784 = vld [vmem:[%s6 + $0xe8] sm:$0xff]
  %v785 = vld [vmem:[%s6 + $0xf0] sm:$0xff]
  %v786 = vld [vmem:[%s6 + $0xf8] sm:$0xff]
  %v787 = vld [vmem:[%s6 + $0x100] sm:$0xff]
  %v788 = vld [vmem:[%s6 + $0x108] sm:$0xff]
  %v789 = vld [vmem:[%s6 + $0x110] sm:$0xff]
  %v790 = vld [vmem:[%s6 + $0x118] sm:$0xff]
  %v791 = vld [vmem:[%s6 + $0x120] sm:$0xff]
  %v792 = vld [vmem:[%s6 + $0x128] sm:$0xff]
  %v793 = vld [vmem:[%s6 + $0x130] sm:$0xff]
  %v794 = vld [vmem:[%s6 + $0x138] sm:$0xff]
  %v795 = vld [vmem:[%s6 + $0x140] sm:$0xff]
  %v796 = vld [vmem:[%s6 + $0x148] sm:$0xff]
  %v797 = vld [vmem:[%s6 + $0x150] sm:$0xff]
  %v798 = vld [vmem:[%s6 + $0x158] sm:$0xff]
  %v799 = vld [vmem:[%s6 + $0x160] sm:$0xff]
  %v800 = vld [vmem:[%s6 + $0x168] sm:$0xff]
  %v801 = vld [vmem:[%s6 + $0x170] sm:$0xff]
  %v802 = vld [vmem:[%s6 + $0x178] sm:$0xff]
  %v803 = vld [vmem:[%s6 + $0x180] sm:$0xff]
  %v804 = vld [vmem:[%s6 + $0x188] sm:$0xff]
  %v805 = vld [vmem:[%s6 + $0x190] sm:$0xff]
  %v806 = vld [vmem:[%s6 + $0x198] sm:$0xff]
  %v807 = vld [vmem:[%s6 + $0x1a0] sm:$0xff]
  %v808 = vld [vmem:[%s6 + $0x1a8] sm:$0xff]
  %v809 = vld [vmem:[%s6 + $0x1b0] sm:$0xff]
  %v810 = vld [vmem:[%s6 + $0x1b8] sm:$0xff]
  %v811 = vld [vmem:[%s6 + $0x1c0] sm:$0xff]
  %v812 = vld [vmem:[%s6 + $0x1c8] sm:$0xff]
  %v813 = vld [vmem:[%s6 + $0x1d0] sm:$0xff]
  %v814 = vld [vmem:[%s6 + $0x1d8] sm:$0xff]
  %v815 = vld [vmem:[%s6 + $0x1e0] sm:$0xff]
  %v816 = vld [vmem:[%s6 + $0x1e8] sm:$0xff]
  %v817 = vld [vmem:[%s6 + $0x1f0] sm:$0xff]
  %v818 = vld [vmem:[%s6 + $0x1f8] sm:$0xff]
  %s819 = smul.u32 0, 4
  %s820 = smul.addr %s819, 8
  %s821 = scalar_lea.vmem [#allocation2], %s820
  %v822 = vld [vmem:[%s821] sm:$0xff]
  %v823 = vld [vmem:[%s821 + $0x8] sm:$0xff]
  %v824 = vld [vmem:[%s821 + $0x10] sm:$0xff]
  %v825 = vld [vmem:[%s821 + $0x18] sm:$0xff]
  %826 = vmatprep.subr.mxu0 %v752
  %827 = vmatpush1.msra.mxu0 %v751
  %828 = vmatprep.subr.mxu0 %v748
  %829 = vmatpush1.msra.mxu0 %v747
  %830 = vmatprep.subr.mxu0 %v744
  %831 = vmatpush1.msra.mxu0 %v743
  %832 = vmatprep.subr.mxu0 %v740
  %833 = vmatpush1.msra.mxu0 %v739
  %834 = vmatprep.subr.mxu0 %v736
  %835 = vmatpush1.msra.mxu0 %v735
  %836 = vmatprep.subr.mxu0 %v732
  %837 = vmatpush1.msra.mxu0 %v731
  %838 = vmatprep.subr.mxu0 %v728
  %839 = vmatpush1.msra.mxu0 %v727
  %840 = vmatprep.subr.mxu0 %v724
  %841 = vmatpush1.msra.mxu0 %v723
  %842 = vmatprep.subr.mxu0 %v720
  %843 = vmatpush1.msra.mxu0 %v719
  %844 = vmatprep.subr.mxu0 %v716
  %845 = vmatpush1.msra.mxu0 %v715
  %846 = vmatprep.subr.mxu0 %v712
  %847 = vmatpush1.msra.mxu0 %v711
  %848 = vmatprep.subr.mxu0 %v708
  %849 = vmatpush1.msra.mxu0 %v707
  %850 = vmatprep.subr.mxu0 %v704
  %851 = vmatpush1.msra.mxu0 %v703
  %852 = vmatprep.subr.mxu0 %v700
  %853 = vmatpush1.msra.mxu0 %v699
  %854 = vmatprep.subr.mxu0 %v696
  %855 = vmatpush1.msra.mxu0 %v695
  %856 = vmatprep.subr.mxu0 %v692
  %857 = vmatpush1.msra.mxu0 %v691
  %858 = vmatprep.subr.mxu0 0.0
  %859 = vmatpush2.msra.mxu0 0.0
  %860 = vmatprep.subr.mxu0 0.0
  %861 = vmatpush2.msra.mxu0 0.0
  %862 = vmatprep.subr.mxu0 0.0
  %863 = vmatpush2.msra.mxu0 0.0
  %864 = vmatprep.subr.mxu0 0.0
  %865 = vmatpush2.msra.mxu0 0.0
  %866 = vmatprep.subr.mxu0 0.0
  %867 = vmatpush2.msra.mxu0 0.0
  %868 = vmatprep.subr.mxu0 0.0
  %869 = vmatpush2.msra.mxu0 0.0
  %870 = vmatprep.subr.mxu0 0.0
  %871 = vmatpush2.msra.mxu0 0.0
  %872 = vmatprep.subr.mxu0 0.0
  %873 = vmatpush2.msra.mxu0 0.0
  %874 = vmatprep.subr.mxu0 0.0
  %875 = vmatpush2.msra.mxu0 0.0
  %876 = vmatprep.subr.mxu0 0.0
  %877 = vmatpush2.msra.mxu0 0.0
  %878 = vmatprep.subr.mxu0 0.0
  %879 = vmatpush2.msra.mxu0 0.0
  %880 = vmatprep.subr.mxu0 0.0
  %881 = vmatpush2.msra.mxu0 0.0
  %882 = vmatprep.subr.mxu0 0.0
  %883 = vmatpush2.msra.mxu0 0.0
  %884 = vmatprep.subr.mxu0 0.0
  %885 = vmatpush2.msra.mxu0 0.0
  %886 = vmatprep.subr.mxu0 0.0
  %887 = vmatpush2.msra.mxu0 0.0
  %888 = vmatprep.subr.mxu0 0.0
  %889 = vmatpush2.msra.mxu0 0.0
  %890 = vmatprep.mubr.f32.mxu0 0.0
  %891 = vmatmul.mubr.f32.gmra.mxu0 0.0
  %v892 = vpop.f32.mrf.mxu0
  %v893 = vadd.f32 0.0, %v892
  %v894 = vpop.f32.mrf.mxu0
  %v895 = vadd.f32 0.0, %v894
  %896 = vdwg.mxu0
  %897 = vmatprep.subr.mxu0 %v754
  %898 = vmatpush1.msra.mxu0 %v753
  %899 = vmatprep.subr.mxu0 %v750
  %900 = vmatpush1.msra.mxu0 %v749
  %901 = vmatprep.subr.mxu0 %v746
  %902 = vmatpush1.msra.mxu0 %v745
  %903 = vmatprep.subr.mxu0 %v742
  %904 = vmatpush1.msra.mxu0 %v741
  %905 = vmatprep.subr.mxu0 %v738
  %906 = vmatpush1.msra.mxu0 %v737
  %907 = vmatprep.subr.mxu0 %v734
  %908 = vmatpush1.msra.mxu0 %v733
  %909 = vmatprep.subr.mxu0 %v730
  %910 = vmatpush1.msra.mxu0 %v729
  %911 = vmatprep.subr.mxu0 %v726
  %912 = vmatpush1.msra.mxu0 %v725
  %913 = vmatprep.subr.mxu0 %v722
  %914 = vmatpush1.msra.mxu0 %v721
  %915 = vmatprep.subr.mxu0 %v718
  %916 = vmatpush1.msra.mxu0 %v717
  %917 = vmatprep.subr.mxu0 %v714
  %918 = vmatpush1.msra.mxu0 %v713
  %919 = vmatprep.subr.mxu0 %v710
  %920 = vmatpush1.msra.mxu0 %v709
  %921 = vmatprep.subr.mxu0 %v706
  %922 = vmatpush1.msra.mxu0 %v705
  %923 = vmatprep.subr.mxu0 %v702
  %924 = vmatpush1.msra.mxu0 %v701
  %925 = vmatprep.subr.mxu0 %v698
  %926 = vmatpush1.msra.mxu0 %v697
  %927 = vmatprep.subr.mxu0 %v694
  %928 = vmatpush1.msra.mxu0 %v693
  %929 = vmatprep.subr.mxu0 0.0
  %930 = vmatpush2.msra.mxu0 0.0
  %931 = vmatprep.subr.mxu0 0.0
  %932 = vmatpush2.msra.mxu0 0.0
  %933 = vmatprep.subr.mxu0 0.0
  %934 = vmatpush2.msra.mxu0 0.0
  %935 = vmatprep.subr.mxu0 0.0
  %936 = vmatpush2.msra.mxu0 0.0
  %937 = vmatprep.subr.mxu0 0.0
  %938 = vmatpush2.msra.mxu0 0.0
  %939 = vmatprep.subr.mxu0 0.0
  %940 = vmatpush2.msra.mxu0 0.0
  %941 = vmatprep.subr.mxu0 0.0
  %942 = vmatpush2.msra.mxu0 0.0
  %943 = vmatprep.subr.mxu0 0.0
  %944 = vmatpush2.msra.mxu0 0.0
  %945 = vmatprep.subr.mxu0 0.0
  %946 = vmatpush2.msra.mxu0 0.0
  %947 = vmatprep.subr.mxu0 0.0
  %948 = vmatpush2.msra.mxu0 0.0
  %949 = vmatprep.subr.mxu0 0.0
  %950 = vmatpush2.msra.mxu0 0.0
  %951 = vmatprep.subr.mxu0 0.0
  %952 = vmatpush2.msra.mxu0 0.0
  %953 = vmatprep.subr.mxu0 0.0
  %954 = vmatpush2.msra.mxu0 0.0
  %955 = vmatprep.subr.mxu0 0.0
  %956 = vmatpush2.msra.mxu0 0.0
  %957 = vmatprep.subr.mxu0 0.0
  %958 = vmatpush2.msra.mxu0 0.0
  %959 = vmatprep.subr.mxu0 0.0
  %960 = vmatpush2.msra.mxu0 0.0
  %961 = vmatprep.mubr.f32.mxu0 0.0
  %962 = vmatmul.mubr.f32.gmra.mxu0 0.0
  %v963 = vpop.f32.mrf.mxu0
  %v964 = vadd.f32 0.0, %v963
  %v965 = vpop.f32.mrf.mxu0
  %v966 = vadd.f32 0.0, %v965
  %967 = vdwg.mxu0
  %v968 = vadd.f32 %v822, %v893
  %v969 = vadd.f32 %v823, %v895
  %v970 = vadd.f32 %v824, %v964
  %v971 = vadd.f32 %v825, %v966
  %v972 = vmul.f32 %v968, 0.5
  %v973 = vtanh.pop %v972
  %v974 = vadd.f32 %v973, 1.0
  %v975 = vmul.f32 %v974, 0.5
  %v976 = vmul.f32 %v969, 0.5
  %v977 = vtanh.pop %v976
  %v978 = vadd.f32 %v977, 1.0
  %v979 = vmul.f32 %v978, 0.5
  %v980 = vtanh.pop %v970
  %v981 = vmul.f32 %v971, 0.5
  %v982 = vtanh.pop %v981
  %v983 = vadd.f32 %v982, 1.0
  %v984 = vmul.f32 %v983, 0.5
  %v985 = vmul.f32 %v979, 0.0
  %v986 = vmul.f32 %v975, %v980
  %v987 = vadd.f32 %v985, %v986
  %v988 = vtanh.pop %v987
  %v989 = vmul.f32 %v984, %v988
  %s990 = smul.u32 1, 4
  %s991 = smul.addr %s990, 8
  %s992 = scalar_lea.vmem [#allocation2], %s991
  %v993 = vld [vmem:[%s992] sm:$0xff]
  %v994 = vld [vmem:[%s992 + $0x8] sm:$0xff]
  %v995 = vld [vmem:[%s992 + $0x10] sm:$0xff]
  %v996 = vld [vmem:[%s992 + $0x18] sm:$0xff]
  %997 = vmatprep.subr.mxu0 %v752
  %998 = vmatpush1.msra.mxu0 %v751
  %999 = vmatprep.subr.mxu0 %v748
  %1000 = vmatpush1.msra.mxu0 %v747
  %1001 = vmatprep.subr.mxu0 %v744
  %1002 = vmatpush1.msra.mxu0 %v743
  %1003 = vmatprep.subr.mxu0 %v740
  %1004 = vmatpush1.msra.mxu0 %v739
  %1005 = vmatprep.subr.mxu0 %v736
  %1006 = vmatpush1.msra.mxu0 %v735
  %1007 = vmatprep.subr.mxu0 %v732
  %1008 = vmatpush1.msra.mxu0 %v731
  %1009 = vmatprep.subr.mxu0 %v728
  %1010 = vmatpush1.msra.mxu0 %v727
  %1011 = vmatprep.subr.mxu0 %v724
  %1012 = vmatpush1.msra.mxu0 %v723
  %1013 = vmatprep.subr.mxu0 %v720
  %1014 = vmatpush1.msra.mxu0 %v719
  %1015 = vmatprep.subr.mxu0 %v716
  %1016 = vmatpush1.msra.mxu0 %v715
  %1017 = vmatprep.subr.mxu0 %v712
  %1018 = vmatpush1.msra.mxu0 %v711
  %1019 = vmatprep.subr.mxu0 %v708
  %1020 = vmatpush1.msra.mxu0 %v707
  %1021 = vmatprep.subr.mxu0 %v704
  %1022 = vmatpush1.msra.mxu0 %v703
  %1023 = vmatprep.subr.mxu0 %v700
  %1024 = vmatpush1.msra.mxu0 %v699
  %1025 = vmatprep.subr.mxu0 %v696
  %1026 = vmatpush1.msra.mxu0 %v695
  %1027 = vmatprep.subr.mxu0 %v692
  %1028 = vmatpush1.msra.mxu0 %v691
  %1029 = vmatprep.subr.mxu0 0.0
  %1030 = vmatpush2.msra.mxu0 0.0
  %1031 = vmatprep.subr.mxu0 0.0
  %1032 = vmatpush2.msra.mxu0 0.0
  %1033 = vmatprep.subr.mxu0 0.0
  %1034 = vmatpush2.msra.mxu0 0.0
  %1035 = vmatprep.subr.mxu0 0.0
  %1036 = vmatpush2.msra.mxu0 0.0
  %1037 = vmatprep.subr.mxu0 0.0
  %1038 = vmatpush2.msra.mxu0 0.0
  %1039 = vmatprep.subr.mxu0 0.0
  %1040 = vmatpush2.msra.mxu0 0.0
  %1041 = vmatprep.subr.mxu0 0.0
  %1042 = vmatpush2.msra.mxu0 0.0
  %1043 = vmatprep.subr.mxu0 0.0
  %1044 = vmatpush2.msra.mxu0 0.0
  %1045 = vmatprep.subr.mxu0 0.0
  %1046 = vmatpush2.msra.mxu0 0.0
  %1047 = vmatprep.subr.mxu0 0.0
  %1048 = vmatpush2.msra.mxu0 0.0
  %1049 = vmatprep.subr.mxu0 0.0
  %1050 = vmatpush2.msra.mxu0 0.0
  %1051 = vmatprep.subr.mxu0 0.0
  %1052 = vmatpush2.msra.mxu0 0.0
  %1053 = vmatprep.subr.mxu0 0.0
  %1054 = vmatpush2.msra.mxu0 0.0
  %1055 = vmatprep.subr.mxu0 0.0
  %1056 = vmatpush2.msra.mxu0 0.0
  %1057 = vmatprep.subr.mxu0 0.0
  %1058 = vmatpush2.msra.mxu0 0.0
  %1059 = vmatprep.subr.mxu0 0.0
  %1060 = vmatpush2.msra.mxu0 0.0
  %1061 = vmatprep.mubr.f32.mxu0 0.0
  %1062 = vmatmul.mubr.f32.gmra.mxu0 %v989
  %v1063 = vpop.f32.mrf.mxu0
  %v1064 = vadd.f32 0.0, %v1063
  %v1065 = vpop.f32.mrf.mxu0
  %v1066 = vadd.f32 0.0, %v1065
  %1067 = vdwg.mxu0
  %1068 = vmatprep.subr.mxu0 %v754
  %1069 = vmatpush1.msra.mxu0 %v753
  %1070 = vmatprep.subr.mxu0 %v750
  %1071 = vmatpush1.msra.mxu0 %v749
  %1072 = vmatprep.subr.mxu0 %v746
  %1073 = vmatpush1.msra.mxu0 %v745
  %1074 = vmatprep.subr.mxu0 %v742
  %1075 = vmatpush1.msra.mxu0 %v741
  %1076 = vmatprep.subr.mxu0 %v738
  %1077 = vmatpush1.msra.mxu0 %v737
  %1078 = vmatprep.subr.mxu0 %v734
  %1079 = vmatpush1.msra.mxu0 %v733
  %1080 = vmatprep.subr.mxu0 %v730
  %1081 = vmatpush1.msra.mxu0 %v729
  %1082 = vmatprep.subr.mxu0 %v726
  %1083 = vmatpush1.msra.mxu0 %v725
  %1084 = vmatprep.subr.mxu0 %v722
  %1085 = vmatpush1.msra.mxu0 %v721
  %1086 = vmatprep.subr.mxu0 %v718
  %1087 = vmatpush1.msra.mxu0 %v717
  %1088 = vmatprep.subr.mxu0 %v714
  %1089 = vmatpush1.msra.mxu0 %v713
  %1090 = vmatprep.subr.mxu0 %v710
  %1091 = vmatpush1.msra.mxu0 %v709
  %1092 = vmatprep.subr.mxu0 %v706
  %1093 = vmatpush1.msra.mxu0 %v705
  %1094 = vmatprep.subr.mxu0 %v702
  %1095 = vmatpush1.msra.mxu0 %v701
  %1096 = vmatprep.subr.mxu0 %v698
  %1097 = vmatpush1.msra.mxu0 %v697
  %1098 = vmatprep.subr.mxu0 %v694
  %1099 = vmatpush1.msra.mxu0 %v693
  %1100 = vmatprep.subr.mxu0 0.0
  %1101 = vmatpush2.msra.mxu0 0.0
  %1102 = vmatprep.subr.mxu0 0.0
  %1103 = vmatpush2.msra.mxu0 0.0
  %1104 = vmatprep.subr.mxu0 0.0
  %1105 = vmatpush2.msra.mxu0 0.0
  %1106 = vmatprep.subr.mxu0 0.0
  %1107 = vmatpush2.msra.mxu0 0.0
  %1108 = vmatprep.subr.mxu0 0.0
  %1109 = vmatpush2.msra.mxu0 0.0
  %1110 = vmatprep.subr.mxu0 0.0
  %1111 = vmatpush2.msra.mxu0 0.0
  %1112 = vmatprep.subr.mxu0 0.0
  %1113 = vmatpush2.msra.mxu0 0.0
  %1114 = vmatprep.subr.mxu0 0.0
  %1115 = vmatpush2.msra.mxu0 0.0
  %1116 = vmatprep.subr.mxu0 0.0
  %1117 = vmatpush2.msra.mxu0 0.0
  %1118 = vmatprep.subr.mxu0 0.0
  %1119 = vmatpush2.msra.mxu0 0.0
  %1120 = vmatprep.subr.mxu0 0.0
  %1121 = vmatpush2.msra.mxu0 0.0
  %1122 = vmatprep.subr.mxu0 0.0
  %1123 = vmatpush2.msra.mxu0 0.0
  %1124 = vmatprep.subr.mxu0 0.0
  %1125 = vmatpush2.msra.mxu0 0.0
  %1126 = vmatprep.subr.mxu0 0.0
  %1127 = vmatpush2.msra.mxu0 0.0
  %1128 = vmatprep.subr.mxu0 0.0
  %1129 = vmatpush2.msra.mxu0 0.0
  %1130 = vmatprep.subr.mxu0 0.0
  %1131 = vmatpush2.msra.mxu0 0.0
  %1132 = vmatprep.mubr.f32.mxu0 0.0
  %1133 = vmatmul.mubr.f32.gmra.mxu0 %v989
  %v1134 = vpop.f32.mrf.mxu0
  %v1135 = vadd.f32 0.0, %v1134
  %v1136 = vpop.f32.mrf.mxu0
  %v1137 = vadd.f32 0.0, %v1136
  %1138 = vdwg.mxu0
  %v1139 = vadd.f32 %v993, %v1064
  %v1140 = vadd.f32 %v994, %v1066
  %v1141 = vadd.f32 %v995, %v1135
  %v1142 = vadd.f32 %v996, %v1137
  %v1143 = vmul.f32 %v1139, 0.5
  %v1144 = vtanh.pop %v1143
  %v1145 = vadd.f32 %v1144, 1.0
  %v1146 = vmul.f32 %v1145, 0.5
  %v1147 = vmul.f32 %v1140, 0.5
  %v1148 = vtanh.pop %v1147
  %v1149 = vadd.f32 %v1148, 1.0
  %v1150 = vmul.f32 %v1149, 0.5
  %v1151 = vtanh.pop %v1141
  %v1152 = vmul.f32 %v1142, 0.5
  %v1153 = vtanh.pop %v1152
  %v1154 = vadd.f32 %v1153, 1.0
  %v1155 = vmul.f32 %v1154, 0.5
  %v1156 = vmul.f32 %v1150, %v987
  %v1157 = vmul.f32 %v1146, %v1151
  %v1158 = vadd.f32 %v1156, %v1157
  %v1159 = vtanh.pop %v1158
  %v1160 = vmul.f32 %v1155, %v1159
  %s1161 = smul.u32 2, 4
  %s1162 = smul.addr %s1161, 8
  %s1163 = scalar_lea.vmem [#allocation2], %s1162
  %v1164 = vld [vmem:[%s1163] sm:$0xff]
  %v1165 = vld [vmem:[%s1163 + $0x8] sm:$0xff]
  %v1166 = vld [vmem:[%s1163 + $0x10] sm:$0xff]
  %v1167 = vld [vmem:[%s1163 + $0x18] sm:$0xff]
  %1168 = vmatprep.subr.mxu0 %v752
  %1169 = vmatpush1.msra.mxu0 %v751
  %1170 = vmatprep.subr.mxu0 %v748
  %1171 = vmatpush1.msra.mxu0 %v747
  %1172 = vmatprep.subr.mxu0 %v744
  %1173 = vmatpush1.msra.mxu0 %v743
  %1174 = vmatprep.subr.mxu0 %v740
  %1175 = vmatpush1.msra.mxu0 %v739
  %1176 = vmatprep.subr.mxu0 %v736
  %1177 = vmatpush1.msra.mxu0 %v735
  %1178 = vmatprep.subr.mxu0 %v732
  %1179 = vmatpush1.msra.mxu0 %v731
  %1180 = vmatprep.subr.mxu0 %v728
  %1181 = vmatpush1.msra.mxu0 %v727
  %1182 = vmatprep.subr.mxu0 %v724
  %1183 = vmatpush1.msra.mxu0 %v723
  %1184 = vmatprep.subr.mxu0 %v720
  %1185 = vmatpush1.msra.mxu0 %v719
  %1186 = vmatprep.subr.mxu0 %v716
  %1187 = vmatpush1.msra.mxu0 %v715
  %1188 = vmatprep.subr.mxu0 %v712
  %1189 = vmatpush1.msra.mxu0 %v711
  %1190 = vmatprep.subr.mxu0 %v708
  %1191 = vmatpush1.msra.mxu0 %v707
  %1192 = vmatprep.subr.mxu0 %v704
  %1193 = vmatpush1.msra.mxu0 %v703
  %1194 = vmatprep.subr.mxu0 %v700
  %1195 = vmatpush1.msra.mxu0 %v699
  %1196 = vmatprep.subr.mxu0 %v696
  %1197 = vmatpush1.msra.mxu0 %v695
  %1198 = vmatprep.subr.mxu0 %v692
  %1199 = vmatpush1.msra.mxu0 %v691
  %1200 = vmatprep.subr.mxu0 0.0
  %1201 = vmatpush2.msra.mxu0 0.0
  %1202 = vmatprep.subr.mxu0 0.0
  %1203 = vmatpush2.msra.mxu0 0.0
  %1204 = vmatprep.subr.mxu0 0.0
  %1205 = vmatpush2.msra.mxu0 0.0
  %1206 = vmatprep.subr.mxu0 0.0
  %1207 = vmatpush2.msra.mxu0 0.0
  %1208 = vmatprep.subr.mxu0 0.0
  %1209 = vmatpush2.msra.mxu0 0.0
  %1210 = vmatprep.subr.mxu0 0.0
  %1211 = vmatpush2.msra.mxu0 0.0
  %1212 = vmatprep.subr.mxu0 0.0
  %1213 = vmatpush2.msra.mxu0 0.0
  %1214 = vmatprep.subr.mxu0 0.0
  %1215 = vmatpush2.msra.mxu0 0.0
  %1216 = vmatprep.subr.mxu0 0.0
  %1217 = vmatpush2.msra.mxu0 0.0
  %1218 = vmatprep.subr.mxu0 0.0
  %1219 = vmatpush2.msra.mxu0 0.0
  %1220 = vmatprep.subr.mxu0 0.0
  %1221 = vmatpush2.msra.mxu0 0.0
  %1222 = vmatprep.subr.mxu0 0.0
  %1223 = vmatpush2.msra.mxu0 0.0
  %1224 = vmatprep.subr.mxu0 0.0
  %1225 = vmatpush2.msra.mxu0 0.0
  %1226 = vmatprep.subr.mxu0 0.0
  %1227 = vmatpush2.msra.mxu0 0.0
  %1228 = vmatprep.subr.mxu0 0.0
  %1229 = vmatpush2.msra.mxu0 0.0
  %1230 = vmatprep.subr.mxu0 0.0
  %1231 = vmatpush2.msra.mxu0 0.0
  %1232 = vmatprep.mubr.f32.mxu0 0.0
  %1233 = vmatmul.mubr.f32.gmra.mxu0 %v1160
  %v1234 = vpop.f32.mrf.mxu0
  %v1235 = vadd.f32 0.0, %v1234
  %v1236 = vpop.f32.mrf.mxu0
  %v1237 = vadd.f32 0.0, %v1236
  %1238 = vdwg.mxu0
  %1239 = vmatprep.subr.mxu0 %v754
  %1240 = vmatpush1.msra.mxu0 %v753
  %1241 = vmatprep.subr.mxu0 %v750
  %1242 = vmatpush1.msra.mxu0 %v749
  %1243 = vmatprep.subr.mxu0 %v746
  %1244 = vmatpush1.msra.mxu0 %v745
  %1245 = vmatprep.subr.mxu0 %v742
  %1246 = vmatpush1.msra.mxu0 %v741
  %1247 = vmatprep.subr.mxu0 %v738
  %1248 = vmatpush1.msra.mxu0 %v737
  %1249 = vmatprep.subr.mxu0 %v734
  %1250 = vmatpush1.msra.mxu0 %v733
  %1251 = vmatprep.subr.mxu0 %v730
  %1252 = vmatpush1.msra.mxu0 %v729
  %1253 = vmatprep.subr.mxu0 %v726
  %1254 = vmatpush1.msra.mxu0 %v725
  %1255 = vmatprep.subr.mxu0 %v722
  %1256 = vmatpush1.msra.mxu0 %v721
  %1257 = vmatprep.subr.mxu0 %v718
  %1258 = vmatpush1.msra.mxu0 %v717
  %1259 = vmatprep.subr.mxu0 %v714
  %1260 = vmatpush1.msra.mxu0 %v713
  %1261 = vmatprep.subr.mxu0 %v710
  %1262 = vmatpush1.msra.mxu0 %v709
  %1263 = vmatprep.subr.mxu0 %v706
  %1264 = vmatpush1.msra.mxu0 %v705
  %1265 = vmatprep.subr.mxu0 %v702
  %1266 = vmatpush1.msra.mxu0 %v701
  %1267 = vmatprep.subr.mxu0 %v698
  %1268 = vmatpush1.msra.mxu0 %v697
  %1269 = vmatprep.subr.mxu0 %v694
  %1270 = vmatpush1.msra.mxu0 %v693
  %1271 = vmatprep.subr.mxu0 0.0
  %1272 = vmatpush2.msra.mxu0 0.0
  %1273 = vmatprep.subr.mxu0 0.0
  %1274 = vmatpush2.msra.mxu0 0.0
  %1275 = vmatprep.subr.mxu0 0.0
  %1276 = vmatpush2.msra.mxu0 0.0
  %1277 = vmatprep.subr.mxu0 0.0
  %1278 = vmatpush2.msra.mxu0 0.0
  %1279 = vmatprep.subr.mxu0 0.0
  %1280 = vmatpush2.msra.mxu0 0.0
  %1281 = vmatprep.subr.mxu0 0.0
  %1282 = vmatpush2.msra.mxu0 0.0
  %1283 = vmatprep.subr.mxu0 0.0
  %1284 = vmatpush2.msra.mxu0 0.0
  %1285 = vmatprep.subr.mxu0 0.0
  %1286 = vmatpush2.msra.mxu0 0.0
  %1287 = vmatprep.subr.mxu0 0.0
  %1288 = vmatpush2.msra.mxu0 0.0
  %1289 = vmatprep.subr.mxu0 0.0
  %1290 = vmatpush2.msra.mxu0 0.0
  %1291 = vmatprep.subr.mxu0 0.0
  %1292 = vmatpush2.msra.mxu0 0.0
  %1293 = vmatprep.subr.mxu0 0.0
  %1294 = vmatpush2.msra.mxu0 0.0
  %1295 = vmatprep.subr.mxu0 0.0
  %1296 = vmatpush2.msra.mxu0 0.0
  %1297 = vmatprep.subr.mxu0 0.0
  %1298 = vmatpush2.msra.mxu0 0.0
  %1299 = vmatprep.subr.mxu0 0.0
  %1300 = vmatpush2.msra.mxu0 0.0
  %1301 = vmatprep.subr.mxu0 0.0
  %1302 = vmatpush2.msra.mxu0 0.0
  %1303 = vmatprep.mubr.f32.mxu0 0.0
  %1304 = vmatmul.mubr.f32.gmra.mxu0 %v1160
  %v1305 = vpop.f32.mrf.mxu0
  %v1306 = vadd.f32 0.0, %v1305
  %v1307 = vpop.f32.mrf.mxu0
  %v1308 = vadd.f32 0.0, %v1307
  %1309 = vdwg.mxu0
  %v1310 = vadd.f32 %v1164, %v1235
  %v1311 = vadd.f32 %v1165, %v1237
  %v1312 = vadd.f32 %v1166, %v1306
  %v1313 = vadd.f32 %v1167, %v1308
  %v1314 = vmul.f32 %v1310, 0.5
  %v1315 = vtanh.pop %v1314
  %v1316 = vadd.f32 %v1315, 1.0
  %v1317 = vmul.f32 %v1316, 0.5
  %v1318 = vmul.f32 %v1311, 0.5
  %v1319 = vtanh.pop %v1318
  %v1320 = vadd.f32 %v1319, 1.0
  %v1321 = vmul.f32 %v1320, 0.5
  %v1322 = vtanh.pop %v1312
  %v1323 = vmul.f32 %v1313, 0.5
  %v1324 = vtanh.pop %v1323
  %v1325 = vadd.f32 %v1324, 1.0
  %v1326 = vmul.f32 %v1325, 0.5
  %v1327 = vmul.f32 %v1321, %v1158
  %v1328 = vmul.f32 %v1317, %v1322
  %v1329 = vadd.f32 %v1327, %v1328
  %v1330 = vtanh.pop %v1329
  %v1331 = vmul.f32 %v1326, %v1330
  %s1332 = smul.u32 3, 4
  %s1333 = smul.addr %s1332, 8
  %s1334 = scalar_lea.vmem [#allocation2], %s1333
  %v1335 = vld [vmem:[%s1334] sm:$0xff]
  %v1336 = vld [vmem:[%s1334 + $0x8] sm:$0xff]
  %v1337 = vld [vmem:[%s1334 + $0x10] sm:$0xff]
  %v1338 = vld [vmem:[%s1334 + $0x18] sm:$0xff]
  %1339 = vmatprep.subr.mxu0 %v752
  %1340 = vmatpush1.msra.mxu0 %v751
  %1341 = vmatprep.subr.mxu0 %v748
  %1342 = vmatpush1.msra.mxu0 %v747
  %1343 = vmatprep.subr.mxu0 %v744
  %1344 = vmatpush1.msra.mxu0 %v743
  %1345 = vmatprep.subr.mxu0 %v740
  %1346 = vmatpush1.msra.mxu0 %v739
  %1347 = vmatprep.subr.mxu0 %v736
  %1348 = vmatpush1.msra.mxu0 %v735
  %1349 = vmatprep.subr.mxu0 %v732
  %1350 = vmatpush1.msra.mxu0 %v731
  %1351 = vmatprep.subr.mxu0 %v728
  %1352 = vmatpush1.msra.mxu0 %v727
  %1353 = vmatprep.subr.mxu0 %v724
  %1354 = vmatpush1.msra.mxu0 %v723
  %1355 = vmatprep.subr.mxu0 %v720
  %1356 = vmatpush1.msra.mxu0 %v719
  %1357 = vmatprep.subr.mxu0 %v716
  %1358 = vmatpush1.msra.mxu0 %v715
  %1359 = vmatprep.subr.mxu0 %v712
  %1360 = vmatpush1.msra.mxu0 %v711
  %1361 = vmatprep.subr.mxu0 %v708
  %1362 = vmatpush1.msra.mxu0 %v707
  %1363 = vmatprep.subr.mxu0 %v704
  %1364 = vmatpush1.msra.mxu0 %v703
  %1365 = vmatprep.subr.mxu0 %v700
  %1366 = vmatpush1.msra.mxu0 %v699
  %1367 = vmatprep.subr.mxu0 %v696
  %1368 = vmatpush1.msra.mxu0 %v695
  %1369 = vmatprep.subr.mxu0 %v692
  %1370 = vmatpush1.msra.mxu0 %v691
  %1371 = vmatprep.subr.mxu0 0.0
  %1372 = vmatpush2.msra.mxu0 0.0
  %1373 = vmatprep.subr.mxu0 0.0
  %1374 = vmatpush2.msra.mxu0 0.0
  %1375 = vmatprep.subr.mxu0 0.0
  %1376 = vmatpush2.msra.mxu0 0.0
  %1377 = vmatprep.subr.mxu0 0.0
  %1378 = vmatpush2.msra.mxu0 0.0
  %1379 = vmatprep.subr.mxu0 0.0
  %1380 = vmatpush2.msra.mxu0 0.0
  %1381 = vmatprep.subr.mxu0 0.0
  %1382 = vmatpush2.msra.mxu0 0.0
  %1383 = vmatprep.subr.mxu0 0.0
  %1384 = vmatpush2.msra.mxu0 0.0
  %1385 = vmatprep.subr.mxu0 0.0
  %1386 = vmatpush2.msra.mxu0 0.0
  %1387 = vmatprep.subr.mxu0 0.0
  %1388 = vmatpush2.msra.mxu0 0.0
  %1389 = vmatprep.subr.mxu0 0.0
  %1390 = vmatpush2.msra.mxu0 0.0
  %1391 = vmatprep.subr.mxu0 0.0
  %1392 = vmatpush2.msra.mxu0 0.0
  %1393 = vmatprep.subr.mxu0 0.0
  %1394 = vmatpush2.msra.mxu0 0.0
  %1395 = vmatprep.subr.mxu0 0.0
  %1396 = vmatpush2.msra.mxu0 0.0
  %1397 = vmatprep.subr.mxu0 0.0
  %1398 = vmatpush2.msra.mxu0 0.0
  %1399 = vmatprep.subr.mxu0 0.0
  %1400 = vmatpush2.msra.mxu0 0.0
  %1401 = vmatprep.subr.mxu0 0.0
  %1402 = vmatpush2.msra.mxu0 0.0
  %1403 = vmatprep.mubr.f32.mxu0 0.0
  %1404 = vmatmul.mubr.f32.gmra.mxu0 %v1331
  %v1405 = vpop.f32.mrf.mxu0
  %v1406 = vadd.f32 0.0, %v1405
  %v1407 = vpop.f32.mrf.mxu0
  %v1408 = vadd.f32 0.0, %v1407
  %1409 = vdwg.mxu0
  %1410 = vmatprep.subr.mxu0 %v754
  %1411 = vmatpush1.msra.mxu0 %v753
  %1412 = vmatprep.subr.mxu0 %v750
  %1413 = vmatpush1.msra.mxu0 %v749
  %1414 = vmatprep.subr.mxu0 %v746
  %1415 = vmatpush1.msra.mxu0 %v745
  %1416 = vmatprep.subr.mxu0 %v742
  %1417 = vmatpush1.msra.mxu0 %v741
  %1418 = vmatprep.subr.mxu0 %v738
  %1419 = vmatpush1.msra.mxu0 %v737
  %1420 = vmatprep.subr.mxu0 %v734
  %1421 = vmatpush1.msra.mxu0 %v733
  %1422 = vmatprep.subr.mxu0 %v730
  %1423 = vmatpush1.msra.mxu0 %v729
  %1424 = vmatprep.subr.mxu0 %v726
  %1425 = vmatpush1.msra.mxu0 %v725
  %1426 = vmatprep.subr.mxu0 %v722
  %1427 = vmatpush1.msra.mxu0 %v721
  %1428 = vmatprep.subr.mxu0 %v718
  %1429 = vmatpush1.msra.mxu0 %v717
  %1430 = vmatprep.subr.mxu0 %v714
  %1431 = vmatpush1.msra.mxu0 %v713
  %1432 = vmatprep.subr.mxu0 %v710
  %1433 = vmatpush1.msra.mxu0 %v709
  %1434 = vmatprep.subr.mxu0 %v706
  %1435 = vmatpush1.msra.mxu0 %v705
  %1436 = vmatprep.subr.mxu0 %v702
  %1437 = vmatpush1.msra.mxu0 %v701
  %1438 = vmatprep.subr.mxu0 %v698
  %1439 = vmatpush1.msra.mxu0 %v697
  %1440 = vmatprep.subr.mxu0 %v694
  %1441 = vmatpush1.msra.mxu0 %v693
  %1442 = vmatprep.subr.mxu0 0.0
  %1443 = vmatpush2.msra.mxu0 0.0
  %1444 = vmatprep.subr.mxu0 0.0
  %1445 = vmatpush2.msra.mxu0 0.0
  %1446 = vmatprep.subr.mxu0 0.0
  %1447 = vmatpush2.msra.mxu0 0.0
  %1448 = vmatprep.subr.mxu0 0.0
  %1449 = vmatpush2.msra.mxu0 0.0
  %1450 = vmatprep.subr.mxu0 0.0
  %1451 = vmatpush2.msra.mxu0 0.0
  %1452 = vmatprep.subr.mxu0 0.0
  %1453 = vmatpush2.msra.mxu0 0.0
  %1454 = vmatprep.subr.mxu0 0.0
  %1455 = vmatpush2.msra.mxu0 0.0
  %1456 = vmatprep.subr.mxu0 0.0
  %1457 = vmatpush2.msra.mxu0 0.0
  %1458 = vmatprep.subr.mxu0 0.0
  %1459 = vmatpush2.msra.mxu0 0.0
  %1460 = vmatprep.subr.mxu0 0.0
  %1461 = vmatpush2.msra.mxu0 0.0
  %1462 = vmatprep.subr.mxu0 0.0
  %1463 = vmatpush2.msra.mxu0 0.0
  %1464 = vmatprep.subr.mxu0 0.0
  %1465 = vmatpush2.msra.mxu0 0.0
  %1466 = vmatprep.subr.mxu0 0.0
  %1467 = vmatpush2.msra.mxu0 0.0
  %1468 = vmatprep.subr.mxu0 0.0
  %1469 = vmatpush2.msra.mxu0 0.0
  %1470 = vmatprep.subr.mxu0 0.0
  %1471 = vmatpush2.msra.mxu0 0.0
  %1472 = vmatprep.subr.mxu0 0.0
  %1473 = vmatpush2.msra.mxu0 0.0
  %1474 = vmatprep.mubr.f32.mxu0 0.0
  %1475 = vmatmul.mubr.f32.gmra.mxu0 %v1331
  %v1476 = vpop.f32.mrf.mxu0
  %v1477 = vadd.f32 0.0, %v1476
  %v1478 = vpop.f32.mrf.mxu0
  %v1479 = vadd.f32 0.0, %v1478
  %1480 = vdwg.mxu0
  %v1481 = vadd.f32 %v1335, %v1406
  %v1482 = vadd.f32 %v1336, %v1408
  %v1483 = vadd.f32 %v1337, %v1477
  %v1484 = vadd.f32 %v1338, %v1479
  %v1485 = vmul.f32 %v1481, 0.5
  %v1486 = vtanh.pop %v1485
  %v1487 = vadd.f32 %v1486, 1.0
  %v1488 = vmul.f32 %v1487, 0.5
  %v1489 = vmul.f32 %v1482, 0.5
  %v1490 = vtanh.pop %v1489
  %v1491 = vadd.f32 %v1490, 1.0
  %v1492 = vmul.f32 %v1491, 0.5
  %v1493 = vtanh.pop %v1483
  %v1494 = vmul.f32 %v1484, 0.5
  %v1495 = vtanh.pop %v1494
  %v1496 = vadd.f32 %v1495, 1.0
  %v1497 = vmul.f32 %v1496, 0.5
  %v1498 = vmul.f32 %v1492, %v1329
  %v1499 = vmul.f32 %v1488, %v1493
  %v1500 = vadd.f32 %v1498, %v1499
  %v1501 = vtanh.pop %v1500
  %v1502 = vmul.f32 %v1497, %v1501
  %s1503 = smul.u32 4, 4
  %s1504 = smul.addr %s1503, 8
  %s1505 = scalar_lea.vmem [#allocation2], %s1504
  %v1506 = vld [vmem:[%s1505] sm:$0xff]
  %v1507 = vld [vmem:[%s1505 + $0x8] sm:$0xff]
  %v1508 = vld [vmem:[%s1505 + $0x10] sm:$0xff]
  %v1509 = vld [vmem:[%s1505 + $0x18] sm:$0xff]
  %1510 = vmatprep.subr.mxu0 %v752
  %1511 = vmatpush1.msra.mxu0 %v751
  %1512 = vmatprep.subr.mxu0 %v748
  %1513 = vmatpush1.msra.mxu0 %v747
  %1514 = vmatprep.subr.mxu0 %v744
  %1515 = vmatpush1.msra.mxu0 %v743
  %1516 = vmatprep.subr.mxu0 %v740
  %1517 = vmatpush1.msra.mxu0 %v739
  %1518 = vmatprep.subr.mxu0 %v736
  %1519 = vmatpush1.msra.mxu0 %v735
  %1520 = vmatprep.subr.mxu0 %v732
  %1521 = vmatpush1.msra.mxu0 %v731
  %1522 = vmatprep.subr.mxu0 %v728
  %1523 = vmatpush1.msra.mxu0 %v727
  %1524 = vmatprep.subr.mxu0 %v724
  %1525 = vmatpush1.msra.mxu0 %v723
  %1526 = vmatprep.subr.mxu0 %v720
  %1527 = vmatpush1.msra.mxu0 %v719
  %1528 = vmatprep.subr.mxu0 %v716
  %1529 = vmatpush1.msra.mxu0 %v715
  %1530 = vmatprep.subr.mxu0 %v712
  %1531 = vmatpush1.msra.mxu0 %v711
  %1532 = vmatprep.subr.mxu0 %v708
  %1533 = vmatpush1.msra.mxu0 %v707
  %1534 = vmatprep.subr.mxu0 %v704
  %1535 = vmatpush1.msra.mxu0 %v703
  %1536 = vmatprep.subr.mxu0 %v700
  %1537 = vmatpush1.msra.mxu0 %v699
  %1538 = vmatprep.subr.mxu0 %v696
  %1539 = vmatpush1.msra.mxu0 %v695
  %1540 = vmatprep.subr.mxu0 %v692
  %1541 = vmatpush1.msra.mxu0 %v691
  %1542 = vmatprep.subr.mxu0 0.0
  %1543 = vmatpush2.msra.mxu0 0.0
  %1544 = vmatprep.subr.mxu0 0.0
  %1545 = vmatpush2.msra.mxu0 0.0
  %1546 = vmatprep.subr.mxu0 0.0
  %1547 = vmatpush2.msra.mxu0 0.0
  %1548 = vmatprep.subr.mxu0 0.0
  %1549 = vmatpush2.msra.mxu0 0.0
  %1550 = vmatprep.subr.mxu0 0.0
  %1551 = vmatpush2.msra.mxu0 0.0
  %1552 = vmatprep.subr.mxu0 0.0
  %1553 = vmatpush2.msra.mxu0 0.0
  %1554 = vmatprep.subr.mxu0 0.0
  %1555 = vmatpush2.msra.mxu0 0.0
  %1556 = vmatprep.subr.mxu0 0.0
  %1557 = vmatpush2.msra.mxu0 0.0
  %1558 = vmatprep.subr.mxu0 0.0
  %1559 = vmatpush2.msra.mxu0 0.0
  %1560 = vmatprep.subr.mxu0 0.0
  %1561 = vmatpush2.msra.mxu0 0.0
  %1562 = vmatprep.subr.mxu0 0.0
  %1563 = vmatpush2.msra.mxu0 0.0
  %1564 = vmatprep.subr.mxu0 0.0
  %1565 = vmatpush2.msra.mxu0 0.0
  %1566 = vmatprep.subr.mxu0 0.0
  %1567 = vmatpush2.msra.mxu0 0.0
  %1568 = vmatprep.subr.mxu0 0.0
  %1569 = vmatpush2.msra.mxu0 0.0
  %1570 = vmatprep.subr.mxu0 0.0
  %1571 = vmatpush2.msra.mxu0 0.0
  %1572 = vmatprep.subr.mxu0 0.0
  %1573 = vmatpush2.msra.mxu0 0.0
  %1574 = vmatprep.mubr.f32.mxu0 0.0
  %1575 = vmatmul.mubr.f32.gmra.mxu0 %v1502
  %v1576 = vpop.f32.mrf.mxu0
  %v1577 = vadd.f32 0.0, %v1576
  %v1578 = vpop.f32.mrf.mxu0
  %v1579 = vadd.f32 0.0, %v1578
  %1580 = vdwg.mxu0
  %1581 = vmatprep.subr.mxu0 %v754
  %1582 = vmatpush1.msra.mxu0 %v753
  %1583 = vmatprep.subr.mxu0 %v750
  %1584 = vmatpush1.msra.mxu0 %v749
  %1585 = vmatprep.subr.mxu0 %v746
  %1586 = vmatpush1.msra.mxu0 %v745
  %1587 = vmatprep.subr.mxu0 %v742
  %1588 = vmatpush1.msra.mxu0 %v741
  %1589 = vmatprep.subr.mxu0 %v738
  %1590 = vmatpush1.msra.mxu0 %v737
  %1591 = vmatprep.subr.mxu0 %v734
  %1592 = vmatpush1.msra.mxu0 %v733
  %1593 = vmatprep.subr.mxu0 %v730
  %1594 = vmatpush1.msra.mxu0 %v729
  %1595 = vmatprep.subr.mxu0 %v726
  %1596 = vmatpush1.msra.mxu0 %v725
  %1597 = vmatprep.subr.mxu0 %v722
  %1598 = vmatpush1.msra.mxu0 %v721
  %1599 = vmatprep.subr.mxu0 %v718
  %1600 = vmatpush1.msra.mxu0 %v717
  %1601 = vmatprep.subr.mxu0 %v714
  %1602 = vmatpush1.msra.mxu0 %v713
  %1603 = vmatprep.subr.mxu0 %v710
  %1604 = vmatpush1.msra.mxu0 %v709
  %1605 = vmatprep.subr.mxu0 %v706
  %1606 = vmatpush1.msra.mxu0 %v705
  %1607 = vmatprep.subr.mxu0 %v702
  %1608 = vmatpush1.msra.mxu0 %v701
  %1609 = vmatprep.subr.mxu0 %v698
  %1610 = vmatpush1.msra.mxu0 %v697
  %1611 = vmatprep.subr.mxu0 %v694
  %1612 = vmatpush1.msra.mxu0 %v693
  %1613 = vmatprep.subr.mxu0 0.0
  %1614 = vmatpush2.msra.mxu0 0.0
  %1615 = vmatprep.subr.mxu0 0.0
  %1616 = vmatpush2.msra.mxu0 0.0
  %1617 = vmatprep.subr.mxu0 0.0
  %1618 = vmatpush2.msra.mxu0 0.0
  %1619 = vmatprep.subr.mxu0 0.0
  %1620 = vmatpush2.msra.mxu0 0.0
  %1621 = vmatprep.subr.mxu0 0.0
  %1622 = vmatpush2.msra.mxu0 0.0
  %1623 = vmatprep.subr.mxu0 0.0
  %1624 = vmatpush2.msra.mxu0 0.0
  %1625 = vmatprep.subr.mxu0 0.0
  %1626 = vmatpush2.msra.mxu0 0.0
  %1627 = vmatprep.subr.mxu0 0.0
  %1628 = vmatpush2.msra.mxu0 0.0
  %1629 = vmatprep.subr.mxu0 0.0
  %1630 = vmatpush2.msra.mxu0 0.0
  %1631 = vmatprep.subr.mxu0 0.0
  %1632 = vmatpush2.msra.mxu0 0.0
  %1633 = vmatprep.subr.mxu0 0.0
  %1634 = vmatpush2.msra.mxu0 0.0
  %1635 = vmatprep.subr.mxu0 0.0
  %1636 = vmatpush2.msra.mxu0 0.0
  %1637 = vmatprep.subr.mxu0 0.0
  %1638 = vmatpush2.msra.mxu0 0.0
  %1639 = vmatprep.subr.mxu0 0.0
  %1640 = vmatpush2.msra.mxu0 0.0
  %1641 = vmatprep.subr.mxu0 0.0
  %1642 = vmatpush2.msra.mxu0 0.0
  %1643 = vmatprep.subr.mxu0 0.0
  %1644 = vmatpush2.msra.mxu0 0.0
  %1645 = vmatprep.mubr.f32.mxu0 0.0
  %1646 = vmatmul.mubr.f32.gmra.mxu0 %v1502
  %v1647 = vpop.f32.mrf.mxu0
  %v1648 = vadd.f32 0.0, %v1647
  %v1649 = vpop.f32.mrf.mxu0
  %v1650 = vadd.f32 0.0, %v1649
  %1651 = vdwg.mxu0
  %v1652 = vadd.f32 %v1506, %v1577
  %v1653 = vadd.f32 %v1507, %v1579
  %v1654 = vadd.f32 %v1508, %v1648
  %v1655 = vadd.f32 %v1509, %v1650
  %v1656 = vmul.f32 %v1652, 0.5
  %v1657 = vtanh.pop %v1656
  %v1658 = vadd.f32 %v1657, 1.0
  %v1659 = vmul.f32 %v1658, 0.5
  %v1660 = vmul.f32 %v1653, 0.5
  %v1661 = vtanh.pop %v1660
  %v1662 = vadd.f32 %v1661, 1.0
  %v1663 = vmul.f32 %v1662, 0.5
  %v1664 = vtanh.pop %v1654
  %v1665 = vmul.f32 %v1655, 0.5
  %v1666 = vtanh.pop %v1665
  %v1667 = vadd.f32 %v1666, 1.0
  %v1668 = vmul.f32 %v1667, 0.5
  %v1669 = vmul.f32 %v1663, %v1500
  %v1670 = vmul.f32 %v1659, %v1664
  %v1671 = vadd.f32 %v1669, %v1670
  %v1672 = vtanh.pop %v1671
  %v1673 = vmul.f32 %v1668, %v1672
  %s1674 = smul.u32 5, 4
  %s1675 = smul.addr %s1674, 8
  %s1676 = scalar_lea.vmem [#allocation2], %s1675
  %v1677 = vld [vmem:[%s1676] sm:$0xff]
  %v1678 = vld [vmem:[%s1676 + $0x8] sm:$0xff]
  %v1679 = vld [vmem:[%s1676 + $0x10] sm:$0xff]
  %v1680 = vld [vmem:[%s1676 + $0x18] sm:$0xff]
  %1681 = vmatprep.subr.mxu0 %v752
  %1682 = vmatpush1.msra.mxu0 %v751
  %1683 = vmatprep.subr.mxu0 %v748
  %1684 = vmatpush1.msra.mxu0 %v747
  %1685 = vmatprep.subr.mxu0 %v744
  %1686 = vmatpush1.msra.mxu0 %v743
  %1687 = vmatprep.subr.mxu0 %v740
  %1688 = vmatpush1.msra.mxu0 %v739
  %1689 = vmatprep.subr.mxu0 %v736
  %1690 = vmatpush1.msra.mxu0 %v735
  %1691 = vmatprep.subr.mxu0 %v732
  %1692 = vmatpush1.msra.mxu0 %v731
  %1693 = vmatprep.subr.mxu0 %v728
  %1694 = vmatpush1.msra.mxu0 %v727
  %1695 = vmatprep.subr.mxu0 %v724
  %1696 = vmatpush1.msra.mxu0 %v723
  %1697 = vmatprep.subr.mxu0 %v720
  %1698 = vmatpush1.msra.mxu0 %v719
  %1699 = vmatprep.subr.mxu0 %v716
  %1700 = vmatpush1.msra.mxu0 %v715
  %1701 = vmatprep.subr.mxu0 %v712
  %1702 = vmatpush1.msra.mxu0 %v711
  %1703 = vmatprep.subr.mxu0 %v708
  %1704 = vmatpush1.msra.mxu0 %v707
  %1705 = vmatprep.subr.mxu0 %v704
  %1706 = vmatpush1.msra.mxu0 %v703
  %1707 = vmatprep.subr.mxu0 %v700
  %1708 = vmatpush1.msra.mxu0 %v699
  %1709 = vmatprep.subr.mxu0 %v696
  %1710 = vmatpush1.msra.mxu0 %v695
  %1711 = vmatprep.subr.mxu0 %v692
  %1712 = vmatpush1.msra.mxu0 %v691
  %1713 = vmatprep.subr.mxu0 0.0
  %1714 = vmatpush2.msra.mxu0 0.0
  %1715 = vmatprep.subr.mxu0 0.0
  %1716 = vmatpush2.msra.mxu0 0.0
  %1717 = vmatprep.subr.mxu0 0.0
  %1718 = vmatpush2.msra.mxu0 0.0
  %1719 = vmatprep.subr.mxu0 0.0
  %1720 = vmatpush2.msra.mxu0 0.0
  %1721 = vmatprep.subr.mxu0 0.0
  %1722 = vmatpush2.msra.mxu0 0.0
  %1723 = vmatprep.subr.mxu0 0.0
  %1724 = vmatpush2.msra.mxu0 0.0
  %1725 = vmatprep.subr.mxu0 0.0
  %1726 = vmatpush2.msra.mxu0 0.0
  %1727 = vmatprep.subr.mxu0 0.0
  %1728 = vmatpush2.msra.mxu0 0.0
  %1729 = vmatprep.subr.mxu0 0.0
  %1730 = vmatpush2.msra.mxu0 0.0
  %1731 = vmatprep.subr.mxu0 0.0
  %1732 = vmatpush2.msra.mxu0 0.0
  %1733 = vmatprep.subr.mxu0 0.0
  %1734 = vmatpush2.msra.mxu0 0.0
  %1735 = vmatprep.subr.mxu0 0.0
  %1736 = vmatpush2.msra.mxu0 0.0
  %1737 = vmatprep.subr.mxu0 0.0
  %1738 = vmatpush2.msra.mxu0 0.0
  %1739 = vmatprep.subr.mxu0 0.0
  %1740 = vmatpush2.msra.mxu0 0.0
  %1741 = vmatprep.subr.mxu0 0.0
  %1742 = vmatpush2.msra.mxu0 0.0
  %1743 = vmatprep.subr.mxu0 0.0
  %1744 = vmatpush2.msra.mxu0 0.0
  %1745 = vmatprep.mubr.f32.mxu0 0.0
  %1746 = vmatmul.mubr.f32.gmra.mxu0 %v1673
  %v1747 = vpop.f32.mrf.mxu0
  %v1748 = vadd.f32 0.0, %v1747
  %v1749 = vpop.f32.mrf.mxu0
  %v1750 = vadd.f32 0.0, %v1749
  %1751 = vdwg.mxu0
  %1752 = vmatprep.subr.mxu0 %v754
  %1753 = vmatpush1.msra.mxu0 %v753
  %1754 = vmatprep.subr.mxu0 %v750
  %1755 = vmatpush1.msra.mxu0 %v749
  %1756 = vmatprep.subr.mxu0 %v746
  %1757 = vmatpush1.msra.mxu0 %v745
  %1758 = vmatprep.subr.mxu0 %v742
  %1759 = vmatpush1.msra.mxu0 %v741
  %1760 = vmatprep.subr.mxu0 %v738
  %1761 = vmatpush1.msra.mxu0 %v737
  %1762 = vmatprep.subr.mxu0 %v734
  %1763 = vmatpush1.msra.mxu0 %v733
  %1764 = vmatprep.subr.mxu0 %v730
  %1765 = vmatpush1.msra.mxu0 %v729
  %1766 = vmatprep.subr.mxu0 %v726
  %1767 = vmatpush1.msra.mxu0 %v725
  %1768 = vmatprep.subr.mxu0 %v722
  %1769 = vmatpush1.msra.mxu0 %v721
  %1770 = vmatprep.subr.mxu0 %v718
  %1771 = vmatpush1.msra.mxu0 %v717
  %1772 = vmatprep.subr.mxu0 %v714
  %1773 = vmatpush1.msra.mxu0 %v713
  %1774 = vmatprep.subr.mxu0 %v710
  %1775 = vmatpush1.msra.mxu0 %v709
  %1776 = vmatprep.subr.mxu0 %v706
  %1777 = vmatpush1.msra.mxu0 %v705
  %1778 = vmatprep.subr.mxu0 %v702
  %1779 = vmatpush1.msra.mxu0 %v701
  %1780 = vmatprep.subr.mxu0 %v698
  %1781 = vmatpush1.msra.mxu0 %v697
  %1782 = vmatprep.subr.mxu0 %v694
  %1783 = vmatpush1.msra.mxu0 %v693
  %1784 = vmatprep.subr.mxu0 0.0
  %1785 = vmatpush2.msra.mxu0 0.0
  %1786 = vmatprep.subr.mxu0 0.0
  %1787 = vmatpush2.msra.mxu0 0.0
  %1788 = vmatprep.subr.mxu0 0.0
  %1789 = vmatpush2.msra.mxu0 0.0
  %1790 = vmatprep.subr.mxu0 0.0
  %1791 = vmatpush2.msra.mxu0 0.0
  %1792 = vmatprep.subr.mxu0 0.0
  %1793 = vmatpush2.msra.mxu0 0.0
  %1794 = vmatprep.subr.mxu0 0.0
  %1795 = vmatpush2.msra.mxu0 0.0
  %1796 = vmatprep.subr.mxu0 0.0
  %1797 = vmatpush2.msra.mxu0 0.0
  %1798 = vmatprep.subr.mxu0 0.0
  %1799 = vmatpush2.msra.mxu0 0.0
  %1800 = vmatprep.subr.mxu0 0.0
  %1801 = vmatpush2.msra.mxu0 0.0
  %1802 = vmatprep.subr.mxu0 0.0
  %1803 = vmatpush2.msra.mxu0 0.0
  %1804 = vmatprep.subr.mxu0 0.0
  %1805 = vmatpush2.msra.mxu0 0.0
  %1806 = vmatprep.subr.mxu0 0.0
  %1807 = vmatpush2.msra.mxu0 0.0
  %1808 = vmatprep.subr.mxu0 0.0
  %1809 = vmatpush2.msra.mxu0 0.0
  %1810 = vmatprep.subr.mxu0 0.0
  %1811 = vmatpush2.msra.mxu0 0.0
  %1812 = vmatprep.subr.mxu0 0.0
  %1813 = vmatpush2.msra.mxu0 0.0
  %1814 = vmatprep.subr.mxu0 0.0
  %1815 = vmatpush2.msra.mxu0 0.0
  %1816 = vmatprep.mubr.f32.mxu0 0.0
  %1817 = vmatmul.mubr.f32.gmra.mxu0 %v1673
  %v1818 = vpop.f32.mrf.mxu0
  %v1819 = vadd.f32 0.0, %v1818
  %v1820 = vpop.f32.mrf.mxu0
  %v1821 = vadd.f32 0.0, %v1820
  %1822 = vdwg.mxu0
  %v1823 = vadd.f32 %v1677, %v1748
  %v1824 = vadd.f32 %v1678, %v1750
  %v1825 = vadd.f32 %v1679, %v1819
  %v1826 = vadd.f32 %v1680, %v1821
  %v1827 = vmul.f32 %v1823, 0.5
  %v1828 = vtanh.pop %v1827
  %v1829 = vadd.f32 %v1828, 1.0
  %v1830 = vmul.f32 %v1829, 0.5
  %v1831 = vmul.f32 %v1824, 0.5
  %v1832 = vtanh.pop %v1831
  %v1833 = vadd.f32 %v1832, 1.0
  %v1834 = vmul.f32 %v1833, 0.5
  %v1835 = vtanh.pop %v1825
  %v1836 = vmul.f32 %v1826, 0.5
  %v1837 = vtanh.pop %v1836
  %v1838 = vadd.f32 %v1837, 1.0
  %v1839 = vmul.f32 %v1838, 0.5
  %v1840 = vmul.f32 %v1834, %v1671
  %v1841 = vmul.f32 %v1830, %v1835
  %v1842 = vadd.f32 %v1840, %v1841
  %v1843 = vtanh.pop %v1842
  %v1844 = vmul.f32 %v1839, %v1843
  %s1845 = smul.u32 6, 4
  %s1846 = smul.addr %s1845, 8
  %s1847 = scalar_lea.vmem [#allocation2], %s1846
  %v1848 = vld [vmem:[%s1847] sm:$0xff]
  %v1849 = vld [vmem:[%s1847 + $0x8] sm:$0xff]
  %v1850 = vld [vmem:[%s1847 + $0x10] sm:$0xff]
  %v1851 = vld [vmem:[%s1847 + $0x18] sm:$0xff]
  %1852 = vmatprep.subr.mxu0 %v752
  %1853 = vmatpush1.msra.mxu0 %v751
  %1854 = vmatprep.subr.mxu0 %v748
  %1855 = vmatpush1.msra.mxu0 %v747
  %1856 = vmatprep.subr.mxu0 %v744
  %1857 = vmatpush1.msra.mxu0 %v743
  %1858 = vmatprep.subr.mxu0 %v740
  %1859 = vmatpush1.msra.mxu0 %v739
  %1860 = vmatprep.subr.mxu0 %v736
  %1861 = vmatpush1.msra.mxu0 %v735
  %1862 = vmatprep.subr.mxu0 %v732
  %1863 = vmatpush1.msra.mxu0 %v731
  %1864 = vmatprep.subr.mxu0 %v728
  %1865 = vmatpush1.msra.mxu0 %v727
  %1866 = vmatprep.subr.mxu0 %v724
  %1867 = vmatpush1.msra.mxu0 %v723
  %1868 = vmatprep.subr.mxu0 %v720
  %1869 = vmatpush1.msra.mxu0 %v719
  %1870 = vmatprep.subr.mxu0 %v716
  %1871 = vmatpush1.msra.mxu0 %v715
  %1872 = vmatprep.subr.mxu0 %v712
  %1873 = vmatpush1.msra.mxu0 %v711
  %1874 = vmatprep.subr.mxu0 %v708
  %1875 = vmatpush1.msra.mxu0 %v707
  %1876 = vmatprep.subr.mxu0 %v704
  %1877 = vmatpush1.msra.mxu0 %v703
  %1878 = vmatprep.subr.mxu0 %v700
  %1879 = vmatpush1.msra.mxu0 %v699
  %1880 = vmatprep.subr.mxu0 %v696
  %1881 = vmatpush1.msra.mxu0 %v695
  %1882 = vmatprep.subr.mxu0 %v692
  %1883 = vmatpush1.msra.mxu0 %v691
  %1884 = vmatprep.subr.mxu0 0.0
  %1885 = vmatpush2.msra.mxu0 0.0
  %1886 = vmatprep.subr.mxu0 0.0
  %1887 = vmatpush2.msra.mxu0 0.0
  %1888 = vmatprep.subr.mxu0 0.0
  %1889 = vmatpush2.msra.mxu0 0.0
  %1890 = vmatprep.subr.mxu0 0.0
  %1891 = vmatpush2.msra.mxu0 0.0
  %1892 = vmatprep.subr.mxu0 0.0
  %1893 = vmatpush2.msra.mxu0 0.0
  %1894 = vmatprep.subr.mxu0 0.0
  %1895 = vmatpush2.msra.mxu0 0.0
  %1896 = vmatprep.subr.mxu0 0.0
  %1897 = vmatpush2.msra.mxu0 0.0
  %1898 = vmatprep.subr.mxu0 0.0
  %1899 = vmatpush2.msra.mxu0 0.0
  %1900 = vmatprep.subr.mxu0 0.0
  %1901 = vmatpush2.msra.mxu0 0.0
  %1902 = vmatprep.subr.mxu0 0.0
  %1903 = vmatpush2.msra.mxu0 0.0
  %1904 = vmatprep.subr.mxu0 0.0
  %1905 = vmatpush2.msra.mxu0 0.0
  %1906 = vmatprep.subr.mxu0 0.0
  %1907 = vmatpush2.msra.mxu0 0.0
  %1908 = vmatprep.subr.mxu0 0.0
  %1909 = vmatpush2.msra.mxu0 0.0
  %1910 = vmatprep.subr.mxu0 0.0
  %1911 = vmatpush2.msra.mxu0 0.0
  %1912 = vmatprep.subr.mxu0 0.0
  %1913 = vmatpush2.msra.mxu0 0.0
  %1914 = vmatprep.subr.mxu0 0.0
  %1915 = vmatpush2.msra.mxu0 0.0
  %1916 = vmatprep.mubr.f32.mxu0 0.0
  %1917 = vmatmul.mubr.f32.gmra.mxu0 %v1844
  %v1918 = vpop.f32.mrf.mxu0
  %v1919 = vadd.f32 0.0, %v1918
  %v1920 = vpop.f32.mrf.mxu0
  %v1921 = vadd.f32 0.0, %v1920
  %1922 = vdwg.mxu0
  %1923 = vmatprep.subr.mxu0 %v754
  %1924 = vmatpush1.msra.mxu0 %v753
  %1925 = vmatprep.subr.mxu0 %v750
  %1926 = vmatpush1.msra.mxu0 %v749
  %1927 = vmatprep.subr.mxu0 %v746
  %1928 = vmatpush1.msra.mxu0 %v745
  %1929 = vmatprep.subr.mxu0 %v742
  %1930 = vmatpush1.msra.mxu0 %v741
  %1931 = vmatprep.subr.mxu0 %v738
  %1932 = vmatpush1.msra.mxu0 %v737
  %1933 = vmatprep.subr.mxu0 %v734
  %1934 = vmatpush1.msra.mxu0 %v733
  %1935 = vmatprep.subr.mxu0 %v730
  %1936 = vmatpush1.msra.mxu0 %v729
  %1937 = vmatprep.subr.mxu0 %v726
  %1938 = vmatpush1.msra.mxu0 %v725
  %1939 = vmatprep.subr.mxu0 %v722
  %1940 = vmatpush1.msra.mxu0 %v721
  %1941 = vmatprep.subr.mxu0 %v718
  %1942 = vmatpush1.msra.mxu0 %v717
  %1943 = vmatprep.subr.mxu0 %v714
  %1944 = vmatpush1.msra.mxu0 %v713
  %1945 = vmatprep.subr.mxu0 %v710
  %1946 = vmatpush1.msra.mxu0 %v709
  %1947 = vmatprep.subr.mxu0 %v706
  %1948 = vmatpush1.msra.mxu0 %v705
  %1949 = vmatprep.subr.mxu0 %v702
  %1950 = vmatpush1.msra.mxu0 %v701
  %1951 = vmatprep.subr.mxu0 %v698
  %1952 = vmatpush1.msra.mxu0 %v697
  %1953 = vmatprep.subr.mxu0 %v694
  %1954 = vmatpush1.msra.mxu0 %v693
  %1955 = vmatprep.subr.mxu0 0.0
  %1956 = vmatpush2.msra.mxu0 0.0
  %1957 = vmatprep.subr.mxu0 0.0
  %1958 = vmatpush2.msra.mxu0 0.0
  %1959 = vmatprep.subr.mxu0 0.0
  %1960 = vmatpush2.msra.mxu0 0.0
  %1961 = vmatprep.subr.mxu0 0.0
  %1962 = vmatpush2.msra.mxu0 0.0
  %1963 = vmatprep.subr.mxu0 0.0
  %1964 = vmatpush2.msra.mxu0 0.0
  %1965 = vmatprep.subr.mxu0 0.0
  %1966 = vmatpush2.msra.mxu0 0.0
  %1967 = vmatprep.subr.mxu0 0.0
  %1968 = vmatpush2.msra.mxu0 0.0
  %1969 = vmatprep.subr.mxu0 0.0
  %1970 = vmatpush2.msra.mxu0 0.0
  %1971 = vmatprep.subr.mxu0 0.0
  %1972 = vmatpush2.msra.mxu0 0.0
  %1973 = vmatprep.subr.mxu0 0.0
  %1974 = vmatpush2.msra.mxu0 0.0
  %1975 = vmatprep.subr.mxu0 0.0
  %1976 = vmatpush2.msra.mxu0 0.0
  %1977 = vmatprep.subr.mxu0 0.0
  %1978 = vmatpush2.msra.mxu0 0.0
  %1979 = vmatprep.subr.mxu0 0.0
  %1980 = vmatpush2.msra.mxu0 0.0
  %1981 = vmatprep.subr.mxu0 0.0
  %1982 = vmatpush2.msra.mxu0 0.0
  %1983 = vmatprep.subr.mxu0 0.0
  %1984 = vmatpush2.msra.mxu0 0.0
  %1985 = vmatprep.subr.mxu0 0.0
  %1986 = vmatpush2.msra.mxu0 0.0
  %1987 = vmatprep.mubr.f32.mxu0 0.0
  %1988 = vmatmul.mubr.f32.gmra.mxu0 %v1844
  %v1989 = vpop.f32.mrf.mxu0
  %v1990 = vadd.f32 0.0, %v1989
  %v1991 = vpop.f32.mrf.mxu0
  %v1992 = vadd.f32 0.0, %v1991
  %1993 = vdwg.mxu0
  %v1994 = vadd.f32 %v1848, %v1919
  %v1995 = vadd.f32 %v1849, %v1921
  %v1996 = vadd.f32 %v1850, %v1990
  %v1997 = vadd.f32 %v1851, %v1992
  %v1998 = vmul.f32 %v1994, 0.5
  %v1999 = vtanh.pop %v1998
  %v2000 = vadd.f32 %v1999, 1.0
  %v2001 = vmul.f32 %v2000, 0.5
  %v2002 = vmul.f32 %v1995, 0.5
  %v2003 = vtanh.pop %v2002
  %v2004 = vadd.f32 %v2003, 1.0
  %v2005 = vmul.f32 %v2004, 0.5
  %v2006 = vtanh.pop %v1996
  %v2007 = vmul.f32 %v1997, 0.5
  %v2008 = vtanh.pop %v2007
  %v2009 = vadd.f32 %v2008, 1.0
  %v2010 = vmul.f32 %v2009, 0.5
  %v2011 = vmul.f32 %v2005, %v1842
  %v2012 = vmul.f32 %v2001, %v2006
  %v2013 = vadd.f32 %v2011, %v2012
  %v2014 = vtanh.pop %v2013
  %v2015 = vmul.f32 %v2010, %v2014
  %s2016 = smul.u32 7, 4
  %s2017 = smul.addr %s2016, 8
  %s2018 = scalar_lea.vmem [#allocation2], %s2017
  %v2019 = vld [vmem:[%s2018] sm:$0xff]
  %v2020 = vld [vmem:[%s2018 + $0x8] sm:$0xff]
  %v2021 = vld [vmem:[%s2018 + $0x10] sm:$0xff]
  %v2022 = vld [vmem:[%s2018 + $0x18] sm:$0xff]
  %2023 = vmatprep.subr.mxu0 %v752
  %2024 = vmatpush1.msra.mxu0 %v751
  %2025 = vmatprep.subr.mxu0 %v748
  %2026 = vmatpush1.msra.mxu0 %v747
  %2027 = vmatprep.subr.mxu0 %v744
  %2028 = vmatpush1.msra.mxu0 %v743
  %2029 = vmatprep.subr.mxu0 %v740
  %2030 = vmatpush1.msra.mxu0 %v739
  %2031 = vmatprep.subr.mxu0 %v736
  %2032 = vmatpush1.msra.mxu0 %v735
  %2033 = vmatprep.subr.mxu0 %v732
  %2034 = vmatpush1.msra.mxu0 %v731
  %2035 = vmatprep.subr.mxu0 %v728
  %2036 = vmatpush1.msra.mxu0 %v727
  %2037 = vmatprep.subr.mxu0 %v724
  %2038 = vmatpush1.msra.mxu0 %v723
  %2039 = vmatprep.subr.mxu0 %v720
  %2040 = vmatpush1.msra.mxu0 %v719
  %2041 = vmatprep.subr.mxu0 %v716
  %2042 = vmatpush1.msra.mxu0 %v715
  %2043 = vmatprep.subr.mxu0 %v712
  %2044 = vmatpush1.msra.mxu0 %v711
  %2045 = vmatprep.subr.mxu0 %v708
  %2046 = vmatpush1.msra.mxu0 %v707
  %2047 = vmatprep.subr.mxu0 %v704
  %2048 = vmatpush1.msra.mxu0 %v703
  %2049 = vmatprep.subr.mxu0 %v700
  %2050 = vmatpush1.msra.mxu0 %v699
  %2051 = vmatprep.subr.mxu0 %v696
  %2052 = vmatpush1.msra.mxu0 %v695
  %2053 = vmatprep.subr.mxu0 %v692
  %2054 = vmatpush1.msra.mxu0 %v691
  %2055 = vmatprep.subr.mxu0 0.0
  %2056 = vmatpush2.msra.mxu0 0.0
  %2057 = vmatprep.subr.mxu0 0.0
  %2058 = vmatpush2.msra.mxu0 0.0
  %2059 = vmatprep.subr.mxu0 0.0
  %2060 = vmatpush2.msra.mxu0 0.0
  %2061 = vmatprep.subr.mxu0 0.0
  %2062 = vmatpush2.msra.mxu0 0.0
  %2063 = vmatprep.subr.mxu0 0.0
  %2064 = vmatpush2.msra.mxu0 0.0
  %2065 = vmatprep.subr.mxu0 0.0
  %2066 = vmatpush2.msra.mxu0 0.0
  %2067 = vmatprep.subr.mxu0 0.0
  %2068 = vmatpush2.msra.mxu0 0.0
  %2069 = vmatprep.subr.mxu0 0.0
  %2070 = vmatpush2.msra.mxu0 0.0
  %2071 = vmatprep.subr.mxu0 0.0
  %2072 = vmatpush2.msra.mxu0 0.0
  %2073 = vmatprep.subr.mxu0 0.0
  %2074 = vmatpush2.msra.mxu0 0.0
  %2075 = vmatprep.subr.mxu0 0.0
  %2076 = vmatpush2.msra.mxu0 0.0
  %2077 = vmatprep.subr.mxu0 0.0
  %2078 = vmatpush2.msra.mxu0 0.0
  %2079 = vmatprep.subr.mxu0 0.0
  %2080 = vmatpush2.msra.mxu0 0.0
  %2081 = vmatprep.subr.mxu0 0.0
  %2082 = vmatpush2.msra.mxu0 0.0
  %2083 = vmatprep.subr.mxu0 0.0
  %2084 = vmatpush2.msra.mxu0 0.0
  %2085 = vmatprep.subr.mxu0 0.0
  %2086 = vmatpush2.msra.mxu0 0.0
  %2087 = vmatprep.mubr.f32.mxu0 0.0
  %2088 = vmatmul.mubr.f32.gmra.mxu0 %v2015
  %v2089 = vpop.f32.mrf.mxu0
  %v2090 = vadd.f32 0.0, %v2089
  %v2091 = vpop.f32.mrf.mxu0
  %v2092 = vadd.f32 0.0, %v2091
  %2093 = vdwg.mxu0
  %2094 = vmatprep.subr.mxu0 %v754
  %2095 = vmatpush1.msra.mxu0 %v753
  %2096 = vmatprep.subr.mxu0 %v750
  %2097 = vmatpush1.msra.mxu0 %v749
  %2098 = vmatprep.subr.mxu0 %v746
  %2099 = vmatpush1.msra.mxu0 %v745
  %2100 = vmatprep.subr.mxu0 %v742
  %2101 = vmatpush1.msra.mxu0 %v741
  %2102 = vmatprep.subr.mxu0 %v738
  %2103 = vmatpush1.msra.mxu0 %v737
  %2104 = vmatprep.subr.mxu0 %v734
  %2105 = vmatpush1.msra.mxu0 %v733
  %2106 = vmatprep.subr.mxu0 %v730
  %2107 = vmatpush1.msra.mxu0 %v729
  %2108 = vmatprep.subr.mxu0 %v726
  %2109 = vmatpush1.msra.mxu0 %v725
  %2110 = vmatprep.subr.mxu0 %v722
  %2111 = vmatpush1.msra.mxu0 %v721
  %2112 = vmatprep.subr.mxu0 %v718
  %2113 = vmatpush1.msra.mxu0 %v717
  %2114 = vmatprep.subr.mxu0 %v714
  %2115 = vmatpush1.msra.mxu0 %v713
  %2116 = vmatprep.subr.mxu0 %v710
  %2117 = vmatpush1.msra.mxu0 %v709
  %2118 = vmatprep.subr.mxu0 %v706
  %2119 = vmatpush1.msra.mxu0 %v705
  %2120 = vmatprep.subr.mxu0 %v702
  %2121 = vmatpush1.msra.mxu0 %v701
  %2122 = vmatprep.subr.mxu0 %v698
  %2123 = vmatpush1.msra.mxu0 %v697
  %2124 = vmatprep.subr.mxu0 %v694
  %2125 = vmatpush1.msra.mxu0 %v693
  %2126 = vmatprep.subr.mxu0 0.0
  %2127 = vmatpush2.msra.mxu0 0.0
  %2128 = vmatprep.subr.mxu0 0.0
  %2129 = vmatpush2.msra.mxu0 0.0
  %2130 = vmatprep.subr.mxu0 0.0
  %2131 = vmatpush2.msra.mxu0 0.0
  %2132 = vmatprep.subr.mxu0 0.0
  %2133 = vmatpush2.msra.mxu0 0.0
  %2134 = vmatprep.subr.mxu0 0.0
  %2135 = vmatpush2.msra.mxu0 0.0
  %2136 = vmatprep.subr.mxu0 0.0
  %2137 = vmatpush2.msra.mxu0 0.0
  %2138 = vmatprep.subr.mxu0 0.0
  %2139 = vmatpush2.msra.mxu0 0.0
  %2140 = vmatprep.subr.mxu0 0.0
  %2141 = vmatpush2.msra.mxu0 0.0
  %2142 = vmatprep.subr.mxu0 0.0
  %2143 = vmatpush2.msra.mxu0 0.0
  %2144 = vmatprep.subr.mxu0 0.0
  %2145 = vmatpush2.msra.mxu0 0.0
  %2146 = vmatprep.subr.mxu0 0.0
  %2147 = vmatpush2.msra.mxu0 0.0
  %2148 = vmatprep.subr.mxu0 0.0
  %2149 = vmatpush2.msra.mxu0 0.0
  %2150 = vmatprep.subr.mxu0 0.0
  %2151 = vmatpush2.msra.mxu0 0.0
  %2152 = vmatprep.subr.mxu0 0.0
  %2153 = vmatpush2.msra.mxu0 0.0
  %2154 = vmatprep.subr.mxu0 0.0
  %2155 = vmatpush2.msra.mxu0 0.0
  %2156 = vmatprep.subr.mxu0 0.0
  %2157 = vmatpush2.msra.mxu0 0.0
  %2158 = vmatprep.mubr.f32.mxu0 0.0
  %2159 = vmatmul.mubr.f32.gmra.mxu0 %v2015
  %v2160 = vpop.f32.mrf.mxu0
  %v2161 = vadd.f32 0.0, %v2160
  %v2162 = vpop.f32.mrf.mxu0
  %v2163 = vadd.f32 0.0, %v2162
  %2164 = vdwg.mxu0
  %v2165 = vadd.f32 %v2019, %v2090
  %v2166 = vadd.f32 %v2020, %v2092
  %v2167 = vadd.f32 %v2021, %v2161
  %v2168 = vadd.f32 %v2022, %v2163
  %v2169 = vmul.f32 %v2165, 0.5
  %v2170 = vtanh.pop %v2169
  %v2171 = vadd.f32 %v2170, 1.0
  %v2172 = vmul.f32 %v2171, 0.5
  %v2173 = vmul.f32 %v2166, 0.5
  %v2174 = vtanh.pop %v2173
  %v2175 = vadd.f32 %v2174, 1.0
  %v2176 = vmul.f32 %v2175, 0.5
  %v2177 = vtanh.pop %v2167
  %v2178 = vmul.f32 %v2168, 0.5
  %v2179 = vtanh.pop %v2178
  %v2180 = vadd.f32 %v2179, 1.0
  %v2181 = vmul.f32 %v2180, 0.5
  %v2182 = vmul.f32 %v2176, %v2013
  %v2183 = vmul.f32 %v2172, %v2177
  %v2184 = vadd.f32 %v2182, %v2183
  %v2185 = vtanh.pop %v2184
  %v2186 = vmul.f32 %v2181, %v2185
  %s2187 = smul.addr %s819, 8
  %s2188 = scalar_lea.vmem [#allocation3], %s2187
  %v2189 = vld [vmem:[%s2188] sm:$0xff]
  %v2190 = vld [vmem:[%s2188 + $0x8] sm:$0xff]
  %v2191 = vld [vmem:[%s2188 + $0x10] sm:$0xff]
  %v2192 = vld [vmem:[%s2188 + $0x18] sm:$0xff]
  %2193 = vmatprep.subr.mxu0 %v816
  %2194 = vmatpush1.msra.mxu0 %v815
  %2195 = vmatprep.subr.mxu0 %v812
  %2196 = vmatpush1.msra.mxu0 %v811
  %2197 = vmatprep.subr.mxu0 %v808
  %2198 = vmatpush1.msra.mxu0 %v807
  %2199 = vmatprep.subr.mxu0 %v804
  %2200 = vmatpush1.msra.mxu0 %v803
  %2201 = vmatprep.subr.mxu0 %v800
  %2202 = vmatpush1.msra.mxu0 %v799
  %2203 = vmatprep.subr.mxu0 %v796
  %2204 = vmatpush1.msra.mxu0 %v795
  %2205 = vmatprep.subr.mxu0 %v792
  %2206 = vmatpush1.msra.mxu0 %v791
  %2207 = vmatprep.subr.mxu0 %v788
  %2208 = vmatpush1.msra.mxu0 %v787
  %2209 = vmatprep.subr.mxu0 %v784
  %2210 = vmatpush1.msra.mxu0 %v783
  %2211 = vmatprep.subr.mxu0 %v780
  %2212 = vmatpush1.msra.mxu0 %v779
  %2213 = vmatprep.subr.mxu0 %v776
  %2214 = vmatpush1.msra.mxu0 %v775
  %2215 = vmatprep.subr.mxu0 %v772
  %2216 = vmatpush1.msra.mxu0 %v771
  %2217 = vmatprep.subr.mxu0 %v768
  %2218 = vmatpush1.msra.mxu0 %v767
  %2219 = vmatprep.subr.mxu0 %v764
  %2220 = vmatpush1.msra.mxu0 %v763
  %2221 = vmatprep.subr.mxu0 %v760
  %2222 = vmatpush1.msra.mxu0 %v759
  %2223 = vmatprep.subr.mxu0 %v756
  %2224 = vmatpush1.msra.mxu0 %v755
  %2225 = vmatprep.subr.mxu0 0.0
  %2226 = vmatpush2.msra.mxu0 0.0
  %2227 = vmatprep.subr.mxu0 0.0
  %2228 = vmatpush2.msra.mxu0 0.0
  %2229 = vmatprep.subr.mxu0 0.0
  %2230 = vmatpush2.msra.mxu0 0.0
  %2231 = vmatprep.subr.mxu0 0.0
  %2232 = vmatpush2.msra.mxu0 0.0
  %2233 = vmatprep.subr.mxu0 0.0
  %2234 = vmatpush2.msra.mxu0 0.0
  %2235 = vmatprep.subr.mxu0 0.0
  %2236 = vmatpush2.msra.mxu0 0.0
  %2237 = vmatprep.subr.mxu0 0.0
  %2238 = vmatpush2.msra.mxu0 0.0
  %2239 = vmatprep.subr.mxu0 0.0
  %2240 = vmatpush2.msra.mxu0 0.0
  %2241 = vmatprep.subr.mxu0 0.0
  %2242 = vmatpush2.msra.mxu0 0.0
  %2243 = vmatprep.subr.mxu0 0.0
  %2244 = vmatpush2.msra.mxu0 0.0
  %2245 = vmatprep.subr.mxu0 0.0
  %2246 = vmatpush2.msra.mxu0 0.0
  %2247 = vmatprep.subr.mxu0 0.0
  %2248 = vmatpush2.msra.mxu0 0.0
  %2249 = vmatprep.subr.mxu0 0.0
  %2250 = vmatpush2.msra.mxu0 0.0
  %2251 = vmatprep.subr.mxu0 0.0
  %2252 = vmatpush2.msra.mxu0 0.0
  %2253 = vmatprep.subr.mxu0 0.0
  %2254 = vmatpush2.msra.mxu0 0.0
  %2255 = vmatprep.subr.mxu0 0.0
  %2256 = vmatpush2.msra.mxu0 0.0
  %2257 = vmatprep.mubr.f32.mxu0 0.0
  %2258 = vmatmul.mubr.f32.gmra.mxu0 %v2186
  %v2259 = vpop.f32.mrf.mxu0
  %v2260 = vadd.f32 0.0, %v2259
  %v2261 = vpop.f32.mrf.mxu0
  %v2262 = vadd.f32 0.0, %v2261
  %2263 = vdwg.mxu0
  %2264 = vmatprep.subr.mxu0 %v818
  %2265 = vmatpush1.msra.mxu0 %v817
  %2266 = vmatprep.subr.mxu0 %v814
  %2267 = vmatpush1.msra.mxu0 %v813
  %2268 = vmatprep.subr.mxu0 %v810
  %2269 = vmatpush1.msra.mxu0 %v809
  %2270 = vmatprep.subr.mxu0 %v806
  %2271 = vmatpush1.msra.mxu0 %v805
  %2272 = vmatprep.subr.mxu0 %v802
  %2273 = vmatpush1.msra.mxu0 %v801
  %2274 = vmatprep.subr.mxu0 %v798
  %2275 = vmatpush1.msra.mxu0 %v797
  %2276 = vmatprep.subr.mxu0 %v794
  %2277 = vmatpush1.msra.mxu0 %v793
  %2278 = vmatprep.subr.mxu0 %v790
  %2279 = vmatpush1.msra.mxu0 %v789
  %2280 = vmatprep.subr.mxu0 %v786
  %2281 = vmatpush1.msra.mxu0 %v785
  %2282 = vmatprep.subr.mxu0 %v782
  %2283 = vmatpush1.msra.mxu0 %v781
  %2284 = vmatprep.subr.mxu0 %v778
  %2285 = vmatpush1.msra.mxu0 %v777
  %2286 = vmatprep.subr.mxu0 %v774
  %2287 = vmatpush1.msra.mxu0 %v773
  %2288 = vmatprep.subr.mxu0 %v770
  %2289 = vmatpush1.msra.mxu0 %v769
  %2290 = vmatprep.subr.mxu0 %v766
  %2291 = vmatpush1.msra.mxu0 %v765
  %2292 = vmatprep.subr.mxu0 %v762
  %2293 = vmatpush1.msra.mxu0 %v761
  %2294 = vmatprep.subr.mxu0 %v758
  %2295 = vmatpush1.msra.mxu0 %v757
  %2296 = vmatprep.subr.mxu0 0.0
  %2297 = vmatpush2.msra.mxu0 0.0
  %2298 = vmatprep.subr.mxu0 0.0
  %2299 = vmatpush2.msra.mxu0 0.0
  %2300 = vmatprep.subr.mxu0 0.0
  %2301 = vmatpush2.msra.mxu0 0.0
  %2302 = vmatprep.subr.mxu0 0.0
  %2303 = vmatpush2.msra.mxu0 0.0
  %2304 = vmatprep.subr.mxu0 0.0
  %2305 = vmatpush2.msra.mxu0 0.0
  %2306 = vmatprep.subr.mxu0 0.0
  %2307 = vmatpush2.msra.mxu0 0.0
  %2308 = vmatprep.subr.mxu0 0.0
  %2309 = vmatpush2.msra.mxu0 0.0
  %2310 = vmatprep.subr.mxu0 0.0
  %2311 = vmatpush2.msra.mxu0 0.0
  %2312 = vmatprep.subr.mxu0 0.0
  %2313 = vmatpush2.msra.mxu0 0.0
  %2314 = vmatprep.subr.mxu0 0.0
  %2315 = vmatpush2.msra.mxu0 0.0
  %2316 = vmatprep.subr.mxu0 0.0
  %2317 = vmatpush2.msra.mxu0 0.0
  %2318 = vmatprep.subr.mxu0 0.0
  %2319 = vmatpush2.msra.mxu0 0.0
  %2320 = vmatprep.subr.mxu0 0.0
  %2321 = vmatpush2.msra.mxu0 0.0
  %2322 = vmatprep.subr.mxu0 0.0
  %2323 = vmatpush2.msra.mxu0 0.0
  %2324 = vmatprep.subr.mxu0 0.0
  %2325 = vmatpush2.msra.mxu0 0.0
  %2326 = vmatprep.subr.mxu0 0.0
  %2327 = vmatpush2.msra.mxu0 0.0
  %2328 = vmatprep.mubr.f32.mxu0 0.0
  %2329 = vmatmul.mubr.f32.gmra.mxu0 %v2186
  %v2330 = vpop.f32.mrf.mxu0
  %v2331 = vadd.f32 0.0, %v2330
  %v2332 = vpop.f32.mrf.mxu0
  %v2333 = vadd.f32 0.0, %v2332
  %2334 = vdwg.mxu0
  %v2335 = vadd.f32 %v2189, %v2260
  %v2336 = vadd.f32 %v2190, %v2262
  %v2337 = vadd.f32 %v2191, %v2331
  %v2338 = vadd.f32 %v2192, %v2333
  %v2339 = vmul.f32 %v2335, 0.5
  %v2340 = vtanh.pop %v2339
  %v2341 = vadd.f32 %v2340, 1.0
  %v2342 = vmul.f32 %v2341, 0.5
  %v2343 = vmul.f32 %v2336, 0.5
  %v2344 = vtanh.pop %v2343
  %v2345 = vadd.f32 %v2344, 1.0
  %v2346 = vmul.f32 %v2345, 0.5
  %v2347 = vtanh.pop %v2337
  %v2348 = vmul.f32 %v2338, 0.5
  %v2349 = vtanh.pop %v2348
  %v2350 = vadd.f32 %v2349, 1.0
  %v2351 = vmul.f32 %v2350, 0.5
  %v2352 = vmul.f32 %v2346, %v2184
  %v2353 = vmul.f32 %v2342, %v2347
  %v2354 = vadd.f32 %v2352, %v2353
  %v2355 = vtanh.pop %v2354
  %v2356 = vmul.f32 %v2351, %v2355
  %2357 = vst [vmem:[#allocation4] sm:$0xff] %v2356
  %s2358 = smul.addr %s990, 8
  %s2359 = scalar_lea.vmem [#allocation3], %s2358
  %v2360 = vld [vmem:[%s2359] sm:$0xff]
  %v2361 = vld [vmem:[%s2359 + $0x8] sm:$0xff]
  %v2362 = vld [vmem:[%s2359 + $0x10] sm:$0xff]
  %v2363 = vld [vmem:[%s2359 + $0x18] sm:$0xff]
  %2364 = vmatprep.subr.mxu0 %v816
  %2365 = vmatpush1.msra.mxu0 %v815
  %2366 = vmatprep.subr.mxu0 %v812
  %2367 = vmatpush1.msra.mxu0 %v811
  %2368 = vmatprep.subr.mxu0 %v808
  %2369 = vmatpush1.msra.mxu0 %v807
  %2370 = vmatprep.subr.mxu0 %v804
  %2371 = vmatpush1.msra.mxu0 %v803
  %2372 = vmatprep.subr.mxu0 %v800
  %2373 = vmatpush1.msra.mxu0 %v799
  %2374 = vmatprep.subr.mxu0 %v796
  %2375 = vmatpush1.msra.mxu0 %v795
  %2376 = vmatprep.subr.mxu0 %v792
  %2377 = vmatpush1.msra.mxu0 %v791
  %2378 = vmatprep.subr.mxu0 %v788
  %2379 = vmatpush1.msra.mxu0 %v787
  %2380 = vmatprep.subr.mxu0 %v784
  %2381 = vmatpush1.msra.mxu0 %v783
  %2382 = vmatprep.subr.mxu0 %v780
  %2383 = vmatpush1.msra.mxu0 %v779
  %2384 = vmatprep.subr.mxu0 %v776
  %2385 = vmatpush1.msra.mxu0 %v775
  %2386 = vmatprep.subr.mxu0 %v772
  %2387 = vmatpush1.msra.mxu0 %v771
  %2388 = vmatprep.subr.mxu0 %v768
  %2389 = vmatpush1.msra.mxu0 %v767
  %2390 = vmatprep.subr.mxu0 %v764
  %2391 = vmatpush1.msra.mxu0 %v763
  %2392 = vmatprep.subr.mxu0 %v760
  %2393 = vmatpush1.msra.mxu0 %v759
  %2394 = vmatprep.subr.mxu0 %v756
  %2395 = vmatpush1.msra.mxu0 %v755
  %2396 = vmatprep.subr.mxu0 0.0
  %2397 = vmatpush2.msra.mxu0 0.0
  %2398 = vmatprep.subr.mxu0 0.0
  %2399 = vmatpush2.msra.mxu0 0.0
  %2400 = vmatprep.subr.mxu0 0.0
  %2401 = vmatpush2.msra.mxu0 0.0
  %2402 = vmatprep.subr.mxu0 0.0
  %2403 = vmatpush2.msra.mxu0 0.0
  %2404 = vmatprep.subr.mxu0 0.0
  %2405 = vmatpush2.msra.mxu0 0.0
  %2406 = vmatprep.subr.mxu0 0.0
  %2407 = vmatpush2.msra.mxu0 0.0
  %2408 = vmatprep.subr.mxu0 0.0
  %2409 = vmatpush2.msra.mxu0 0.0
  %2410 = vmatprep.subr.mxu0 0.0
  %2411 = vmatpush2.msra.mxu0 0.0
  %2412 = vmatprep.subr.mxu0 0.0
  %2413 = vmatpush2.msra.mxu0 0.0
  %2414 = vmatprep.subr.mxu0 0.0
  %2415 = vmatpush2.msra.mxu0 0.0
  %2416 = vmatprep.subr.mxu0 0.0
  %2417 = vmatpush2.msra.mxu0 0.0
  %2418 = vmatprep.subr.mxu0 0.0
  %2419 = vmatpush2.msra.mxu0 0.0
  %2420 = vmatprep.subr.mxu0 0.0
  %2421 = vmatpush2.msra.mxu0 0.0
  %2422 = vmatprep.subr.mxu0 0.0
  %2423 = vmatpush2.msra.mxu0 0.0
  %2424 = vmatprep.subr.mxu0 0.0
  %2425 = vmatpush2.msra.mxu0 0.0
  %2426 = vmatprep.subr.mxu0 0.0
  %2427 = vmatpush2.msra.mxu0 0.0
  %2428 = vmatprep.mubr.f32.mxu0 0.0
  %2429 = vmatmul.mubr.f32.gmra.mxu0 %v2356
  %v2430 = vpop.f32.mrf.mxu0
  %v2431 = vadd.f32 0.0, %v2430
  %v2432 = vpop.f32.mrf.mxu0
  %v2433 = vadd.f32 0.0, %v2432
  %2434 = vdwg.mxu0
  %2435 = vmatprep.subr.mxu0 %v818
  %2436 = vmatpush1.msra.mxu0 %v817
  %2437 = vmatprep.subr.mxu0 %v814
  %2438 = vmatpush1.msra.mxu0 %v813
  %2439 = vmatprep.subr.mxu0 %v810
  %2440 = vmatpush1.msra.mxu0 %v809
  %2441 = vmatprep.subr.mxu0 %v806
  %2442 = vmatpush1.msra.mxu0 %v805
  %2443 = vmatprep.subr.mxu0 %v802
  %2444 = vmatpush1.msra.mxu0 %v801
  %2445 = vmatprep.subr.mxu0 %v798
  %2446 = vmatpush1.msra.mxu0 %v797
  %2447 = vmatprep.subr.mxu0 %v794
  %2448 = vmatpush1.msra.mxu0 %v793
  %2449 = vmatprep.subr.mxu0 %v790
  %2450 = vmatpush1.msra.mxu0 %v789
  %2451 = vmatprep.subr.mxu0 %v786
  %2452 = vmatpush1.msra.mxu0 %v785
  %2453 = vmatprep.subr.mxu0 %v782
  %2454 = vmatpush1.msra.mxu0 %v781
  %2455 = vmatprep.subr.mxu0 %v778
  %2456 = vmatpush1.msra.mxu0 %v777
  %2457 = vmatprep.subr.mxu0 %v774
  %2458 = vmatpush1.msra.mxu0 %v773
  %2459 = vmatprep.subr.mxu0 %v770
  %2460 = vmatpush1.msra.mxu0 %v769
  %2461 = vmatprep.subr.mxu0 %v766
  %2462 = vmatpush1.msra.mxu0 %v765
  %2463 = vmatprep.subr.mxu0 %v762
  %2464 = vmatpush1.msra.mxu0 %v761
  %2465 = vmatprep.subr.mxu0 %v758
  %2466 = vmatpush1.msra.mxu0 %v757
  %2467 = vmatprep.subr.mxu0 0.0
  %2468 = vmatpush2.msra.mxu0 0.0
  %2469 = vmatprep.subr.mxu0 0.0
  %2470 = vmatpush2.msra.mxu0 0.0
  %2471 = vmatprep.subr.mxu0 0.0
  %2472 = vmatpush2.msra.mxu0 0.0
  %2473 = vmatprep.subr.mxu0 0.0
  %2474 = vmatpush2.msra.mxu0 0.0
  %2475 = vmatprep.subr.mxu0 0.0
  %2476 = vmatpush2.msra.mxu0 0.0
  %2477 = vmatprep.subr.mxu0 0.0
  %2478 = vmatpush2.msra.mxu0 0.0
  %2479 = vmatprep.subr.mxu0 0.0
  %2480 = vmatpush2.msra.mxu0 0.0
  %2481 = vmatprep.subr.mxu0 0.0
  %2482 = vmatpush2.msra.mxu0 0.0
  %2483 = vmatprep.subr.mxu0 0.0
  %2484 = vmatpush2.msra.mxu0 0.0
  %2485 = vmatprep.subr.mxu0 0.0
  %2486 = vmatpush2.msra.mxu0 0.0
  %2487 = vmatprep.subr.mxu0 0.0
  %2488 = vmatpush2.msra.mxu0 0.0
  %2489 = vmatprep.subr.mxu0 0.0
  %2490 = vmatpush2.msra.mxu0 0.0
  %2491 = vmatprep.subr.mxu0 0.0
  %2492 = vmatpush2.msra.mxu0 0.0
  %2493 = vmatprep.subr.mxu0 0.0
  %2494 = vmatpush2.msra.mxu0 0.0
  %2495 = vmatprep.subr.mxu0 0.0
  %2496 = vmatpush2.msra.mxu0 0.0
  %2497 = vmatprep.subr.mxu0 0.0
  %2498 = vmatpush2.msra.mxu0 0.0
  %2499 = vmatprep.mubr.f32.mxu0 0.0
  %2500 = vmatmul.mubr.f32.gmra.mxu0 %v2356
  %v2501 = vpop.f32.mrf.mxu0
  %v2502 = vadd.f32 0.0, %v2501
  %v2503 = vpop.f32.mrf.mxu0
  %v2504 = vadd.f32 0.0, %v2503
  %2505 = vdwg.mxu0
  %v2506 = vadd.f32 %v2360, %v2431
  %v2507 = vadd.f32 %v2361, %v2433
  %v2508 = vadd.f32 %v2362, %v2502
  %v2509 = vadd.f32 %v2363, %v2504
  %v2510 = vmul.f32 %v2506, 0.5
  %v2511 = vtanh.pop %v2510
  %v2512 = vadd.f32 %v2511, 1.0
  %v2513 = vmul.f32 %v2512, 0.5
  %v2514 = vmul.f32 %v2507, 0.5
  %v2515 = vtanh.pop %v2514
  %v2516 = vadd.f32 %v2515, 1.0
  %v2517 = vmul.f32 %v2516, 0.5
  %v2518 = vtanh.pop %v2508
  %v2519 = vmul.f32 %v2509, 0.5
  %v2520 = vtanh.pop %v2519
  %v2521 = vadd.f32 %v2520, 1.0
  %v2522 = vmul.f32 %v2521, 0.5
  %v2523 = vmul.f32 %v2517, %v2354
  %v2524 = vmul.f32 %v2513, %v2518
  %v2525 = vadd.f32 %v2523, %v2524
  %v2526 = vtanh.pop %v2525
  %v2527 = vmul.f32 %v2522, %v2526
  %s2528 = scalar_lea.vmem [#allocation4], 8
  %2529 = vst [vmem:[%s2528] sm:$0xff] %v2527
  %s2530 = smul.addr %s1161, 8
  %s2531 = scalar_lea.vmem [#allocation3], %s2530
  %v2532 = vld [vmem:[%s2531] sm:$0xff]
  %v2533 = vld [vmem:[%s2531 + $0x8] sm:$0xff]
  %v2534 = vld [vmem:[%s2531 + $0x10] sm:$0xff]
  %v2535 = vld [vmem:[%s2531 + $0x18] sm:$0xff]
  %2536 = vmatprep.subr.mxu0 %v816
  %2537 = vmatpush1.msra.mxu0 %v815
  %2538 = vmatprep.subr.mxu0 %v812
  %2539 = vmatpush1.msra.mxu0 %v811
  %2540 = vmatprep.subr.mxu0 %v808
  %2541 = vmatpush1.msra.mxu0 %v807
  %2542 = vmatprep.subr.mxu0 %v804
  %2543 = vmatpush1.msra.mxu0 %v803
  %2544 = vmatprep.subr.mxu0 %v800
  %2545 = vmatpush1.msra.mxu0 %v799
  %2546 = vmatprep.subr.mxu0 %v796
  %2547 = vmatpush1.msra.mxu0 %v795
  %2548 = vmatprep.subr.mxu0 %v792
  %2549 = vmatpush1.msra.mxu0 %v791
  %2550 = vmatprep.subr.mxu0 %v788
  %2551 = vmatpush1.msra.mxu0 %v787
  %2552 = vmatprep.subr.mxu0 %v784
  %2553 = vmatpush1.msra.mxu0 %v783
  %2554 = vmatprep.subr.mxu0 %v780
  %2555 = vmatpush1.msra.mxu0 %v779
  %2556 = vmatprep.subr.mxu0 %v776
  %2557 = vmatpush1.msra.mxu0 %v775
  %2558 = vmatprep.subr.mxu0 %v772
  %2559 = vmatpush1.msra.mxu0 %v771
  %2560 = vmatprep.subr.mxu0 %v768
  %2561 = vmatpush1.msra.mxu0 %v767
  %2562 = vmatprep.subr.mxu0 %v764
  %2563 = vmatpush1.msra.mxu0 %v763
  %2564 = vmatprep.subr.mxu0 %v760
  %2565 = vmatpush1.msra.mxu0 %v759
  %2566 = vmatprep.subr.mxu0 %v756
  %2567 = vmatpush1.msra.mxu0 %v755
  %2568 = vmatprep.subr.mxu0 0.0
  %2569 = vmatpush2.msra.mxu0 0.0
  %2570 = vmatprep.subr.mxu0 0.0
  %2571 = vmatpush2.msra.mxu0 0.0
  %2572 = vmatprep.subr.mxu0 0.0
  %2573 = vmatpush2.msra.mxu0 0.0
  %2574 = vmatprep.subr.mxu0 0.0
  %2575 = vmatpush2.msra.mxu0 0.0
  %2576 = vmatprep.subr.mxu0 0.0
  %2577 = vmatpush2.msra.mxu0 0.0
  %2578 = vmatprep.subr.mxu0 0.0
  %2579 = vmatpush2.msra.mxu0 0.0
  %2580 = vmatprep.subr.mxu0 0.0
  %2581 = vmatpush2.msra.mxu0 0.0
  %2582 = vmatprep.subr.mxu0 0.0
  %2583 = vmatpush2.msra.mxu0 0.0
  %2584 = vmatprep.subr.mxu0 0.0
  %2585 = vmatpush2.msra.mxu0 0.0
  %2586 = vmatprep.subr.mxu0 0.0
  %2587 = vmatpush2.msra.mxu0 0.0
  %2588 = vmatprep.subr.mxu0 0.0
  %2589 = vmatpush2.msra.mxu0 0.0
  %2590 = vmatprep.subr.mxu0 0.0
  %2591 = vmatpush2.msra.mxu0 0.0
  %2592 = vmatprep.subr.mxu0 0.0
  %2593 = vmatpush2.msra.mxu0 0.0
  %2594 = vmatprep.subr.mxu0 0.0
  %2595 = vmatpush2.msra.mxu0 0.0
  %2596 = vmatprep.subr.mxu0 0.0
  %2597 = vmatpush2.msra.mxu0 0.0
  %2598 = vmatprep.subr.mxu0 0.0
  %2599 = vmatpush2.msra.mxu0 0.0
  %2600 = vmatprep.mubr.f32.mxu0 0.0
  %2601 = vmatmul.mubr.f32.gmra.mxu0 %v2527
  %v2602 = vpop.f32.mrf.mxu0
  %v2603 = vadd.f32 0.0, %v2602
  %v2604 = vpop.f32.mrf.mxu0
  %v2605 = vadd.f32 0.0, %v2604
  %2606 = vdwg.mxu0
  %2607 = vmatprep.subr.mxu0 %v818
  %2608 = vmatpush1.msra.mxu0 %v817
  %2609 = vmatprep.subr.mxu0 %v814
  %2610 = vmatpush1.msra.mxu0 %v813
  %2611 = vmatprep.subr.mxu0 %v810
  %2612 = vmatpush1.msra.mxu0 %v809
  %2613 = vmatprep.subr.mxu0 %v806
  %2614 = vmatpush1.msra.mxu0 %v805
  %2615 = vmatprep.subr.mxu0 %v802
  %2616 = vmatpush1.msra.mxu0 %v801
  %2617 = vmatprep.subr.mxu0 %v798
  %2618 = vmatpush1.msra.mxu0 %v797
  %2619 = vmatprep.subr.mxu0 %v794
  %2620 = vmatpush1.msra.mxu0 %v793
  %2621 = vmatprep.subr.mxu0 %v790
  %2622 = vmatpush1.msra.mxu0 %v789
  %2623 = vmatprep.subr.mxu0 %v786
  %2624 = vmatpush1.msra.mxu0 %v785
  %2625 = vmatprep.subr.mxu0 %v782
  %2626 = vmatpush1.msra.mxu0 %v781
  %2627 = vmatprep.subr.mxu0 %v778
  %2628 = vmatpush1.msra.mxu0 %v777
  %2629 = vmatprep.subr.mxu0 %v774
  %2630 = vmatpush1.msra.mxu0 %v773
  %2631 = vmatprep.subr.mxu0 %v770
  %2632 = vmatpush1.msra.mxu0 %v769
  %2633 = vmatprep.subr.mxu0 %v766
  %2634 = vmatpush1.msra.mxu0 %v765
  %2635 = vmatprep.subr.mxu0 %v762
  %2636 = vmatpush1.msra.mxu0 %v761
  %2637 = vmatprep.subr.mxu0 %v758
  %2638 = vmatpush1.msra.mxu0 %v757
  %2639 = vmatprep.subr.mxu0 0.0
  %2640 = vmatpush2.msra.mxu0 0.0
  %2641 = vmatprep.subr.mxu0 0.0
  %2642 = vmatpush2.msra.mxu0 0.0
  %2643 = vmatprep.subr.mxu0 0.0
  %2644 = vmatpush2.msra.mxu0 0.0
  %2645 = vmatprep.subr.mxu0 0.0
  %2646 = vmatpush2.msra.mxu0 0.0
  %2647 = vmatprep.subr.mxu0 0.0
  %2648 = vmatpush2.msra.mxu0 0.0
  %2649 = vmatprep.subr.mxu0 0.0
  %2650 = vmatpush2.msra.mxu0 0.0
  %2651 = vmatprep.subr.mxu0 0.0
  %2652 = vmatpush2.msra.mxu0 0.0
  %2653 = vmatprep.subr.mxu0 0.0
  %2654 = vmatpush2.msra.mxu0 0.0
  %2655 = vmatprep.subr.mxu0 0.0
  %2656 = vmatpush2.msra.mxu0 0.0
  %2657 = vmatprep.subr.mxu0 0.0
  %2658 = vmatpush2.msra.mxu0 0.0
  %2659 = vmatprep.subr.mxu0 0.0
  %2660 = vmatpush2.msra.mxu0 0.0
  %2661 = vmatprep.subr.mxu0 0.0
  %2662 = vmatpush2.msra.mxu0 0.0
  %2663 = vmatprep.subr.mxu0 0.0
  %2664 = vmatpush2.msra.mxu0 0.0
  %2665 = vmatprep.subr.mxu0 0.0
  %2666 = vmatpush2.msra.mxu0 0.0
  %2667 = vmatprep.subr.mxu0 0.0
  %2668 = vmatpush2.msra.mxu0 0.0
  %2669 = vmatprep.subr.mxu0 0.0
  %2670 = vmatpush2.msra.mxu0 0.0
  %2671 = vmatprep.mubr.f32.mxu0 0.0
  %2672 = vmatmul.mubr.f32.gmra.mxu0 %v2527
  %v2673 = vpop.f32.mrf.mxu0
  %v2674 = vadd.f32 0.0, %v2673
  %v2675 = vpop.f32.mrf.mxu0
  %v2676 = vadd.f32 0.0, %v2675
  %2677 = vdwg.mxu0
  %v2678 = vadd.f32 %v2532, %v2603
  %v2679 = vadd.f32 %v2533, %v2605
  %v2680 = vadd.f32 %v2534, %v2674
  %v2681 = vadd.f32 %v2535, %v2676
  %v2682 = vmul.f32 %v2678, 0.5
  %v2683 = vtanh.pop %v2682
  %v2684 = vadd.f32 %v2683, 1.0
  %v2685 = vmul.f32 %v2684, 0.5
  %v2686 = vmul.f32 %v2679, 0.5
  %v2687 = vtanh.pop %v2686
  %v2688 = vadd.f32 %v2687, 1.0
  %v2689 = vmul.f32 %v2688, 0.5
  %v2690 = vtanh.pop %v2680
  %v2691 = vmul.f32 %v2681, 0.5
  %v2692 = vtanh.pop %v2691
  %v2693 = vadd.f32 %v2692, 1.0
  %v2694 = vmul.f32 %v2693, 0.5
  %v2695 = vmul.f32 %v2689, %v2525
  %v2696 = vmul.f32 %v2685, %v2690
  %v2697 = vadd.f32 %v2695, %v2696
  %v2698 = vtanh.pop %v2697
  %v2699 = vmul.f32 %v2694, %v2698
  %s2700 = scalar_lea.vmem [#allocation4], 16
  %2701 = vst [vmem:[%s2700] sm:$0xff] %v2699
  %s2702 = smul.addr %s1332, 8
  %s2703 = scalar_lea.vmem [#allocation3], %s2702
  %v2704 = vld [vmem:[%s2703] sm:$0xff]
  %v2705 = vld [vmem:[%s2703 + $0x8] sm:$0xff]
  %v2706 = vld [vmem:[%s2703 + $0x10] sm:$0xff]
  %v2707 = vld [vmem:[%s2703 + $0x18] sm:$0xff]
  %2708 = vmatprep.subr.mxu0 %v816
  %2709 = vmatpush1.msra.mxu0 %v815
  %2710 = vmatprep.subr.mxu0 %v812
  %2711 = vmatpush1.msra.mxu0 %v811
  %2712 = vmatprep.subr.mxu0 %v808
  %2713 = vmatpush1.msra.mxu0 %v807
  %2714 = vmatprep.subr.mxu0 %v804
  %2715 = vmatpush1.msra.mxu0 %v803
  %2716 = vmatprep.subr.mxu0 %v800
  %2717 = vmatpush1.msra.mxu0 %v799
  %2718 = vmatprep.subr.mxu0 %v796
  %2719 = vmatpush1.msra.mxu0 %v795
  %2720 = vmatprep.subr.mxu0 %v792
  %2721 = vmatpush1.msra.mxu0 %v791
  %2722 = vmatprep.subr.mxu0 %v788
  %2723 = vmatpush1.msra.mxu0 %v787
  %2724 = vmatprep.subr.mxu0 %v784
  %2725 = vmatpush1.msra.mxu0 %v783
  %2726 = vmatprep.subr.mxu0 %v780
  %2727 = vmatpush1.msra.mxu0 %v779
  %2728 = vmatprep.subr.mxu0 %v776
  %2729 = vmatpush1.msra.mxu0 %v775
  %2730 = vmatprep.subr.mxu0 %v772
  %2731 = vmatpush1.msra.mxu0 %v771
  %2732 = vmatprep.subr.mxu0 %v768
  %2733 = vmatpush1.msra.mxu0 %v767
  %2734 = vmatprep.subr.mxu0 %v764
  %2735 = vmatpush1.msra.mxu0 %v763
  %2736 = vmatprep.subr.mxu0 %v760
  %2737 = vmatpush1.msra.mxu0 %v759
  %2738 = vmatprep.subr.mxu0 %v756
  %2739 = vmatpush1.msra.mxu0 %v755
  %2740 = vmatprep.subr.mxu0 0.0
  %2741 = vmatpush2.msra.mxu0 0.0
  %2742 = vmatprep.subr.mxu0 0.0
  %2743 = vmatpush2.msra.mxu0 0.0
  %2744 = vmatprep.subr.mxu0 0.0
  %2745 = vmatpush2.msra.mxu0 0.0
  %2746 = vmatprep.subr.mxu0 0.0
  %2747 = vmatpush2.msra.mxu0 0.0
  %2748 = vmatprep.subr.mxu0 0.0
  %2749 = vmatpush2.msra.mxu0 0.0
  %2750 = vmatprep.subr.mxu0 0.0
  %2751 = vmatpush2.msra.mxu0 0.0
  %2752 = vmatprep.subr.mxu0 0.0
  %2753 = vmatpush2.msra.mxu0 0.0
  %2754 = vmatprep.subr.mxu0 0.0
  %2755 = vmatpush2.msra.mxu0 0.0
  %2756 = vmatprep.subr.mxu0 0.0
  %2757 = vmatpush2.msra.mxu0 0.0
  %2758 = vmatprep.subr.mxu0 0.0
  %2759 = vmatpush2.msra.mxu0 0.0
  %2760 = vmatprep.subr.mxu0 0.0
  %2761 = vmatpush2.msra.mxu0 0.0
  %2762 = vmatprep.subr.mxu0 0.0
  %2763 = vmatpush2.msra.mxu0 0.0
  %2764 = vmatprep.subr.mxu0 0.0
  %2765 = vmatpush2.msra.mxu0 0.0
  %2766 = vmatprep.subr.mxu0 0.0
  %2767 = vmatpush2.msra.mxu0 0.0
  %2768 = vmatprep.subr.mxu0 0.0
  %2769 = vmatpush2.msra.mxu0 0.0
  %2770 = vmatprep.subr.mxu0 0.0
  %2771 = vmatpush2.msra.mxu0 0.0
  %2772 = vmatprep.mubr.f32.mxu0 0.0
  %2773 = vmatmul.mubr.f32.gmra.mxu0 %v2699
  %v2774 = vpop.f32.mrf.mxu0
  %v2775 = vadd.f32 0.0, %v2774
  %v2776 = vpop.f32.mrf.mxu0
  %v2777 = vadd.f32 0.0, %v2776
  %2778 = vdwg.mxu0
  %2779 = vmatprep.subr.mxu0 %v818
  %2780 = vmatpush1.msra.mxu0 %v817
  %2781 = vmatprep.subr.mxu0 %v814
  %2782 = vmatpush1.msra.mxu0 %v813
  %2783 = vmatprep.subr.mxu0 %v810
  %2784 = vmatpush1.msra.mxu0 %v809
  %2785 = vmatprep.subr.mxu0 %v806
  %2786 = vmatpush1.msra.mxu0 %v805
  %2787 = vmatprep.subr.mxu0 %v802
  %2788 = vmatpush1.msra.mxu0 %v801
  %2789 = vmatprep.subr.mxu0 %v798
  %2790 = vmatpush1.msra.mxu0 %v797
  %2791 = vmatprep.subr.mxu0 %v794
  %2792 = vmatpush1.msra.mxu0 %v793
  %2793 = vmatprep.subr.mxu0 %v790
  %2794 = vmatpush1.msra.mxu0 %v789
  %2795 = vmatprep.subr.mxu0 %v786
  %2796 = vmatpush1.msra.mxu0 %v785
  %2797 = vmatprep.subr.mxu0 %v782
  %2798 = vmatpush1.msra.mxu0 %v781
  %2799 = vmatprep.subr.mxu0 %v778
  %2800 = vmatpush1.msra.mxu0 %v777
  %2801 = vmatprep.subr.mxu0 %v774
  %2802 = vmatpush1.msra.mxu0 %v773
  %2803 = vmatprep.subr.mxu0 %v770
  %2804 = vmatpush1.msra.mxu0 %v769
  %2805 = vmatprep.subr.mxu0 %v766
  %2806 = vmatpush1.msra.mxu0 %v765
  %2807 = vmatprep.subr.mxu0 %v762
  %2808 = vmatpush1.msra.mxu0 %v761
  %2809 = vmatprep.subr.mxu0 %v758
  %2810 = vmatpush1.msra.mxu0 %v757
  %2811 = vmatprep.subr.mxu0 0.0
  %2812 = vmatpush2.msra.mxu0 0.0
  %2813 = vmatprep.subr.mxu0 0.0
  %2814 = vmatpush2.msra.mxu0 0.0
  %2815 = vmatprep.subr.mxu0 0.0
  %2816 = vmatpush2.msra.mxu0 0.0
  %2817 = vmatprep.subr.mxu0 0.0
  %2818 = vmatpush2.msra.mxu0 0.0
  %2819 = vmatprep.subr.mxu0 0.0
  %2820 = vmatpush2.msra.mxu0 0.0
  %2821 = vmatprep.subr.mxu0 0.0
  %2822 = vmatpush2.msra.mxu0 0.0
  %2823 = vmatprep.subr.mxu0 0.0
  %2824 = vmatpush2.msra.mxu0 0.0
  %2825 = vmatprep.subr.mxu0 0.0
  %2826 = vmatpush2.msra.mxu0 0.0
  %2827 = vmatprep.subr.mxu0 0.0
  %2828 = vmatpush2.msra.mxu0 0.0
  %2829 = vmatprep.subr.mxu0 0.0
  %2830 = vmatpush2.msra.mxu0 0.0
  %2831 = vmatprep.subr.mxu0 0.0
  %2832 = vmatpush2.msra.mxu0 0.0
  %2833 = vmatprep.subr.mxu0 0.0
  %2834 = vmatpush2.msra.mxu0 0.0
  %2835 = vmatprep.subr.mxu0 0.0
  %2836 = vmatpush2.msra.mxu0 0.0
  %2837 = vmatprep.subr.mxu0 0.0
  %2838 = vmatpush2.msra.mxu0 0.0
  %2839 = vmatprep.subr.mxu0 0.0
  %2840 = vmatpush2.msra.mxu0 0.0
  %2841 = vmatprep.subr.mxu0 0.0
  %2842 = vmatpush2.msra.mxu0 0.0
  %2843 = vmatprep.mubr.f32.mxu0 0.0
  %2844 = vmatmul.mubr.f32.gmra.mxu0 %v2699
  %v2845 = vpop.f32.mrf.mxu0
  %v2846 = vadd.f32 0.0, %v2845
  %v2847 = vpop.f32.mrf.mxu0
  %v2848 = vadd.f32 0.0, %v2847
  %2849 = vdwg.mxu0
  %v2850 = vadd.f32 %v2704, %v2775
  %v2851 = vadd.f32 %v2705, %v2777
  %v2852 = vadd.f32 %v2706, %v2846
  %v2853 = vadd.f32 %v2707, %v2848
  %v2854 = vmul.f32 %v2850, 0.5
  %v2855 = vtanh.pop %v2854
  %v2856 = vadd.f32 %v2855, 1.0
  %v2857 = vmul.f32 %v2856, 0.5
  %v2858 = vmul.f32 %v2851, 0.5
  %v2859 = vtanh.pop %v2858
  %v2860 = vadd.f32 %v2859, 1.0
  %v2861 = vmul.f32 %v2860, 0.5
  %v2862 = vtanh.pop %v2852
  %v2863 = vmul.f32 %v2853, 0.5
  %v2864 = vtanh.pop %v2863
  %v2865 = vadd.f32 %v2864, 1.0
  %v2866 = vmul.f32 %v2865, 0.5
  %v2867 = vmul.f32 %v2861, %v2697
  %v2868 = vmul.f32 %v2857, %v2862
  %v2869 = vadd.f32 %v2867, %v2868
  %v2870 = vtanh.pop %v2869
  %v2871 = vmul.f32 %v2866, %v2870
  %s2872 = scalar_lea.vmem [#allocation4], 24
  %2873 = vst [vmem:[%s2872] sm:$0xff] %v2871
  %s2874 = smul.addr %s1503, 8
  %s2875 = scalar_lea.vmem [#allocation3], %s2874
  %v2876 = vld [vmem:[%s2875] sm:$0xff]
  %v2877 = vld [vmem:[%s2875 + $0x8] sm:$0xff]
  %v2878 = vld [vmem:[%s2875 + $0x10] sm:$0xff]
  %v2879 = vld [vmem:[%s2875 + $0x18] sm:$0xff]
  %2880 = vmatprep.subr.mxu0 %v816
  %2881 = vmatpush1.msra.mxu0 %v815
  %2882 = vmatprep.subr.mxu0 %v812
  %2883 = vmatpush1.msra.mxu0 %v811
  %2884 = vmatprep.subr.mxu0 %v808
  %2885 = vmatpush1.msra.mxu0 %v807
  %2886 = vmatprep.subr.mxu0 %v804
  %2887 = vmatpush1.msra.mxu0 %v803
  %2888 = vmatprep.subr.mxu0 %v800
  %2889 = vmatpush1.msra.mxu0 %v799
  %2890 = vmatprep.subr.mxu0 %v796
  %2891 = vmatpush1.msra.mxu0 %v795
  %2892 = vmatprep.subr.mxu0 %v792
  %2893 = vmatpush1.msra.mxu0 %v791
  %2894 = vmatprep.subr.mxu0 %v788
  %2895 = vmatpush1.msra.mxu0 %v787
  %2896 = vmatprep.subr.mxu0 %v784
  %2897 = vmatpush1.msra.mxu0 %v783
  %2898 = vmatprep.subr.mxu0 %v780
  %2899 = vmatpush1.msra.mxu0 %v779
  %2900 = vmatprep.subr.mxu0 %v776
  %2901 = vmatpush1.msra.mxu0 %v775
  %2902 = vmatprep.subr.mxu0 %v772
  %2903 = vmatpush1.msra.mxu0 %v771
  %2904 = vmatprep.subr.mxu0 %v768
  %2905 = vmatpush1.msra.mxu0 %v767
  %2906 = vmatprep.subr.mxu0 %v764
  %2907 = vmatpush1.msra.mxu0 %v763
  %2908 = vmatprep.subr.mxu0 %v760
  %2909 = vmatpush1.msra.mxu0 %v759
  %2910 = vmatprep.subr.mxu0 %v756
  %2911 = vmatpush1.msra.mxu0 %v755
  %2912 = vmatprep.subr.mxu0 0.0
  %2913 = vmatpush2.msra.mxu0 0.0
  %2914 = vmatprep.subr.mxu0 0.0
  %2915 = vmatpush2.msra.mxu0 0.0
  %2916 = vmatprep.subr.mxu0 0.0
  %2917 = vmatpush2.msra.mxu0 0.0
  %2918 = vmatprep.subr.mxu0 0.0
  %2919 = vmatpush2.msra.mxu0 0.0
  %2920 = vmatprep.subr.mxu0 0.0
  %2921 = vmatpush2.msra.mxu0 0.0
  %2922 = vmatprep.subr.mxu0 0.0
  %2923 = vmatpush2.msra.mxu0 0.0
  %2924 = vmatprep.subr.mxu0 0.0
  %2925 = vmatpush2.msra.mxu0 0.0
  %2926 = vmatprep.subr.mxu0 0.0
  %2927 = vmatpush2.msra.mxu0 0.0
  %2928 = vmatprep.subr.mxu0 0.0
  %2929 = vmatpush2.msra.mxu0 0.0
  %2930 = vmatprep.subr.mxu0 0.0
  %2931 = vmatpush2.msra.mxu0 0.0
  %2932 = vmatprep.subr.mxu0 0.0
  %2933 = vmatpush2.msra.mxu0 0.0
  %2934 = vmatprep.subr.mxu0 0.0
  %2935 = vmatpush2.msra.mxu0 0.0
  %2936 = vmatprep.subr.mxu0 0.0
  %2937 = vmatpush2.msra.mxu0 0.0
  %2938 = vmatprep.subr.mxu0 0.0
  %2939 = vmatpush2.msra.mxu0 0.0
  %2940 = vmatprep.subr.mxu0 0.0
  %2941 = vmatpush2.msra.mxu0 0.0
  %2942 = vmatprep.subr.mxu0 0.0
  %2943 = vmatpush2.msra.mxu0 0.0
  %2944 = vmatprep.mubr.f32.mxu0 0.0
  %2945 = vmatmul.mubr.f32.gmra.mxu0 %v2871
  %v2946 = vpop.f32.mrf.mxu0
  %v2947 = vadd.f32 0.0, %v2946
  %v2948 = vpop.f32.mrf.mxu0
  %v2949 = vadd.f32 0.0, %v2948
  %2950 = vdwg.mxu0
  %2951 = vmatprep.subr.mxu0 %v818
  %2952 = vmatpush1.msra.mxu0 %v817
  %2953 = vmatprep.subr.mxu0 %v814
  %2954 = vmatpush1.msra.mxu0 %v813
  %2955 = vmatprep.subr.mxu0 %v810
  %2956 = vmatpush1.msra.mxu0 %v809
  %2957 = vmatprep.subr.mxu0 %v806
  %2958 = vmatpush1.msra.mxu0 %v805
  %2959 = vmatprep.subr.mxu0 %v802
  %2960 = vmatpush1.msra.mxu0 %v801
  %2961 = vmatprep.subr.mxu0 %v798
  %2962 = vmatpush1.msra.mxu0 %v797
  %2963 = vmatprep.subr.mxu0 %v794
  %2964 = vmatpush1.msra.mxu0 %v793
  %2965 = vmatprep.subr.mxu0 %v790
  %2966 = vmatpush1.msra.mxu0 %v789
  %2967 = vmatprep.subr.mxu0 %v786
  %2968 = vmatpush1.msra.mxu0 %v785
  %2969 = vmatprep.subr.mxu0 %v782
  %2970 = vmatpush1.msra.mxu0 %v781
  %2971 = vmatprep.subr.mxu0 %v778
  %2972 = vmatpush1.msra.mxu0 %v777
  %2973 = vmatprep.subr.mxu0 %v774
  %2974 = vmatpush1.msra.mxu0 %v773
  %2975 = vmatprep.subr.mxu0 %v770
  %2976 = vmatpush1.msra.mxu0 %v769
  %2977 = vmatprep.subr.mxu0 %v766
  %2978 = vmatpush1.msra.mxu0 %v765
  %2979 = vmatprep.subr.mxu0 %v762
  %2980 = vmatpush1.msra.mxu0 %v761
  %2981 = vmatprep.subr.mxu0 %v758
  %2982 = vmatpush1.msra.mxu0 %v757
  %2983 = vmatprep.subr.mxu0 0.0
  %2984 = vmatpush2.msra.mxu0 0.0
  %2985 = vmatprep.subr.mxu0 0.0
  %2986 = vmatpush2.msra.mxu0 0.0
  %2987 = vmatprep.subr.mxu0 0.0
  %2988 = vmatpush2.msra.mxu0 0.0
  %2989 = vmatprep.subr.mxu0 0.0
  %2990 = vmatpush2.msra.mxu0 0.0
  %2991 = vmatprep.subr.mxu0 0.0
  %2992 = vmatpush2.msra.mxu0 0.0
  %2993 = vmatprep.subr.mxu0 0.0
  %2994 = vmatpush2.msra.mxu0 0.0
  %2995 = vmatprep.subr.mxu0 0.0
  %2996 = vmatpush2.msra.mxu0 0.0
  %2997 = vmatprep.subr.mxu0 0.0
  %2998 = vmatpush2.msra.mxu0 0.0
  %2999 = vmatprep.subr.mxu0 0.0
  %3000 = vmatpush2.msra.mxu0 0.0
  %3001 = vmatprep.subr.mxu0 0.0
  %3002 = vmatpush2.msra.mxu0 0.0
  %3003 = vmatprep.subr.mxu0 0.0
  %3004 = vmatpush2.msra.mxu0 0.0
  %3005 = vmatprep.subr.mxu0 0.0
  %3006 = vmatpush2.msra.mxu0 0.0
  %3007 = vmatprep.subr.mxu0 0.0
  %3008 = vmatpush2.msra.mxu0 0.0
  %3009 = vmatprep.subr.mxu0 0.0
  %3010 = vmatpush2.msra.mxu0 0.0
  %3011 = vmatprep.subr.mxu0 0.0
  %3012 = vmatpush2.msra.mxu0 0.0
  %3013 = vmatprep.subr.mxu0 0.0
  %3014 = vmatpush2.msra.mxu0 0.0
  %3015 = vmatprep.mubr.f32.mxu0 0.0
  %3016 = vmatmul.mubr.f32.gmra.mxu0 %v2871
  %v3017 = vpop.f32.mrf.mxu0
  %v3018 = vadd.f32 0.0, %v3017
  %v3019 = vpop.f32.mrf.mxu0
  %v3020 = vadd.f32 0.0, %v3019
  %3021 = vdwg.mxu0
  %v3022 = vadd.f32 %v2876, %v2947
  %v3023 = vadd.f32 %v2877, %v2949
  %v3024 = vadd.f32 %v2878, %v3018
  %v3025 = vadd.f32 %v2879, %v3020
  %v3026 = vmul.f32 %v3022, 0.5
  %v3027 = vtanh.pop %v3026
  %v3028 = vadd.f32 %v3027, 1.0
  %v3029 = vmul.f32 %v3028, 0.5
  %v3030 = vmul.f32 %v3023, 0.5
  %v3031 = vtanh.pop %v3030
  %v3032 = vadd.f32 %v3031, 1.0
  %v3033 = vmul.f32 %v3032, 0.5
  %v3034 = vtanh.pop %v3024
  %v3035 = vmul.f32 %v3025, 0.5
  %v3036 = vtanh.pop %v3035
  %v3037 = vadd.f32 %v3036, 1.0
  %v3038 = vmul.f32 %v3037, 0.5
  %v3039 = vmul.f32 %v3033, %v2869
  %v3040 = vmul.f32 %v3029, %v3034
  %v3041 = vadd.f32 %v3039, %v3040
  %v3042 = vtanh.pop %v3041
  %v3043 = vmul.f32 %v3038, %v3042
  %s3044 = scalar_lea.vmem [#allocation4], 32
  %3045 = vst [vmem:[%s3044] sm:$0xff] %v3043
  %s3046 = smul.addr %s1674, 8
  %s3047 = scalar_lea.vmem [#allocation3], %s3046
  %v3048 = vld [vmem:[%s3047] sm:$0xff]
  %v3049 = vld [vmem:[%s3047 + $0x8] sm:$0xff]
  %v3050 = vld [vmem:[%s3047 + $0x10] sm:$0xff]
  %v3051 = vld [vmem:[%s3047 + $0x18] sm:$0xff]
  %3052 = vmatprep.subr.mxu0 %v816
  %3053 = vmatpush1.msra.mxu0 %v815
  %3054 = vmatprep.subr.mxu0 %v812
  %3055 = vmatpush1.msra.mxu0 %v811
  %3056 = vmatprep.subr.mxu0 %v808
  %3057 = vmatpush1.msra.mxu0 %v807
  %3058 = vmatprep.subr.mxu0 %v804
  %3059 = vmatpush1.msra.mxu0 %v803
  %3060 = vmatprep.subr.mxu0 %v800
  %3061 = vmatpush1.msra.mxu0 %v799
  %3062 = vmatprep.subr.mxu0 %v796
  %3063 = vmatpush1.msra.mxu0 %v795
  %3064 = vmatprep.subr.mxu0 %v792
  %3065 = vmatpush1.msra.mxu0 %v791
  %3066 = vmatprep.subr.mxu0 %v788
  %3067 = vmatpush1.msra.mxu0 %v787
  %3068 = vmatprep.subr.mxu0 %v784
  %3069 = vmatpush1.msra.mxu0 %v783
  %3070 = vmatprep.subr.mxu0 %v780
  %3071 = vmatpush1.msra.mxu0 %v779
  %3072 = vmatprep.subr.mxu0 %v776
  %3073 = vmatpush1.msra.mxu0 %v775
  %3074 = vmatprep.subr.mxu0 %v772
  %3075 = vmatpush1.msra.mxu0 %v771
  %3076 = vmatprep.subr.mxu0 %v768
  %3077 = vmatpush1.msra.mxu0 %v767
  %3078 = vmatprep.subr.mxu0 %v764
  %3079 = vmatpush1.msra.mxu0 %v763
  %3080 = vmatprep.subr.mxu0 %v760
  %3081 = vmatpush1.msra.mxu0 %v759
  %3082 = vmatprep.subr.mxu0 %v756
  %3083 = vmatpush1.msra.mxu0 %v755
  %3084 = vmatprep.subr.mxu0 0.0
  %3085 = vmatpush2.msra.mxu0 0.0
  %3086 = vmatprep.subr.mxu0 0.0
  %3087 = vmatpush2.msra.mxu0 0.0
  %3088 = vmatprep.subr.mxu0 0.0
  %3089 = vmatpush2.msra.mxu0 0.0
  %3090 = vmatprep.subr.mxu0 0.0
  %3091 = vmatpush2.msra.mxu0 0.0
  %3092 = vmatprep.subr.mxu0 0.0
  %3093 = vmatpush2.msra.mxu0 0.0
  %3094 = vmatprep.subr.mxu0 0.0
  %3095 = vmatpush2.msra.mxu0 0.0
  %3096 = vmatprep.subr.mxu0 0.0
  %3097 = vmatpush2.msra.mxu0 0.0
  %3098 = vmatprep.subr.mxu0 0.0
  %3099 = vmatpush2.msra.mxu0 0.0
  %3100 = vmatprep.subr.mxu0 0.0
  %3101 = vmatpush2.msra.mxu0 0.0
  %3102 = vmatprep.subr.mxu0 0.0
  %3103 = vmatpush2.msra.mxu0 0.0
  %3104 = vmatprep.subr.mxu0 0.0
  %3105 = vmatpush2.msra.mxu0 0.0
  %3106 = vmatprep.subr.mxu0 0.0
  %3107 = vmatpush2.msra.mxu0 0.0
  %3108 = vmatprep.subr.mxu0 0.0
  %3109 = vmatpush2.msra.mxu0 0.0
  %3110 = vmatprep.subr.mxu0 0.0
  %3111 = vmatpush2.msra.mxu0 0.0
  %3112 = vmatprep.subr.mxu0 0.0
  %3113 = vmatpush2.msra.mxu0 0.0
  %3114 = vmatprep.subr.mxu0 0.0
  %3115 = vmatpush2.msra.mxu0 0.0
  %3116 = vmatprep.mubr.f32.mxu0 0.0
  %3117 = vmatmul.mubr.f32.gmra.mxu0 %v3043
  %v3118 = vpop.f32.mrf.mxu0
  %v3119 = vadd.f32 0.0, %v3118
  %v3120 = vpop.f32.mrf.mxu0
  %v3121 = vadd.f32 0.0, %v3120
  %3122 = vdwg.mxu0
  %3123 = vmatprep.subr.mxu0 %v818
  %3124 = vmatpush1.msra.mxu0 %v817
  %3125 = vmatprep.subr.mxu0 %v814
  %3126 = vmatpush1.msra.mxu0 %v813
  %3127 = vmatprep.subr.mxu0 %v810
  %3128 = vmatpush1.msra.mxu0 %v809
  %3129 = vmatprep.subr.mxu0 %v806
  %3130 = vmatpush1.msra.mxu0 %v805
  %3131 = vmatprep.subr.mxu0 %v802
  %3132 = vmatpush1.msra.mxu0 %v801
  %3133 = vmatprep.subr.mxu0 %v798
  %3134 = vmatpush1.msra.mxu0 %v797
  %3135 = vmatprep.subr.mxu0 %v794
  %3136 = vmatpush1.msra.mxu0 %v793
  %3137 = vmatprep.subr.mxu0 %v790
  %3138 = vmatpush1.msra.mxu0 %v789
  %3139 = vmatprep.subr.mxu0 %v786
  %3140 = vmatpush1.msra.mxu0 %v785
  %3141 = vmatprep.subr.mxu0 %v782
  %3142 = vmatpush1.msra.mxu0 %v781
  %3143 = vmatprep.subr.mxu0 %v778
  %3144 = vmatpush1.msra.mxu0 %v777
  %3145 = vmatprep.subr.mxu0 %v774
  %3146 = vmatpush1.msra.mxu0 %v773
  %3147 = vmatprep.subr.mxu0 %v770
  %3148 = vmatpush1.msra.mxu0 %v769
  %3149 = vmatprep.subr.mxu0 %v766
  %3150 = vmatpush1.msra.mxu0 %v765
  %3151 = vmatprep.subr.mxu0 %v762
  %3152 = vmatpush1.msra.mxu0 %v761
  %3153 = vmatprep.subr.mxu0 %v758
  %3154 = vmatpush1.msra.mxu0 %v757
  %3155 = vmatprep.subr.mxu0 0.0
  %3156 = vmatpush2.msra.mxu0 0.0
  %3157 = vmatprep.subr.mxu0 0.0
  %3158 = vmatpush2.msra.mxu0 0.0
  %3159 = vmatprep.subr.mxu0 0.0
  %3160 = vmatpush2.msra.mxu0 0.0
  %3161 = vmatprep.subr.mxu0 0.0
  %3162 = vmatpush2.msra.mxu0 0.0
  %3163 = vmatprep.subr.mxu0 0.0
  %3164 = vmatpush2.msra.mxu0 0.0
  %3165 = vmatprep.subr.mxu0 0.0
  %3166 = vmatpush2.msra.mxu0 0.0
  %3167 = vmatprep.subr.mxu0 0.0
  %3168 = vmatpush2.msra.mxu0 0.0
  %3169 = vmatprep.subr.mxu0 0.0
  %3170 = vmatpush2.msra.mxu0 0.0
  %3171 = vmatprep.subr.mxu0 0.0
  %3172 = vmatpush2.msra.mxu0 0.0
  %3173 = vmatprep.subr.mxu0 0.0
  %3174 = vmatpush2.msra.mxu0 0.0
  %3175 = vmatprep.subr.mxu0 0.0
  %3176 = vmatpush2.msra.mxu0 0.0
  %3177 = vmatprep.subr.mxu0 0.0
  %3178 = vmatpush2.msra.mxu0 0.0
  %3179 = vmatprep.subr.mxu0 0.0
  %3180 = vmatpush2.msra.mxu0 0.0
  %3181 = vmatprep.subr.mxu0 0.0
  %3182 = vmatpush2.msra.mxu0 0.0
  %3183 = vmatprep.subr.mxu0 0.0
  %3184 = vmatpush2.msra.mxu0 0.0
  %3185 = vmatprep.subr.mxu0 0.0
  %3186 = vmatpush2.msra.mxu0 0.0
  %3187 = vmatprep.mubr.f32.mxu0 0.0
  %3188 = vmatmul.mubr.f32.gmra.mxu0 %v3043
  %v3189 = vpop.f32.mrf.mxu0
  %v3190 = vadd.f32 0.0, %v3189
  %v3191 = vpop.f32.mrf.mxu0
  %v3192 = vadd.f32 0.0, %v3191
  %3193 = vdwg.mxu0
  %v3194 = vadd.f32 %v3048, %v3119
  %v3195 = vadd.f32 %v3049, %v3121
  %v3196 = vadd.f32 %v3050, %v3190
  %v3197 = vadd.f32 %v3051, %v3192
  %v3198 = vmul.f32 %v3194, 0.5
  %v3199 = vtanh.pop %v3198
  %v3200 = vadd.f32 %v3199, 1.0
  %v3201 = vmul.f32 %v3200, 0.5
  %v3202 = vmul.f32 %v3195, 0.5
  %v3203 = vtanh.pop %v3202
  %v3204 = vadd.f32 %v3203, 1.0
  %v3205 = vmul.f32 %v3204, 0.5
  %v3206 = vtanh.pop %v3196
  %v3207 = vmul.f32 %v3197, 0.5
  %v3208 = vtanh.pop %v3207
  %v3209 = vadd.f32 %v3208, 1.0
  %v3210 = vmul.f32 %v3209, 0.5
  %v3211 = vmul.f32 %v3205, %v3041
  %v3212 = vmul.f32 %v3201, %v3206
  %v3213 = vadd.f32 %v3211, %v3212
  %v3214 = vtanh.pop %v3213
  %v3215 = vmul.f32 %v3210, %v3214
  %s3216 = scalar_lea.vmem [#allocation4], 40
  %3217 = vst [vmem:[%s3216] sm:$0xff] %v3215
  %s3218 = smul.addr %s1845, 8
  %s3219 = scalar_lea.vmem [#allocation3], %s3218
  %v3220 = vld [vmem:[%s3219] sm:$0xff]
  %v3221 = vld [vmem:[%s3219 + $0x8] sm:$0xff]
  %v3222 = vld [vmem:[%s3219 + $0x10] sm:$0xff]
  %v3223 = vld [vmem:[%s3219 + $0x18] sm:$0xff]
  %3224 = vmatprep.subr.mxu0 %v816
  %3225 = vmatpush1.msra.mxu0 %v815
  %3226 = vmatprep.subr.mxu0 %v812
  %3227 = vmatpush1.msra.mxu0 %v811
  %3228 = vmatprep.subr.mxu0 %v808
  %3229 = vmatpush1.msra.mxu0 %v807
  %3230 = vmatprep.subr.mxu0 %v804
  %3231 = vmatpush1.msra.mxu0 %v803
  %3232 = vmatprep.subr.mxu0 %v800
  %3233 = vmatpush1.msra.mxu0 %v799
  %3234 = vmatprep.subr.mxu0 %v796
  %3235 = vmatpush1.msra.mxu0 %v795
  %3236 = vmatprep.subr.mxu0 %v792
  %3237 = vmatpush1.msra.mxu0 %v791
  %3238 = vmatprep.subr.mxu0 %v788
  %3239 = vmatpush1.msra.mxu0 %v787
  %3240 = vmatprep.subr.mxu0 %v784
  %3241 = vmatpush1.msra.mxu0 %v783
  %3242 = vmatprep.subr.mxu0 %v780
  %3243 = vmatpush1.msra.mxu0 %v779
  %3244 = vmatprep.subr.mxu0 %v776
  %3245 = vmatpush1.msra.mxu0 %v775
  %3246 = vmatprep.subr.mxu0 %v772
  %3247 = vmatpush1.msra.mxu0 %v771
  %3248 = vmatprep.subr.mxu0 %v768
  %3249 = vmatpush1.msra.mxu0 %v767
  %3250 = vmatprep.subr.mxu0 %v764
  %3251 = vmatpush1.msra.mxu0 %v763
  %3252 = vmatprep.subr.mxu0 %v760
  %3253 = vmatpush1.msra.mxu0 %v759
  %3254 = vmatprep.subr.mxu0 %v756
  %3255 = vmatpush1.msra.mxu0 %v755
  %3256 = vmatprep.subr.mxu0 0.0
  %3257 = vmatpush2.msra.mxu0 0.0
  %3258 = vmatprep.subr.mxu0 0.0
  %3259 = vmatpush2.msra.mxu0 0.0
  %3260 = vmatprep.subr.mxu0 0.0
  %3261 = vmatpush2.msra.mxu0 0.0
  %3262 = vmatprep.subr.mxu0 0.0
  %3263 = vmatpush2.msra.mxu0 0.0
  %3264 = vmatprep.subr.mxu0 0.0
  %3265 = vmatpush2.msra.mxu0 0.0
  %3266 = vmatprep.subr.mxu0 0.0
  %3267 = vmatpush2.msra.mxu0 0.0
  %3268 = vmatprep.subr.mxu0 0.0
  %3269 = vmatpush2.msra.mxu0 0.0
  %3270 = vmatprep.subr.mxu0 0.0
  %3271 = vmatpush2.msra.mxu0 0.0
  %3272 = vmatprep.subr.mxu0 0.0
  %3273 = vmatpush2.msra.mxu0 0.0
  %3274 = vmatprep.subr.mxu0 0.0
  %3275 = vmatpush2.msra.mxu0 0.0
  %3276 = vmatprep.subr.mxu0 0.0
  %3277 = vmatpush2.msra.mxu0 0.0
  %3278 = vmatprep.subr.mxu0 0.0
  %3279 = vmatpush2.msra.mxu0 0.0
  %3280 = vmatprep.subr.mxu0 0.0
  %3281 = vmatpush2.msra.mxu0 0.0
  %3282 = vmatprep.subr.mxu0 0.0
  %3283 = vmatpush2.msra.mxu0 0.0
  %3284 = vmatprep.subr.mxu0 0.0
  %3285 = vmatpush2.msra.mxu0 0.0
  %3286 = vmatprep.subr.mxu0 0.0
  %3287 = vmatpush2.msra.mxu0 0.0
  %3288 = vmatprep.mubr.f32.mxu0 0.0
  %3289 = vmatmul.mubr.f32.gmra.mxu0 %v3215
  %v3290 = vpop.f32.mrf.mxu0
  %v3291 = vadd.f32 0.0, %v3290
  %v3292 = vpop.f32.mrf.mxu0
  %v3293 = vadd.f32 0.0, %v3292
  %3294 = vdwg.mxu0
  %3295 = vmatprep.subr.mxu0 %v818
  %3296 = vmatpush1.msra.mxu0 %v817
  %3297 = vmatprep.subr.mxu0 %v814
  %3298 = vmatpush1.msra.mxu0 %v813
  %3299 = vmatprep.subr.mxu0 %v810
  %3300 = vmatpush1.msra.mxu0 %v809
  %3301 = vmatprep.subr.mxu0 %v806
  %3302 = vmatpush1.msra.mxu0 %v805
  %3303 = vmatprep.subr.mxu0 %v802
  %3304 = vmatpush1.msra.mxu0 %v801
  %3305 = vmatprep.subr.mxu0 %v798
  %3306 = vmatpush1.msra.mxu0 %v797
  %3307 = vmatprep.subr.mxu0 %v794
  %3308 = vmatpush1.msra.mxu0 %v793
  %3309 = vmatprep.subr.mxu0 %v790
  %3310 = vmatpush1.msra.mxu0 %v789
  %3311 = vmatprep.subr.mxu0 %v786
  %3312 = vmatpush1.msra.mxu0 %v785
  %3313 = vmatprep.subr.mxu0 %v782
  %3314 = vmatpush1.msra.mxu0 %v781
  %3315 = vmatprep.subr.mxu0 %v778
  %3316 = vmatpush1.msra.mxu0 %v777
  %3317 = vmatprep.subr.mxu0 %v774
  %3318 = vmatpush1.msra.mxu0 %v773
  %3319 = vmatprep.subr.mxu0 %v770
  %3320 = vmatpush1.msra.mxu0 %v769
  %3321 = vmatprep.subr.mxu0 %v766
  %3322 = vmatpush1.msra.mxu0 %v765
  %3323 = vmatprep.subr.mxu0 %v762
  %3324 = vmatpush1.msra.mxu0 %v761
  %3325 = vmatprep.subr.mxu0 %v758
  %3326 = vmatpush1.msra.mxu0 %v757
  %3327 = vmatprep.subr.mxu0 0.0
  %3328 = vmatpush2.msra.mxu0 0.0
  %3329 = vmatprep.subr.mxu0 0.0
  %3330 = vmatpush2.msra.mxu0 0.0
  %3331 = vmatprep.subr.mxu0 0.0
  %3332 = vmatpush2.msra.mxu0 0.0
  %3333 = vmatprep.subr.mxu0 0.0
  %3334 = vmatpush2.msra.mxu0 0.0
  %3335 = vmatprep.subr.mxu0 0.0
  %3336 = vmatpush2.msra.mxu0 0.0
  %3337 = vmatprep.subr.mxu0 0.0
  %3338 = vmatpush2.msra.mxu0 0.0
  %3339 = vmatprep.subr.mxu0 0.0
  %3340 = vmatpush2.msra.mxu0 0.0
  %3341 = vmatprep.subr.mxu0 0.0
  %3342 = vmatpush2.msra.mxu0 0.0
  %3343 = vmatprep.subr.mxu0 0.0
  %3344 = vmatpush2.msra.mxu0 0.0
  %3345 = vmatprep.subr.mxu0 0.0
  %3346 = vmatpush2.msra.mxu0 0.0
  %3347 = vmatprep.subr.mxu0 0.0
  %3348 = vmatpush2.msra.mxu0 0.0
  %3349 = vmatprep.subr.mxu0 0.0
  %3350 = vmatpush2.msra.mxu0 0.0
  %3351 = vmatprep.subr.mxu0 0.0
  %3352 = vmatpush2.msra.mxu0 0.0
  %3353 = vmatprep.subr.mxu0 0.0
  %3354 = vmatpush2.msra.mxu0 0.0
  %3355 = vmatprep.subr.mxu0 0.0
  %3356 = vmatpush2.msra.mxu0 0.0
  %3357 = vmatprep.subr.mxu0 0.0
  %3358 = vmatpush2.msra.mxu0 0.0
  %3359 = vmatprep.mubr.f32.mxu0 0.0
  %3360 = vmatmul.mubr.f32.gmra.mxu0 %v3215
  %v3361 = vpop.f32.mrf.mxu0
  %v3362 = vadd.f32 0.0, %v3361
  %v3363 = vpop.f32.mrf.mxu0
  %v3364 = vadd.f32 0.0, %v3363
  %3365 = vdwg.mxu0
  %v3366 = vadd.f32 %v3220, %v3291
  %v3367 = vadd.f32 %v3221, %v3293
  %v3368 = vadd.f32 %v3222, %v3362
  %v3369 = vadd.f32 %v3223, %v3364
  %v3370 = vmul.f32 %v3366, 0.5
  %v3371 = vtanh.pop %v3370
  %v3372 = vadd.f32 %v3371, 1.0
  %v3373 = vmul.f32 %v3372, 0.5
  %v3374 = vmul.f32 %v3367, 0.5
  %v3375 = vtanh.pop %v3374
  %v3376 = vadd.f32 %v3375, 1.0
  %v3377 = vmul.f32 %v3376, 0.5
  %v3378 = vtanh.pop %v3368
  %v3379 = vmul.f32 %v3369, 0.5
  %v3380 = vtanh.pop %v3379
  %v3381 = vadd.f32 %v3380, 1.0
  %v3382 = vmul.f32 %v3381, 0.5
  %v3383 = vmul.f32 %v3377, %v3213
  %v3384 = vmul.f32 %v3373, %v3378
  %v3385 = vadd.f32 %v3383, %v3384
  %v3386 = vtanh.pop %v3385
  %v3387 = vmul.f32 %v3382, %v3386
  %s3388 = scalar_lea.vmem [#allocation4], 48
  %3389 = vst [vmem:[%s3388] sm:$0xff] %v3387
  %s3390 = smul.addr %s2016, 8
  %s3391 = scalar_lea.vmem [#allocation3], %s3390
  %v3392 = vld [vmem:[%s3391] sm:$0xff]
  %v3393 = vld [vmem:[%s3391 + $0x8] sm:$0xff]
  %v3394 = vld [vmem:[%s3391 + $0x10] sm:$0xff]
  %v3395 = vld [vmem:[%s3391 + $0x18] sm:$0xff]
  %3396 = vmatprep.subr.mxu0 %v816
  %3397 = vmatpush1.msra.mxu0 %v815
  %3398 = vmatprep.subr.mxu0 %v812
  %3399 = vmatpush1.msra.mxu0 %v811
  %3400 = vmatprep.subr.mxu0 %v808
  %3401 = vmatpush1.msra.mxu0 %v807
  %3402 = vmatprep.subr.mxu0 %v804
  %3403 = vmatpush1.msra.mxu0 %v803
  %3404 = vmatprep.subr.mxu0 %v800
  %3405 = vmatpush1.msra.mxu0 %v799
  %3406 = vmatprep.subr.mxu0 %v796
  %3407 = vmatpush1.msra.mxu0 %v795
  %3408 = vmatprep.subr.mxu0 %v792
  %3409 = vmatpush1.msra.mxu0 %v791
  %3410 = vmatprep.subr.mxu0 %v788
  %3411 = vmatpush1.msra.mxu0 %v787
  %3412 = vmatprep.subr.mxu0 %v784
  %3413 = vmatpush1.msra.mxu0 %v783
  %3414 = vmatprep.subr.mxu0 %v780
  %3415 = vmatpush1.msra.mxu0 %v779
  %3416 = vmatprep.subr.mxu0 %v776
  %3417 = vmatpush1.msra.mxu0 %v775
  %3418 = vmatprep.subr.mxu0 %v772
  %3419 = vmatpush1.msra.mxu0 %v771
  %3420 = vmatprep.subr.mxu0 %v768
  %3421 = vmatpush1.msra.mxu0 %v767
  %3422 = vmatprep.subr.mxu0 %v764
  %3423 = vmatpush1.msra.mxu0 %v763
  %3424 = vmatprep.subr.mxu0 %v760
  %3425 = vmatpush1.msra.mxu0 %v759
  %3426 = vmatprep.subr.mxu0 %v756
  %3427 = vmatpush1.msra.mxu0 %v755
  %3428 = vmatprep.subr.mxu0 0.0
  %3429 = vmatpush2.msra.mxu0 0.0
  %3430 = vmatprep.subr.mxu0 0.0
  %3431 = vmatpush2.msra.mxu0 0.0
  %3432 = vmatprep.subr.mxu0 0.0
  %3433 = vmatpush2.msra.mxu0 0.0
  %3434 = vmatprep.subr.mxu0 0.0
  %3435 = vmatpush2.msra.mxu0 0.0
  %3436 = vmatprep.subr.mxu0 0.0
  %3437 = vmatpush2.msra.mxu0 0.0
  %3438 = vmatprep.subr.mxu0 0.0
  %3439 = vmatpush2.msra.mxu0 0.0
  %3440 = vmatprep.subr.mxu0 0.0
  %3441 = vmatpush2.msra.mxu0 0.0
  %3442 = vmatprep.subr.mxu0 0.0
  %3443 = vmatpush2.msra.mxu0 0.0
  %3444 = vmatprep.subr.mxu0 0.0
  %3445 = vmatpush2.msra.mxu0 0.0
  %3446 = vmatprep.subr.mxu0 0.0
  %3447 = vmatpush2.msra.mxu0 0.0
  %3448 = vmatprep.subr.mxu0 0.0
  %3449 = vmatpush2.msra.mxu0 0.0
  %3450 = vmatprep.subr.mxu0 0.0
  %3451 = vmatpush2.msra.mxu0 0.0
  %3452 = vmatprep.subr.mxu0 0.0
  %3453 = vmatpush2.msra.mxu0 0.0
  %3454 = vmatprep.subr.mxu0 0.0
  %3455 = vmatpush2.msra.mxu0 0.0
  %3456 = vmatprep.subr.mxu0 0.0
  %3457 = vmatpush2.msra.mxu0 0.0
  %3458 = vmatprep.subr.mxu0 0.0
  %3459 = vmatpush2.msra.mxu0 0.0
  %3460 = vmatprep.mubr.f32.mxu0 0.0
  %3461 = vmatmul.mubr.f32.gmra.mxu0 %v3387
  %v3462 = vpop.f32.mrf.mxu0
  %v3463 = vadd.f32 0.0, %v3462
  %v3464 = vpop.f32.mrf.mxu0
  %v3465 = vadd.f32 0.0, %v3464
  %3466 = vdwg.mxu0
  %3467 = vmatprep.subr.mxu0 %v818
  %3468 = vmatpush1.msra.mxu0 %v817
  %3469 = vmatprep.subr.mxu0 %v814
  %3470 = vmatpush1.msra.mxu0 %v813
  %3471 = vmatprep.subr.mxu0 %v810
  %3472 = vmatpush1.msra.mxu0 %v809
  %3473 = vmatprep.subr.mxu0 %v806
  %3474 = vmatpush1.msra.mxu0 %v805
  %3475 = vmatprep.subr.mxu0 %v802
  %3476 = vmatpush1.msra.mxu0 %v801
  %3477 = vmatprep.subr.mxu0 %v798
  %3478 = vmatpush1.msra.mxu0 %v797
  %3479 = vmatprep.subr.mxu0 %v794
  %3480 = vmatpush1.msra.mxu0 %v793
  %3481 = vmatprep.subr.mxu0 %v790
  %3482 = vmatpush1.msra.mxu0 %v789
  %3483 = vmatprep.subr.mxu0 %v786
  %3484 = vmatpush1.msra.mxu0 %v785
  %3485 = vmatprep.subr.mxu0 %v782
  %3486 = vmatpush1.msra.mxu0 %v781
  %3487 = vmatprep.subr.mxu0 %v778
  %3488 = vmatpush1.msra.mxu0 %v777
  %3489 = vmatprep.subr.mxu0 %v774
  %3490 = vmatpush1.msra.mxu0 %v773
  %3491 = vmatprep.subr.mxu0 %v770
  %3492 = vmatpush1.msra.mxu0 %v769
  %3493 = vmatprep.subr.mxu0 %v766
  %3494 = vmatpush1.msra.mxu0 %v765
  %3495 = vmatprep.subr.mxu0 %v762
  %3496 = vmatpush1.msra.mxu0 %v761
  %3497 = vmatprep.subr.mxu0 %v758
  %3498 = vmatpush1.msra.mxu0 %v757
  %3499 = vmatprep.subr.mxu0 0.0
  %3500 = vmatpush2.msra.mxu0 0.0
  %3501 = vmatprep.subr.mxu0 0.0
  %3502 = vmatpush2.msra.mxu0 0.0
  %3503 = vmatprep.subr.mxu0 0.0
  %3504 = vmatpush2.msra.mxu0 0.0
  %3505 = vmatprep.subr.mxu0 0.0
  %3506 = vmatpush2.msra.mxu0 0.0
  %3507 = vmatprep.subr.mxu0 0.0
  %3508 = vmatpush2.msra.mxu0 0.0
  %3509 = vmatprep.subr.mxu0 0.0
  %3510 = vmatpush2.msra.mxu0 0.0
  %3511 = vmatprep.subr.mxu0 0.0
  %3512 = vmatpush2.msra.mxu0 0.0
  %3513 = vmatprep.subr.mxu0 0.0
  %3514 = vmatpush2.msra.mxu0 0.0
  %3515 = vmatprep.subr.mxu0 0.0
  %3516 = vmatpush2.msra.mxu0 0.0
  %3517 = vmatprep.subr.mxu0 0.0
  %3518 = vmatpush2.msra.mxu0 0.0
  %3519 = vmatprep.subr.mxu0 0.0
  %3520 = vmatpush2.msra.mxu0 0.0
  %3521 = vmatprep.subr.mxu0 0.0
  %3522 = vmatpush2.msra.mxu0 0.0
  %3523 = vmatprep.subr.mxu0 0.0
  %3524 = vmatpush2.msra.mxu0 0.0
  %3525 = vmatprep.subr.mxu0 0.0
  %3526 = vmatpush2.msra.mxu0 0.0
  %3527 = vmatprep.subr.mxu0 0.0
  %3528 = vmatpush2.msra.mxu0 0.0
  %3529 = vmatprep.subr.mxu0 0.0
  %3530 = vmatpush2.msra.mxu0 0.0
  %3531 = vmatprep.mubr.f32.mxu0 0.0
  %3532 = vmatmul.mubr.f32.gmra.mxu0 %v3387
  %v3533 = vpop.f32.mrf.mxu0
  %v3534 = vadd.f32 0.0, %v3533
  %v3535 = vpop.f32.mrf.mxu0
  %v3536 = vadd.f32 0.0, %v3535
  %3537 = vdwg.mxu0
  %v3538 = vadd.f32 %v3392, %v3463
  %v3539 = vadd.f32 %v3393, %v3465
  %v3540 = vadd.f32 %v3394, %v3534
  %v3541 = vadd.f32 %v3395, %v3536
  %v3542 = vmul.f32 %v3538, 0.5
  %v3543 = vtanh.pop %v3542
  %v3544 = vadd.f32 %v3543, 1.0
  %v3545 = vmul.f32 %v3544, 0.5
  %v3546 = vmul.f32 %v3539, 0.5
  %v3547 = vtanh.pop %v3546
  %v3548 = vadd.f32 %v3547, 1.0
  %v3549 = vmul.f32 %v3548, 0.5
  %v3550 = vtanh.pop %v3540
  %v3551 = vmul.f32 %v3541, 0.5
  %v3552 = vtanh.pop %v3551
  %v3553 = vadd.f32 %v3552, 1.0
  %v3554 = vmul.f32 %v3553, 0.5
  %v3555 = vmul.f32 %v3549, %v3385
  %v3556 = vmul.f32 %v3545, %v3550
  %v3557 = vadd.f32 %v3555, %v3556
  %v3558 = vtanh.pop %v3557
  %v3559 = vmul.f32 %v3554, %v3558
  %s3560 = scalar_lea.vmem [#allocation4], 56
  %3561 = vst [vmem:[%s3560] sm:$0xff] %v3559
  %v3562 = vld [vmem:[#allocation4] sm:$0xff]
  %v3563 = vld [vmem:[#allocation4 + $0x8] sm:$0xff]
  %v3564 = vld [vmem:[#allocation4 + $0x10] sm:$0xff]
  %v3565 = vld [vmem:[#allocation4 + $0x18] sm:$0xff]
  %v3566 = vld [vmem:[#allocation4 + $0x20] sm:$0xff]
  %v3567 = vld [vmem:[#allocation4 + $0x28] sm:$0xff]
  %v3568 = vld [vmem:[#allocation4 + $0x30] sm:$0xff]
  %v3569 = vld [vmem:[#allocation4 + $0x38] sm:$0xff]
  %v3570 = vld [vmem:[%s8] sm:$0xff]
  %v3571 = vld [vmem:[%s8 + $0x8] sm:$0xff]
  %v3572 = vld [vmem:[%s8 + $0x10] sm:$0xff]
  %v3573 = vld [vmem:[%s8 + $0x18] sm:$0xff]
  %v3574 = vld [vmem:[%s8 + $0x20] sm:$0xff]
  %v3575 = vld [vmem:[%s8 + $0x28] sm:$0xff]
  %v3576 = vld [vmem:[%s8 + $0x30] sm:$0xff]
  %v3577 = vld [vmem:[%s8 + $0x38] sm:$0xff]
  %v3578 = vld [vmem:[%s8 + $0x40] sm:$0xff]
  %v3579 = vld [vmem:[%s8 + $0x48] sm:$0xff]
  %v3580 = vld [vmem:[%s8 + $0x50] sm:$0xff]
  %v3581 = vld [vmem:[%s8 + $0x58] sm:$0xff]
  %v3582 = vld [vmem:[%s8 + $0x60] sm:$0xff]
  %v3583 = vld [vmem:[%s8 + $0x68] sm:$0xff]
  %v3584 = vld [vmem:[%s8 + $0x70] sm:$0xff]
  %v3585 = vld [vmem:[%s8 + $0x78] sm:$0xff]
  %v3586 = vld [vmem:[%s9] sm:$0x1]
  %v3588 = vlaneseq
  %v3589 = vshrl.u32 %v3588, 7
  %v3590 = vsub.s32 0, %v3589
  %v3591 = vrot.slane %v3586, %v3590
  %3593 = vmatprep.subr.mxu0 0.0
  %3594 = vmatpush1.msra.mxu0 %v3585
  %3595 = vmatprep.subr.mxu0 0.0
  %3596 = vmatpush1.msra.mxu0 %v3584
  %3597 = vmatprep.subr.mxu0 0.0
  %3598 = vmatpush1.msra.mxu0 %v3583
  %3599 = vmatprep.subr.mxu0 0.0
  %3600 = vmatpush1.msra.mxu0 %v3582
  %3601 = vmatprep.subr.mxu0 0.0
  %3602 = vmatpush1.msra.mxu0 %v3581
  %3603 = vmatprep.subr.mxu0 0.0
  %3604 = vmatpush1.msra.mxu0 %v3580
  %3605 = vmatprep.subr.mxu0 0.0
  %3606 = vmatpush1.msra.mxu0 %v3579
  %3607 = vmatprep.subr.mxu0 0.0
  %3608 = vmatpush1.msra.mxu0 %v3578
  %3609 = vmatprep.subr.mxu0 0.0
  %3610 = vmatpush1.msra.mxu0 %v3577
  %3611 = vmatprep.subr.mxu0 0.0
  %3612 = vmatpush1.msra.mxu0 %v3576
  %3613 = vmatprep.subr.mxu0 0.0
  %3614 = vmatpush1.msra.mxu0 %v3575
  %3615 = vmatprep.subr.mxu0 0.0
  %3616 = vmatpush1.msra.mxu0 %v3574
  %3617 = vmatprep.subr.mxu0 0.0
  %3618 = vmatpush1.msra.mxu0 %v3573
  %3619 = vmatprep.subr.mxu0 0.0
  %3620 = vmatpush1.msra.mxu0 %v3572
  %3621 = vmatprep.subr.mxu0 0.0
  %3622 = vmatpush1.msra.mxu0 %v3571
  %3623 = vmatprep.subr.mxu0 0.0
  %3624 = vmatpush1.msra.mxu0 %v3570
  %3625 = vmatprep.subr.mxu0 0.0
  %3626 = vmatpush2.msra.mxu0 0.0
  %3627 = vmatprep.subr.mxu0 0.0
  %3628 = vmatpush2.msra.mxu0 0.0
  %3629 = vmatprep.subr.mxu0 0.0
  %3630 = vmatpush2.msra.mxu0 0.0
  %3631 = vmatprep.subr.mxu0 0.0
  %3632 = vmatpush2.msra.mxu0 0.0
  %3633 = vmatprep.subr.mxu0 0.0
  %3634 = vmatpush2.msra.mxu0 0.0
  %3635 = vmatprep.subr.mxu0 0.0
  %3636 = vmatpush2.msra.mxu0 0.0
  %3637 = vmatprep.subr.mxu0 0.0
  %3638 = vmatpush2.msra.mxu0 0.0
  %3639 = vmatprep.subr.mxu0 0.0
  %3640 = vmatpush2.msra.mxu0 0.0
  %3641 = vmatprep.subr.mxu0 0.0
  %3642 = vmatpush2.msra.mxu0 0.0
  %3643 = vmatprep.subr.mxu0 0.0
  %3644 = vmatpush2.msra.mxu0 0.0
  %3645 = vmatprep.subr.mxu0 0.0
  %3646 = vmatpush2.msra.mxu0 0.0
  %3647 = vmatprep.subr.mxu0 0.0
  %3648 = vmatpush2.msra.mxu0 0.0
  %3649 = vmatprep.subr.mxu0 0.0
  %3650 = vmatpush2.msra.mxu0 0.0
  %3651 = vmatprep.subr.mxu0 0.0
  %3652 = vmatpush2.msra.mxu0 0.0
  %3653 = vmatprep.subr.mxu0 0.0
  %3654 = vmatpush2.msra.mxu0 0.0
  %3655 = vmatprep.subr.mxu0 0.0
  %3656 = vmatpush2.msra.mxu0 0.0
  %3657 = vmatprep.mubr.f32.mxu0 0.0
  %3658 = vmatmul.mubr.f32.gmra.mxu0 %v3562
  %v3659 = vpop.f32.mrf.mxu0
  %v3660 = vadd.f32 %v3591, %v3659
  %v3661 = vpop.f32.mrf.mxu0
  %3662 = vmatprep.mubr.f32.mxu0 0.0
  %3663 = vmatmul.mubr.f32.gmra.mxu0 %v3563
  %v3664 = vpop.f32.mrf.mxu0
  %v3665 = vadd.f32 %v3591, %v3664
  %v3666 = vpop.f32.mrf.mxu0
  %3667 = vmatprep.mubr.f32.mxu0 0.0
  %3668 = vmatmul.mubr.f32.gmra.mxu0 %v3564
  %v3669 = vpop.f32.mrf.mxu0
  %v3670 = vadd.f32 %v3591, %v3669
  %v3671 = vpop.f32.mrf.mxu0
  %3672 = vmatprep.mubr.f32.mxu0 0.0
  %3673 = vmatmul.mubr.f32.gmra.mxu0 %v3565
  %v3674 = vpop.f32.mrf.mxu0
  %v3675 = vadd.f32 %v3591, %v3674
  %v3676 = vpop.f32.mrf.mxu0
  %3677 = vmatprep.mubr.f32.mxu0 0.0
  %3678 = vmatmul.mubr.f32.gmra.mxu0 %v3566
  %v3679 = vpop.f32.mrf.mxu0
  %v3680 = vadd.f32 %v3591, %v3679
  %v3681 = vpop.f32.mrf.mxu0
  %3682 = vmatprep.mubr.f32.mxu0 0.0
  %3683 = vmatmul.mubr.f32.gmra.mxu0 %v3567
  %v3684 = vpop.f32.mrf.mxu0
  %v3685 = vadd.f32 %v3591, %v3684
  %v3686 = vpop.f32.mrf.mxu0
  %3687 = vmatprep.mubr.f32.mxu0 0.0
  %3688 = vmatmul.mubr.f32.gmra.mxu0 %v3568
  %v3689 = vpop.f32.mrf.mxu0
  %v3690 = vadd.f32 %v3591, %v3689
  %v3691 = vpop.f32.mrf.mxu0
  %3692 = vmatprep.mubr.f32.mxu0 0.0
  %3693 = vmatmul.mubr.f32.gmra.mxu0 %v3569
  %v3694 = vpop.f32.mrf.mxu0
  %v3695 = vadd.f32 %v3591, %v3694
  %v3696 = vpop.f32.mrf.mxu0
  %3697 = vdwg.mxu0
  %3698 = vst [vmem:[%s10] sm:$0xff] %v3660
  %3699 = vst [vmem:[%s10 + $0x8] sm:$0xff] %v3665
  %3700 = vst [vmem:[%s10 + $0x10] sm:$0xff] %v3670
  %3701 = vst [vmem:[%s10 + $0x18] sm:$0xff] %v3675
  %3702 = vst [vmem:[%s10 + $0x20] sm:$0xff] %v3680
  %3703 = vst [vmem:[%s10 + $0x28] sm:$0xff] %v3685
  %3704 = vst [vmem:[%s10 + $0x30] sm:$0xff] %v3690
  %3705 = vst [vmem:[%s10 + $0x38] sm:$0xff] %v3695
  // Predicated region
  $region42: #{seq2seq_forward.1} parent=0 // pred_check
    _
  $region43: #{seq2seq_forward.1} parent=0 // pred_check_branch
    %3707 = sbr.rel (0) target = $region45
  $region44: #{seq2seq_forward.1} parent=0 // pred_region
    _
  $region45: #{seq2seq_forward.1} parent=0 // pred_fallthru
    _
  // Predicated region
  $region46: #{seq2seq_forward.1} parent=0 // pred_check
    _
  $region47: #{seq2seq_forward.1} parent=0 // pred_check_branch
    %3709 = sbr.rel (0) target = $region49
  $region48: #{seq2seq_forward.1} parent=0 // pred_region
    _
  $region49: #{seq2seq_forward.1} parent=0 // pred_fallthru
    _

</llo_original>
